<compile_context>
chip_gen: v7x
topology: tpu7x:2x2x1
jax: 0.10.0
libtpu: 0.0.40
codegen_flags: <defaults>
</compile_context>

<pallas_src>
import functools

import numpy as np
import jax
import jax.numpy as jnp
from jax.experimental import pallas as pl
from jax.experimental.pallas import tpu as pltpu


def _round_up(x, m):
    return (x + m - 1) // m * m


def _cdiv(a, b):
    return (a + b - 1) // b


def _leaky_relu(h, alpha=0.2):
    return jnp.where(h > 0, h, alpha * h)


# ----------------------------- Pallas kernel -----------------------------

def flow_stack_kernel(x_ref, a_ref, w_ref, b_ref, out_ref, *,
                      num_flows, d2, H, parities, keep_intermediates):
    """Runs all L AffineHalfFlow layers on one (TB, dim) batch tile.

    a_ref[l] = [ E_x0 @ [sw0|tw0] | E_x0 | E_x1 ]  -> one fused matmul gives the
    first-hidden pre-activation of BOTH MLPs (block-diagonal packing) plus the
    de-interleaved halves x0/x1.  The hidden block sits at lane 0 so the next
    matmul operand is already lane-aligned.  Outputs are packed lane-dense:
    one (TB, OUT_W) store per tile."""
    z = x_ref[...]                                     # (TB, dim) f32
    tb = z.shape[0]
    ld = jnp.zeros((tb, 1), jnp.float32)
    pieces = []

    for l in range(num_flows):                         # static unroll (L is small)
        r = jnp.dot(z, a_ref[l], preferred_element_type=jnp.float32)   # (TB, H+2*d2)
        h = _leaky_relu(r[:, :H] + b_ref[4 * l + 0])                   # (TB, H)
        x0 = r[:, H:H + d2]
        x1 = r[:, H + d2:H + 2 * d2]
        h = _leaky_relu(jnp.dot(h, w_ref[3 * l + 0],
                                preferred_element_type=jnp.float32) + b_ref[4 * l + 1])
        h = _leaky_relu(jnp.dot(h, w_ref[3 * l + 1],
                                preferred_element_type=jnp.float32) + b_ref[4 * l + 2])
        o = jnp.dot(h, w_ref[3 * l + 2],
                    preferred_element_type=jnp.float32) + b_ref[4 * l + 3]
        s = o[:, :d2]
        t = o[:, d2:2 * d2]

        z1 = jnp.exp(s) * x1 + t
        if parities[l]:                                # static python flag
            z = jnp.concatenate([z1, x0], axis=1)
        else:
            z = jnp.concatenate([x0, z1], axis=1)
        if keep_intermediates:
            pieces.append(z)
        ld = ld + jnp.sum(s, axis=1, keepdims=True)

    if not keep_intermediates:
        pieces = [z]
    out_ref[...] = jnp.concatenate(pieces + [ld], axis=1)   # single lane-dense store


# --------------------------- parameter packing ---------------------------

def make_mlp_params(key, nin, nout, nh):
    """Deterministic init for a 4-layer MLP: Linear(nin,nh), 2x Linear(nh,nh),
    Linear(nh,nout).  Weights stored as (in, out), biases as (1, out)."""
    sizes = [(nin, nh), (nh, nh), (nh, nh), (nh, nout)]
    params = []
    for i, (fi, fo) in enumerate(sizes):
        kw, kb = jax.random.split(jax.random.fold_in(key, i))
        w = 0.1 * jax.random.normal(kw, (fi, fo), dtype=jnp.float32)
        b = 0.1 * jax.random.normal(kb, (1, fo), dtype=jnp.float32)
        params += [w, b]
    return params


def pack_flow_params(flows, dim, nh):
    """Pack per-flow (s_params, t_params, parity) into 3 padded slabs:
       A  : (L, dim, H+2*d2)  -- [ fused first layer | E_x0 | E_x1 ] (hidden at lane 0)
       W  : (3L, H, H)        -- block-diagonal fused layers 1..3 (zero padded)
       Bb : (4L, 1, H)        -- fused biases (zero padded)
    H = padded fused hidden width (>= 2*nh, >= 2*d2)."""
    d2 = dim // 2
    H = _round_up(max(2 * nh, 2 * d2), 8)
    CAT = H + 2 * d2
    L = len(flows)
    A = np.zeros((L, dim, CAT), np.float32)
    W = np.zeros((3 * L, H, H), np.float32)
    Bb = np.zeros((4 * L, 1, H), np.float32)
    cols = np.arange(d2)

    for l, (sp, tp, parity) in enumerate(flows):
        sw0, sb0, sw1, sb1, sw2, sb2, sw3, sb3 = [np.asarray(p) for p in sp]
        tw0, tb0, tw1, tb1, tw2, tb2, tw3, tb3 = [np.asarray(p) for p in tp]

        ex0 = np.zeros((dim, d2), np.float32)          # z @ ex0 = even (or odd) half
        ex1 = np.zeros((dim, d2), np.float32)
        if parity:
            ex0[2 * cols + 1, cols] = 1.0
            ex1[2 * cols, cols] = 1.0
        else:
            ex0[2 * cols, cols] = 1.0
            ex1[2 * cols + 1, cols] = 1.0

        w0f = np.concatenate([sw0, tw0], axis=1)       # (d2, 2nh)
        A[l, :, :2 * nh] = ex0 @ w0f                   # hidden pre-activation at lane 0
        A[l, :, H:H + d2] = ex0
        A[l, :, H + d2:H + 2 * d2] = ex1

        for j, (a_, b_) in enumerate([(sw1, tw1), (sw2, tw2), (sw3, tw3)]):
            kout = a_.shape[1]
            W[3 * l + j, :nh, :kout] = a_
            W[3 * l + j, nh:2 * nh, kout:2 * kout] = b_

        for j, (a_, b_) in enumerate([(sb0, tb0), (sb1, tb1), (sb2, tb2), (sb3, tb3)]):
            n = a_.shape[1]
            Bb[4 * l + j, 0, :n] = a_[0]
            Bb[4 * l + j, 0, n:2 * n] = b_[0]

    return jnp.asarray(A), jnp.asarray(W), jnp.asarray(Bb), H, CAT


# ------------------------------- wrappers --------------------------------

def normalizing_flow_forward(x, flows, nh, *, batch_tile=512, return_intermediates=True):
    """Fused Pallas forward of NormalizingFlow.

    return_intermediates=True  -> (zs list incl. x, total log_det)   [module semantics]
    return_intermediates=False -> (final z, total log_det)           [fast path]"""
    B, dim = x.shape
    d2 = dim // 2
    L = len(flows)
    parities = tuple(int(p) for (_, _, p) in flows)
    A, W, Bb, H, CAT = pack_flow_params(flows, dim, nh)

    # Batch tiling: big tiles amortize the ~0.35us/step pipeline overhead, but keep
    # >= 2 grid steps when the batch allows so both v7x TensorCores get work.
    Bp8 = _round_up(B, 8)
    TB = min(batch_tile, Bp8)
    steps = _cdiv(Bp8, TB)
    if steps < 2 and Bp8 >= 16:
        TB = _round_up(_cdiv(Bp8, 2), 8)
        steps = _cdiv(Bp8, TB)
    Bp = TB * steps
    xp = jnp.pad(x, ((0, Bp - B), (0, 0))) if Bp != B else x

    out_w = (L * dim if return_intermediates else dim) + 1    # [zs | log_det] packed

    kernel = functools.partial(flow_stack_kernel, num_flows=L, d2=d2, H=H,
                               parities=parities,
                               keep_intermediates=return_intermediates)

    param_bytes = 4 * (A.size + W.size + Bb.size)
    cost = pl.CostEstimate(
        flops=int(2 * Bp * L * (dim * CAT + 3 * H * H)),
        transcendentals=int(Bp * L * d2),
        bytes_accessed=int(4 * Bp * (dim + out_w) + param_bytes),
    )

    out = pl.pallas_call(
        kernel,
        grid=(steps,),
        in_specs=[
            pl.BlockSpec((TB, dim), lambda i: (i, 0)),          # batch-tiled input
            pl.BlockSpec((L, dim, CAT), lambda i: (0, 0, 0)),   # packed params (const)
            pl.BlockSpec((3 * L, H, H), lambda i: (0, 0, 0)),
            pl.BlockSpec((4 * L, 1, H), lambda i: (0, 0, 0)),
        ],
        out_specs=pl.BlockSpec((TB, out_w), lambda i: (i, 0)),  # lane-dense packed out
        out_shape=jax.ShapeDtypeStruct((Bp, out_w), jnp.float32),
        compiler_params=pltpu.CompilerParams(
            dimension_semantics=("parallel",),        # shard batch tiles over TCs (v7x)
            vmem_limit_bytes=32 * 1024 * 1024,
        ),
        cost_estimate=cost,
    )(xp, A, W, Bb)

    log_det = out[:B, out_w - 1]
    if return_intermediates:
        zs = [x] + [out[:B, l * dim:(l + 1) * dim] for l in range(L)]
        return zs, log_det
    return out[:B, :dim], log_det


def base_log_prob(z, mu, log_sigma, eps=1e-6):
    """MultivariateNormal(mu_i, c_i*ones(d,d) + eps*I).log_prob(z_i) in closed form,
    where c_i = exp(log_sigma_i) . exp(log_sigma_i)  (torch `sg @ sg.T` on a 1-D sg).
    Uses Sherman-Morrison for the rank-1 + eps*I covariance (exact, Cholesky-free)."""
    d = z.shape[1]
    sg = jnp.exp(log_sigma)
    c = jnp.sum(sg * sg, axis=1)                              # (n,)
    diff = z - mu                                             # (n, d)
    sq = jnp.sum(diff * diff, axis=1)
    sm = jnp.sum(diff, axis=1)
    maha = sq / eps - (c / (eps * (eps + c * d))) * sm * sm
    logdet = (d - 1) * jnp.log(eps) + jnp.log(eps + c * d)
    return -0.5 * (maha + logdet + d * jnp.log(2.0 * jnp.pi))


def normalizing_flow_model2_forward(x, mu, log_sigma, flows, nh):
    """Forward of NormalizingFlowModel2: (zs, base_logprob, log_det).
    The flow stack runs inside the fused Pallas kernel."""
    zs, log_det = normalizing_flow_forward(x, flows, nh)
    # TODO(synk): the base-distribution MultivariateNormal log_prob (per-sample rank-1
    # covariance from exp(log_sigma)) runs as plain XLA via the Sherman-Morrison
    # closed form above, not inside the Pallas kernel.
    base_logprob = base_log_prob(zs[-1], mu, log_sigma).reshape(x.shape[0], -1).sum(1)
    return zs, base_logprob, log_det


# ------------------------------- reference -------------------------------

def _mlp_ref(x, w0, b0, w1, b1, w2, b2, w3, b3):
    hp = jax.lax.Precision.HIGHEST
    h = _leaky_relu(jnp.dot(x, w0, precision=hp) + b0)
    h = _leaky_relu(jnp.dot(h, w1, precision=hp) + b1)
    h = _leaky_relu(jnp.dot(h, w2, precision=hp) + b2)
    return jnp.dot(h, w3, precision=hp) + b3


def reference_forward(x, flows):
    zs = [x]
    log_det = jnp.zeros(x.shape[0], jnp.float32)
    z = x
    for (sp, tp, parity) in flows:
        x0, x1 = z[:, ::2], z[:, 1::2]
        if parity:
            x0, x1 = x1, x0
        s = _mlp_ref(x0, *sp)
        t = _mlp_ref(x0, *tp)
        z0, z1 = x0, jnp.exp(s) * x1 + t
        if parity:
            z0, z1 = z1, z0
        z = jnp.concatenate([z0, z1], axis=1)
        zs.append(z)
        log_det = log_det + jnp.sum(s, axis=1)
    return zs, log_det


# --------------------------------- main -----------------------------------

if __name__ == "__main__":
    B, dim, nh, L = 200, 8, 24, 4          # 4 coupling layers, alternating parity

    key = jax.random.PRNGKey(0)
    kx, kp, km, ks = jax.random.split(key, 4)
    x = jax.random.normal(kx, (B, dim), dtype=jnp.float32)
    mu = 0.1 * jax.random.normal(km, (B, dim), dtype=jnp.float32)
    log_sigma = 0.1 * jax.random.normal(ks, (B, dim), dtype=jnp.float32)

    flows = []
    for l in range(L):
        ksl, ktl = jax.random.split(jax.random.fold_in(kp, l))
        flows.append((make_mlp_params(ksl, dim // 2, dim // 2, nh),
                      make_mlp_params(ktl, dim // 2, dim // 2, nh),
                      l % 2))

    # Full module forward (zs list + base log_prob + log_det).
    zs, base_logprob, log_det = normalizing_flow_model2_forward(x, mu, log_sigma, flows, nh)
    jax.block_until_ready((zs[-1], base_logprob, log_det))

    # Fast path: final z + log_det only (no intermediate-zs HBM traffic).
    z_last, log_det_fast = normalizing_flow_forward(x, flows, nh, return_intermediates=False)
    jax.block_until_ready((z_last, log_det_fast))

    zs_ref, ld_ref = reference_forward(x, flows)
    for l in range(L + 1):
        assert jnp.allclose(zs[l], zs_ref[l], atol=5e-3, rtol=5e-3), f"z mismatch at layer {l}"
    assert jnp.allclose(log_det, ld_ref, atol=5e-3, rtol=5e-3), "log_det mismatch"
    assert jnp.allclose(z_last, zs_ref[-1], atol=5e-3, rtol=5e-3), "fast-path z mismatch"
    assert jnp.allclose(log_det_fast, ld_ref, atol=5e-3, rtol=5e-3), "fast-path log_det mismatch"
    assert bool(jnp.all(jnp.isfinite(base_logprob))), "base log_prob not finite"

    print("KERNEL_OK")
</pallas_src>

<mosaic_0001>
module attributes {stable_mosaic.version = 11 : i64} {
  func.func @flow_stack_kernel(%arg0: i32, %arg1: memref<104x8xf32, #tpu.memory_space<vmem>>, %arg2: memref<4x8x56xf32, #tpu.memory_space<vmem>>, %arg3: memref<12x48x48xf32, #tpu.memory_space<vmem>>, %arg4: memref<16x1x48xf32, #tpu.memory_space<vmem>>, %arg5: memref<104x33xf32, #tpu.memory_space<vmem>>) attributes {dimension_semantics = [#tpu.dimension_semantics<parallel>], iteration_bounds = array<i64: 2>, scalar_prefetch = 0 : i64, scratch_operands = 0 : i64, tpu.core_type = #tpu.core_type<tc>, window_params = [{transform_indices = @transform_0, window_bounds = array<i64: 104, 8>}, {pipeline_mode = #tpu.pipeline_mode<synchronous>, transform_indices = @transform_1, window_bounds = array<i64: 4, 8, 56>}, {pipeline_mode = #tpu.pipeline_mode<synchronous>, transform_indices = @transform_2, window_bounds = array<i64: 12, 48, 48>}, {pipeline_mode = #tpu.pipeline_mode<synchronous>, transform_indices = @transform_3, window_bounds = array<i64: 16, 1, 48>}, {transform_indices = @transform_4, window_bounds = array<i64: 104, 33>}]} {
    %c0 = arith.constant 0 : index
    %c0_0 = arith.constant 0 : index
    %0 = vector.load %arg1[%c0, %c0_0] : memref<104x8xf32, #tpu.memory_space<vmem>>, vector<104x8xf32>
    %cst = arith.constant 0.000000e+00 : f32
    %1 = vector.broadcast %cst : f32 to vector<104x1xf32>
    %c0_1 = arith.constant 0 : index
    %c0_2 = arith.constant 0 : index
    %c0_3 = arith.constant 0 : index
    %2 = vector.load %arg2[%c0_1, %c0_2, %c0_3] : memref<4x8x56xf32, #tpu.memory_space<vmem>>, vector<1x8x56xf32>
    %3 = vector.shape_cast %2 : vector<1x8x56xf32> to vector<8x56xf32>
    %cst_4 = arith.constant dense<0.000000e+00> : vector<104x56xf32>
    %4 = tpu.matmul %0, %3, %cst_4 {dimension_numbers = #tpu.dot_dimension_numbers<[1], [0], [0], [1], [0, 0, 1, 1], [], []>} : vector<104x8xf32>, vector<8x56xf32>, vector<104x56xf32> -> vector<104x56xf32>
    %5 = vector.extract_strided_slice %4 {offsets = [0, 0], sizes = [104, 48], strides = [1, 1]} : vector<104x56xf32> to vector<104x48xf32>
    %c0_5 = arith.constant 0 : index
    %c0_6 = arith.constant 0 : index
    %c0_7 = arith.constant 0 : index
    %6 = vector.load %arg4[%c0_5, %c0_6, %c0_7] : memref<16x1x48xf32, #tpu.memory_space<vmem>>, vector<1x1x48xf32>
    %7 = vector.shape_cast %6 : vector<1x1x48xf32> to vector<1x48xf32>
    %8 = vector.broadcast %7 : vector<1x48xf32> to vector<104x48xf32>
    %9 = arith.addf %5, %8 : vector<104x48xf32>
    %cst_8 = arith.constant 0.000000e+00 : f32
    %10 = vector.broadcast %cst_8 : f32 to vector<104x48xf32>
    %11 = arith.cmpf ogt, %9, %10 : vector<104x48xf32>
    %cst_9 = arith.constant 2.000000e-01 : f32
    %12 = vector.broadcast %cst_9 : f32 to vector<104x48xf32>
    %13 = arith.mulf %12, %9 : vector<104x48xf32>
    %14 = arith.select %11, %9, %13 : vector<104x48xi1>, vector<104x48xf32>
    %15 = vector.extract_strided_slice %4 {offsets = [0, 48], sizes = [104, 4], strides = [1, 1]} : vector<104x56xf32> to vector<104x4xf32>
    %16 = vector.extract_strided_slice %4 {offsets = [0, 52], sizes = [104, 4], strides = [1, 1]} : vector<104x56xf32> to vector<104x4xf32>
    %c0_10 = arith.constant 0 : index
    %c0_11 = arith.constant 0 : index
    %c0_12 = arith.constant 0 : index
    %17 = vector.load %arg3[%c0_10, %c0_11, %c0_12] : memref<12x48x48xf32, #tpu.memory_space<vmem>>, vector<1x48x48xf32>
    %18 = vector.shape_cast %17 : vector<1x48x48xf32> to vector<48x48xf32>
    %cst_13 = arith.constant dense<0.000000e+00> : vector<104x48xf32>
    %19 = tpu.matmul %14, %18, %cst_13 {dimension_numbers = #tpu.dot_dimension_numbers<[1], [0], [0], [1], [0, 0, 1, 1], [], []>} : vector<104x48xf32>, vector<48x48xf32>, vector<104x48xf32> -> vector<104x48xf32>
    %c1 = arith.constant 1 : index
    %c0_14 = arith.constant 0 : index
    %c0_15 = arith.constant 0 : index
    %20 = vector.load %arg4[%c1, %c0_14, %c0_15] : memref<16x1x48xf32, #tpu.memory_space<vmem>>, vector<1x1x48xf32>
    %21 = vector.shape_cast %20 : vector<1x1x48xf32> to vector<1x48xf32>
    %22 = vector.broadcast %21 : vector<1x48xf32> to vector<104x48xf32>
    %23 = arith.addf %19, %22 : vector<104x48xf32>
    %cst_16 = arith.constant 0.000000e+00 : f32
    %24 = vector.broadcast %cst_16 : f32 to vector<104x48xf32>
    %25 = arith.cmpf ogt, %23, %24 : vector<104x48xf32>
    %cst_17 = arith.constant 2.000000e-01 : f32
    %26 = vector.broadcast %cst_17 : f32 to vector<104x48xf32>
    %27 = arith.mulf %26, %23 : vector<104x48xf32>
    %28 = arith.select %25, %23, %27 : vector<104x48xi1>, vector<104x48xf32>
    %c1_18 = arith.constant 1 : index
    %c0_19 = arith.constant 0 : index
    %c0_20 = arith.constant 0 : index
    %29 = vector.load %arg3[%c1_18, %c0_19, %c0_20] : memref<12x48x48xf32, #tpu.memory_space<vmem>>, vector<1x48x48xf32>
    %30 = vector.shape_cast %29 : vector<1x48x48xf32> to vector<48x48xf32>
    %cst_21 = arith.constant dense<0.000000e+00> : vector<104x48xf32>
    %31 = tpu.matmul %28, %30, %cst_21 {dimension_numbers = #tpu.dot_dimension_numbers<[1], [0], [0], [1], [0, 0, 1, 1], [], []>} : vector<104x48xf32>, vector<48x48xf32>, vector<104x48xf32> -> vector<104x48xf32>
    %c2 = arith.constant 2 : index
    %c0_22 = arith.constant 0 : index
    %c0_23 = arith.constant 0 : index
    %32 = vector.load %arg4[%c2, %c0_22, %c0_23] : memref<16x1x48xf32, #tpu.memory_space<vmem>>, vector<1x1x48xf32>
    %33 = vector.shape_cast %32 : vector<1x1x48xf32> to vector<1x48xf32>
    %34 = vector.broadcast %33 : vector<1x48xf32> to vector<104x48xf32>
    %35 = arith.addf %31, %34 : vector<104x48xf32>
    %cst_24 = arith.constant 0.000000e+00 : f32
    %36 = vector.broadcast %cst_24 : f32 to vector<104x48xf32>
    %37 = arith.cmpf ogt, %35, %36 : vector<104x48xf32>
    %cst_25 = arith.constant 2.000000e-01 : f32
    %38 = vector.broadcast %cst_25 : f32 to vector<104x48xf32>
    %39 = arith.mulf %38, %35 : vector<104x48xf32>
    %40 = arith.select %37, %35, %39 : vector<104x48xi1>, vector<104x48xf32>
    %c2_26 = arith.constant 2 : index
    %c0_27 = arith.constant 0 : index
    %c0_28 = arith.constant 0 : index
    %41 = vector.load %arg3[%c2_26, %c0_27, %c0_28] : memref<12x48x48xf32, #tpu.memory_space<vmem>>, vector<1x48x48xf32>
    %42 = vector.shape_cast %41 : vector<1x48x48xf32> to vector<48x48xf32>
    %cst_29 = arith.constant dense<0.000000e+00> : vector<104x48xf32>
    %43 = tpu.matmul %40, %42, %cst_29 {dimension_numbers = #tpu.dot_dimension_numbers<[1], [0], [0], [1], [0, 0, 1, 1], [], []>} : vector<104x48xf32>, vector<48x48xf32>, vector<104x48xf32> -> vector<104x48xf32>
    %c3 = arith.constant 3 : index
    %c0_30 = arith.constant 0 : index
    %c0_31 = arith.constant 0 : index
    %44 = vector.load %arg4[%c3, %c0_30, %c0_31] : memref<16x1x48xf32, #tpu.memory_space<vmem>>, vector<1x1x48xf32>
    %45 = vector.shape_cast %44 : vector<1x1x48xf32> to vector<1x48xf32>
    %46 = vector.broadcast %45 : vector<1x48xf32> to vector<104x48xf32>
    %47 = arith.addf %43, %46 : vector<104x48xf32>
    %48 = vector.extract_strided_slice %47 {offsets = [0, 0], sizes = [104, 4], strides = [1, 1]} : vector<104x48xf32> to vector<104x4xf32>
    %49 = vector.extract_strided_slice %47 {offsets = [0, 4], sizes = [104, 4], strides = [1, 1]} : vector<104x48xf32> to vector<104x4xf32>
    %50 = math.exp %48 : vector<104x4xf32>
    %51 = arith.mulf %50, %16 : vector<104x4xf32>
    %52 = arith.addf %51, %49 : vector<104x4xf32>
    %53 = tpu.concatenate %15, %52 in 1 : vector<104x4xf32>, vector<104x4xf32> -> vector<104x8xf32>
    %cst_32 = arith.constant dense<0.000000e+00> : vector<104xf32>
    %54 = vector.multi_reduction <add>, %48, %cst_32 [1] : vector<104x4xf32> to vector<104xf32>
    %55 = vector.shape_cast %54 : vector<104xf32> to vector<104x1xf32>
    %56 = arith.addf %1, %55 : vector<104x1xf32>
    %c1_33 = arith.constant 1 : index
    %c0_34 = arith.constant 0 : index
    %c0_35 = arith.constant 0 : index
    %57 = vector.load %arg2[%c1_33, %c0_34, %c0_35] : memref<4x8x56xf32, #tpu.memory_space<vmem>>, vector<1x8x56xf32>
    %58 = vector.shape_cast %57 : vector<1x8x56xf32> to vector<8x56xf32>
    %cst_36 = arith.constant dense<0.000000e+00> : vector<104x56xf32>
    %59 = tpu.matmul %53, %58, %cst_36 {dimension_numbers = #tpu.dot_dimension_numbers<[1], [0], [0], [1], [0, 0, 1, 1], [], []>} : vector<104x8xf32>, vector<8x56xf32>, vector<104x56xf32> -> vector<104x56xf32>
    %60 = vector.extract_strided_slice %59 {offsets = [0, 0], sizes = [104, 48], strides = [1, 1]} : vector<104x56xf32> to vector<104x48xf32>
    %c4 = arith.constant 4 : index
    %c0_37 = arith.constant 0 : index
    %c0_38 = arith.constant 0 : index
    %61 = vector.load %arg4[%c4, %c0_37, %c0_38] : memref<16x1x48xf32, #tpu.memory_space<vmem>>, vector<1x1x48xf32>
    %62 = vector.shape_cast %61 : vector<1x1x48xf32> to vector<1x48xf32>
    %63 = vector.broadcast %62 : vector<1x48xf32> to vector<104x48xf32>
    %64 = arith.addf %60, %63 : vector<104x48xf32>
    %cst_39 = arith.constant 0.000000e+00 : f32
    %65 = vector.broadcast %cst_39 : f32 to vector<104x48xf32>
    %66 = arith.cmpf ogt, %64, %65 : vector<104x48xf32>
    %cst_40 = arith.constant 2.000000e-01 : f32
    %67 = vector.broadcast %cst_40 : f32 to vector<104x48xf32>
    %68 = arith.mulf %67, %64 : vector<104x48xf32>
    %69 = arith.select %66, %64, %68 : vector<104x48xi1>, vector<104x48xf32>
    %70 = vector.extract_strided_slice %59 {offsets = [0, 48], sizes = [104, 4], strides = [1, 1]} : vector<104x56xf32> to vector<104x4xf32>
    %71 = vector.extract_strided_slice %59 {offsets = [0, 52], sizes = [104, 4], strides = [1, 1]} : vector<104x56xf32> to vector<104x4xf32>
    %c3_41 = arith.constant 3 : index
    %c0_42 = arith.constant 0 : index
    %c0_43 = arith.constant 0 : index
    %72 = vector.load %arg3[%c3_41, %c0_42, %c0_43] : memref<12x48x48xf32, #tpu.memory_space<vmem>>, vector<1x48x48xf32>
    %73 = vector.shape_cast %72 : vector<1x48x48xf32> to vector<48x48xf32>
    %cst_44 = arith.constant dense<0.000000e+00> : vector<104x48xf32>
    %74 = tpu.matmul %69, %73, %cst_44 {dimension_numbers = #tpu.dot_dimension_numbers<[1], [0], [0], [1], [0, 0, 1, 1], [], []>} : vector<104x48xf32>, vector<48x48xf32>, vector<104x48xf32> -> vector<104x48xf32>
    %c5 = arith.constant 5 : index
    %c0_45 = arith.constant 0 : index
    %c0_46 = arith.constant 0 : index
    %75 = vector.load %arg4[%c5, %c0_45, %c0_46] : memref<16x1x48xf32, #tpu.memory_space<vmem>>, vector<1x1x48xf32>
    %76 = vector.shape_cast %75 : vector<1x1x48xf32> to vector<1x48xf32>
    %77 = vector.broadcast %76 : vector<1x48xf32> to vector<104x48xf32>
    %78 = arith.addf %74, %77 : vector<104x48xf32>
    %cst_47 = arith.constant 0.000000e+00 : f32
    %79 = vector.broadcast %cst_47 : f32 to vector<104x48xf32>
    %80 = arith.cmpf ogt, %78, %79 : vector<104x48xf32>
    %cst_48 = arith.constant 2.000000e-01 : f32
    %81 = vector.broadcast %cst_48 : f32 to vector<104x48xf32>
    %82 = arith.mulf %81, %78 : vector<104x48xf32>
    %83 = arith.select %80, %78, %82 : vector<104x48xi1>, vector<104x48xf32>
    %c4_49 = arith.constant 4 : index
    %c0_50 = arith.constant 0 : index
    %c0_51 = arith.constant 0 : index
    %84 = vector.load %arg3[%c4_49, %c0_50, %c0_51] : memref<12x48x48xf32, #tpu.memory_space<vmem>>, vector<1x48x48xf32>
    %85 = vector.shape_cast %84 : vector<1x48x48xf32> to vector<48x48xf32>
    %cst_52 = arith.constant dense<0.000000e+00> : vector<104x48xf32>
    %86 = tpu.matmul %83, %85, %cst_52 {dimension_numbers = #tpu.dot_dimension_numbers<[1], [0], [0], [1], [0, 0, 1, 1], [], []>} : vector<104x48xf32>, vector<48x48xf32>, vector<104x48xf32> -> vector<104x48xf32>
    %c6 = arith.constant 6 : index
    %c0_53 = arith.constant 0 : index
    %c0_54 = arith.constant 0 : index
    %87 = vector.load %arg4[%c6, %c0_53, %c0_54] : memref<16x1x48xf32, #tpu.memory_space<vmem>>, vector<1x1x48xf32>
    %88 = vector.shape_cast %87 : vector<1x1x48xf32> to vector<1x48xf32>
    %89 = vector.broadcast %88 : vector<1x48xf32> to vector<104x48xf32>
    %90 = arith.addf %86, %89 : vector<104x48xf32>
    %cst_55 = arith.constant 0.000000e+00 : f32
    %91 = vector.broadcast %cst_55 : f32 to vector<104x48xf32>
    %92 = arith.cmpf ogt, %90, %91 : vector<104x48xf32>
    %cst_56 = arith.constant 2.000000e-01 : f32
    %93 = vector.broadcast %cst_56 : f32 to vector<104x48xf32>
    %94 = arith.mulf %93, %90 : vector<104x48xf32>
    %95 = arith.select %92, %90, %94 : vector<104x48xi1>, vector<104x48xf32>
    %c5_57 = arith.constant 5 : index
    %c0_58 = arith.constant 0 : index
    %c0_59 = arith.constant 0 : index
    %96 = vector.load %arg3[%c5_57, %c0_58, %c0_59] : memref<12x48x48xf32, #tpu.memory_space<vmem>>, vector<1x48x48xf32>
    %97 = vector.shape_cast %96 : vector<1x48x48xf32> to vector<48x48xf32>
    %cst_60 = arith.constant dense<0.000000e+00> : vector<104x48xf32>
    %98 = tpu.matmul %95, %97, %cst_60 {dimension_numbers = #tpu.dot_dimension_numbers<[1], [0], [0], [1], [0, 0, 1, 1], [], []>} : vector<104x48xf32>, vector<48x48xf32>, vector<104x48xf32> -> vector<104x48xf32>
    %c7 = arith.constant 7 : index
    %c0_61 = arith.constant 0 : index
    %c0_62 = arith.constant 0 : index
    %99 = vector.load %arg4[%c7, %c0_61, %c0_62] : memref<16x1x48xf32, #tpu.memory_space<vmem>>, vector<1x1x48xf32>
    %100 = vector.shape_cast %99 : vector<1x1x48xf32> to vector<1x48xf32>
    %101 = vector.broadcast %100 : vector<1x48xf32> to vector<104x48xf32>
    %102 = arith.addf %98, %101 : vector<104x48xf32>
    %103 = vector.extract_strided_slice %102 {offsets = [0, 0], sizes = [104, 4], strides = [1, 1]} : vector<104x48xf32> to vector<104x4xf32>
    %104 = vector.extract_strided_slice %102 {offsets = [0, 4], sizes = [104, 4], strides = [1, 1]} : vector<104x48xf32> to vector<104x4xf32>
    %105 = math.exp %103 : vector<104x4xf32>
    %106 = arith.mulf %105, %71 : vector<104x4xf32>
    %107 = arith.addf %106, %104 : vector<104x4xf32>
    %108 = tpu.concatenate %107, %70 in 1 : vector<104x4xf32>, vector<104x4xf32> -> vector<104x8xf32>
    %cst_63 = arith.constant dense<0.000000e+00> : vector<104xf32>
    %109 = vector.multi_reduction <add>, %103, %cst_63 [1] : vector<104x4xf32> to vector<104xf32>
    %110 = vector.shape_cast %109 : vector<104xf32> to vector<104x1xf32>
    %111 = arith.addf %56, %110 : vector<104x1xf32>
    %c2_64 = arith.constant 2 : index
    %c0_65 = arith.constant 0 : index
    %c0_66 = arith.constant 0 : index
    %112 = vector.load %arg2[%c2_64, %c0_65, %c0_66] : memref<4x8x56xf32, #tpu.memory_space<vmem>>, vector<1x8x56xf32>
    %113 = vector.shape_cast %112 : vector<1x8x56xf32> to vector<8x56xf32>
    %cst_67 = arith.constant dense<0.000000e+00> : vector<104x56xf32>
    %114 = tpu.matmul %108, %113, %cst_67 {dimension_numbers = #tpu.dot_dimension_numbers<[1], [0], [0], [1], [0, 0, 1, 1], [], []>} : vector<104x8xf32>, vector<8x56xf32>, vector<104x56xf32> -> vector<104x56xf32>
    %115 = vector.extract_strided_slice %114 {offsets = [0, 0], sizes = [104, 48], strides = [1, 1]} : vector<104x56xf32> to vector<104x48xf32>
    %c8 = arith.constant 8 : index
    %c0_68 = arith.constant 0 : index
    %c0_69 = arith.constant 0 : index
    %116 = vector.load %arg4[%c8, %c0_68, %c0_69] : memref<16x1x48xf32, #tpu.memory_space<vmem>>, vector<1x1x48xf32>
    %117 = vector.shape_cast %116 : vector<1x1x48xf32> to vector<1x48xf32>
    %118 = vector.broadcast %117 : vector<1x48xf32> to vector<104x48xf32>
    %119 = arith.addf %115, %118 : vector<104x48xf32>
    %cst_70 = arith.constant 0.000000e+00 : f32
    %120 = vector.broadcast %cst_70 : f32 to vector<104x48xf32>
    %121 = arith.cmpf ogt, %119, %120 : vector<104x48xf32>
    %cst_71 = arith.constant 2.000000e-01 : f32
    %122 = vector.broadcast %cst_71 : f32 to vector<104x48xf32>
    %123 = arith.mulf %122, %119 : vector<104x48xf32>
    %124 = arith.select %121, %119, %123 : vector<104x48xi1>, vector<104x48xf32>
    %125 = vector.extract_strided_slice %114 {offsets = [0, 48], sizes = [104, 4], strides = [1, 1]} : vector<104x56xf32> to vector<104x4xf32>
    %126 = vector.extract_strided_slice %114 {offsets = [0, 52], sizes = [104, 4], strides = [1, 1]} : vector<104x56xf32> to vector<104x4xf32>
    %c6_72 = arith.constant 6 : index
    %c0_73 = arith.constant 0 : index
    %c0_74 = arith.constant 0 : index
    %127 = vector.load %arg3[%c6_72, %c0_73, %c0_74] : memref<12x48x48xf32, #tpu.memory_space<vmem>>, vector<1x48x48xf32>
    %128 = vector.shape_cast %127 : vector<1x48x48xf32> to vector<48x48xf32>
    %cst_75 = arith.constant dense<0.000000e+00> : vector<104x48xf32>
    %129 = tpu.matmul %124, %128, %cst_75 {dimension_numbers = #tpu.dot_dimension_numbers<[1], [0], [0], [1], [0, 0, 1, 1], [], []>} : vector<104x48xf32>, vector<48x48xf32>, vector<104x48xf32> -> vector<104x48xf32>
    %c9 = arith.constant 9 : index
    %c0_76 = arith.constant 0 : index
    %c0_77 = arith.constant 0 : index
    %130 = vector.load %arg4[%c9, %c0_76, %c0_77] : memref<16x1x48xf32, #tpu.memory_space<vmem>>, vector<1x1x48xf32>
    %131 = vector.shape_cast %130 : vector<1x1x48xf32> to vector<1x48xf32>
    %132 = vector.broadcast %131 : vector<1x48xf32> to vector<104x48xf32>
    %133 = arith.addf %129, %132 : vector<104x48xf32>
    %cst_78 = arith.constant 0.000000e+00 : f32
    %134 = vector.broadcast %cst_78 : f32 to vector<104x48xf32>
    %135 = arith.cmpf ogt, %133, %134 : vector<104x48xf32>
    %cst_79 = arith.constant 2.000000e-01 : f32
    %136 = vector.broadcast %cst_79 : f32 to vector<104x48xf32>
    %137 = arith.mulf %136, %133 : vector<104x48xf32>
    %138 = arith.select %135, %133, %137 : vector<104x48xi1>, vector<104x48xf32>
    %c7_80 = arith.constant 7 : index
    %c0_81 = arith.constant 0 : index
    %c0_82 = arith.constant 0 : index
    %139 = vector.load %arg3[%c7_80, %c0_81, %c0_82] : memref<12x48x48xf32, #tpu.memory_space<vmem>>, vector<1x48x48xf32>
    %140 = vector.shape_cast %139 : vector<1x48x48xf32> to vector<48x48xf32>
    %cst_83 = arith.constant dense<0.000000e+00> : vector<104x48xf32>
    %141 = tpu.matmul %138, %140, %cst_83 {dimension_numbers = #tpu.dot_dimension_numbers<[1], [0], [0], [1], [0, 0, 1, 1], [], []>} : vector<104x48xf32>, vector<48x48xf32>, vector<104x48xf32> -> vector<104x48xf32>
    %c10 = arith.constant 10 : index
    %c0_84 = arith.constant 0 : index
    %c0_85 = arith.constant 0 : index
    %142 = vector.load %arg4[%c10, %c0_84, %c0_85] : memref<16x1x48xf32, #tpu.memory_space<vmem>>, vector<1x1x48xf32>
    %143 = vector.shape_cast %142 : vector<1x1x48xf32> to vector<1x48xf32>
    %144 = vector.broadcast %143 : vector<1x48xf32> to vector<104x48xf32>
    %145 = arith.addf %141, %144 : vector<104x48xf32>
    %cst_86 = arith.constant 0.000000e+00 : f32
    %146 = vector.broadcast %cst_86 : f32 to vector<104x48xf32>
    %147 = arith.cmpf ogt, %145, %146 : vector<104x48xf32>
    %cst_87 = arith.constant 2.000000e-01 : f32
    %148 = vector.broadcast %cst_87 : f32 to vector<104x48xf32>
    %149 = arith.mulf %148, %145 : vector<104x48xf32>
    %150 = arith.select %147, %145, %149 : vector<104x48xi1>, vector<104x48xf32>
    %c8_88 = arith.constant 8 : index
    %c0_89 = arith.constant 0 : index
    %c0_90 = arith.constant 0 : index
    %151 = vector.load %arg3[%c8_88, %c0_89, %c0_90] : memref<12x48x48xf32, #tpu.memory_space<vmem>>, vector<1x48x48xf32>
    %152 = vector.shape_cast %151 : vector<1x48x48xf32> to vector<48x48xf32>
    %cst_91 = arith.constant dense<0.000000e+00> : vector<104x48xf32>
    %153 = tpu.matmul %150, %152, %cst_91 {dimension_numbers = #tpu.dot_dimension_numbers<[1], [0], [0], [1], [0, 0, 1, 1], [], []>} : vector<104x48xf32>, vector<48x48xf32>, vector<104x48xf32> -> vector<104x48xf32>
    %c11 = arith.constant 11 : index
    %c0_92 = arith.constant 0 : index
    %c0_93 = arith.constant 0 : index
    %154 = vector.load %arg4[%c11, %c0_92, %c0_93] : memref<16x1x48xf32, #tpu.memory_space<vmem>>, vector<1x1x48xf32>
    %155 = vector.shape_cast %154 : vector<1x1x48xf32> to vector<1x48xf32>
    %156 = vector.broadcast %155 : vector<1x48xf32> to vector<104x48xf32>
    %157 = arith.addf %153, %156 : vector<104x48xf32>
    %158 = vector.extract_strided_slice %157 {offsets = [0, 0], sizes = [104, 4], strides = [1, 1]} : vector<104x48xf32> to vector<104x4xf32>
    %159 = vector.extract_strided_slice %157 {offsets = [0, 4], sizes = [104, 4], strides = [1, 1]} : vector<104x48xf32> to vector<104x4xf32>
    %160 = math.exp %158 : vector<104x4xf32>
    %161 = arith.mulf %160, %126 : vector<104x4xf32>
    %162 = arith.addf %161, %159 : vector<104x4xf32>
    %163 = tpu.concatenate %125, %162 in 1 : vector<104x4xf32>, vector<104x4xf32> -> vector<104x8xf32>
    %cst_94 = arith.constant dense<0.000000e+00> : vector<104xf32>
    %164 = vector.multi_reduction <add>, %158, %cst_94 [1] : vector<104x4xf32> to vector<104xf32>
    %165 = vector.shape_cast %164 : vector<104xf32> to vector<104x1xf32>
    %166 = arith.addf %111, %165 : vector<104x1xf32>
    %c3_95 = arith.constant 3 : index
    %c0_96 = arith.constant 0 : index
    %c0_97 = arith.constant 0 : index
    %167 = vector.load %arg2[%c3_95, %c0_96, %c0_97] : memref<4x8x56xf32, #tpu.memory_space<vmem>>, vector<1x8x56xf32>
    %168 = vector.shape_cast %167 : vector<1x8x56xf32> to vector<8x56xf32>
    %cst_98 = arith.constant dense<0.000000e+00> : vector<104x56xf32>
    %169 = tpu.matmul %163, %168, %cst_98 {dimension_numbers = #tpu.dot_dimension_numbers<[1], [0], [0], [1], [0, 0, 1, 1], [], []>} : vector<104x8xf32>, vector<8x56xf32>, vector<104x56xf32> -> vector<104x56xf32>
    %170 = vector.extract_strided_slice %169 {offsets = [0, 0], sizes = [104, 48], strides = [1, 1]} : vector<104x56xf32> to vector<104x48xf32>
    %c12 = arith.constant 12 : index
    %c0_99 = arith.constant 0 : index
    %c0_100 = arith.constant 0 : index
    %171 = vector.load %arg4[%c12, %c0_99, %c0_100] : memref<16x1x48xf32, #tpu.memory_space<vmem>>, vector<1x1x48xf32>
    %172 = vector.shape_cast %171 : vector<1x1x48xf32> to vector<1x48xf32>
    %173 = vector.broadcast %172 : vector<1x48xf32> to vector<104x48xf32>
    %174 = arith.addf %170, %173 : vector<104x48xf32>
    %cst_101 = arith.constant 0.000000e+00 : f32
    %175 = vector.broadcast %cst_101 : f32 to vector<104x48xf32>
    %176 = arith.cmpf ogt, %174, %175 : vector<104x48xf32>
    %cst_102 = arith.constant 2.000000e-01 : f32
    %177 = vector.broadcast %cst_102 : f32 to vector<104x48xf32>
    %178 = arith.mulf %177, %174 : vector<104x48xf32>
    %179 = arith.select %176, %174, %178 : vector<104x48xi1>, vector<104x48xf32>
    %180 = vector.extract_strided_slice %169 {offsets = [0, 48], sizes = [104, 4], strides = [1, 1]} : vector<104x56xf32> to vector<104x4xf32>
    %181 = vector.extract_strided_slice %169 {offsets = [0, 52], sizes = [104, 4], strides = [1, 1]} : vector<104x56xf32> to vector<104x4xf32>
    %c9_103 = arith.constant 9 : index
    %c0_104 = arith.constant 0 : index
    %c0_105 = arith.constant 0 : index
    %182 = vector.load %arg3[%c9_103, %c0_104, %c0_105] : memref<12x48x48xf32, #tpu.memory_space<vmem>>, vector<1x48x48xf32>
    %183 = vector.shape_cast %182 : vector<1x48x48xf32> to vector<48x48xf32>
    %cst_106 = arith.constant dense<0.000000e+00> : vector<104x48xf32>
    %184 = tpu.matmul %179, %183, %cst_106 {dimension_numbers = #tpu.dot_dimension_numbers<[1], [0], [0], [1], [0, 0, 1, 1], [], []>} : vector<104x48xf32>, vector<48x48xf32>, vector<104x48xf32> -> vector<104x48xf32>
    %c13 = arith.constant 13 : index
    %c0_107 = arith.constant 0 : index
    %c0_108 = arith.constant 0 : index
    %185 = vector.load %arg4[%c13, %c0_107, %c0_108] : memref<16x1x48xf32, #tpu.memory_space<vmem>>, vector<1x1x48xf32>
    %186 = vector.shape_cast %185 : vector<1x1x48xf32> to vector<1x48xf32>
    %187 = vector.broadcast %186 : vector<1x48xf32> to vector<104x48xf32>
    %188 = arith.addf %184, %187 : vector<104x48xf32>
    %cst_109 = arith.constant 0.000000e+00 : f32
    %189 = vector.broadcast %cst_109 : f32 to vector<104x48xf32>
    %190 = arith.cmpf ogt, %188, %189 : vector<104x48xf32>
    %cst_110 = arith.constant 2.000000e-01 : f32
    %191 = vector.broadcast %cst_110 : f32 to vector<104x48xf32>
    %192 = arith.mulf %191, %188 : vector<104x48xf32>
    %193 = arith.select %190, %188, %192 : vector<104x48xi1>, vector<104x48xf32>
    %c10_111 = arith.constant 10 : index
    %c0_112 = arith.constant 0 : index
    %c0_113 = arith.constant 0 : index
    %194 = vector.load %arg3[%c10_111, %c0_112, %c0_113] : memref<12x48x48xf32, #tpu.memory_space<vmem>>, vector<1x48x48xf32>
    %195 = vector.shape_cast %194 : vector<1x48x48xf32> to vector<48x48xf32>
    %cst_114 = arith.constant dense<0.000000e+00> : vector<104x48xf32>
    %196 = tpu.matmul %193, %195, %cst_114 {dimension_numbers = #tpu.dot_dimension_numbers<[1], [0], [0], [1], [0, 0, 1, 1], [], []>} : vector<104x48xf32>, vector<48x48xf32>, vector<104x48xf32> -> vector<104x48xf32>
    %c14 = arith.constant 14 : index
    %c0_115 = arith.constant 0 : index
    %c0_116 = arith.constant 0 : index
    %197 = vector.load %arg4[%c14, %c0_115, %c0_116] : memref<16x1x48xf32, #tpu.memory_space<vmem>>, vector<1x1x48xf32>
    %198 = vector.shape_cast %197 : vector<1x1x48xf32> to vector<1x48xf32>
    %199 = vector.broadcast %198 : vector<1x48xf32> to vector<104x48xf32>
    %200 = arith.addf %196, %199 : vector<104x48xf32>
    %cst_117 = arith.constant 0.000000e+00 : f32
    %201 = vector.broadcast %cst_117 : f32 to vector<104x48xf32>
    %202 = arith.cmpf ogt, %200, %201 : vector<104x48xf32>
    %cst_118 = arith.constant 2.000000e-01 : f32
    %203 = vector.broadcast %cst_118 : f32 to vector<104x48xf32>
    %204 = arith.mulf %203, %200 : vector<104x48xf32>
    %205 = arith.select %202, %200, %204 : vector<104x48xi1>, vector<104x48xf32>
    %c11_119 = arith.constant 11 : index
    %c0_120 = arith.constant 0 : index
    %c0_121 = arith.constant 0 : index
    %206 = vector.load %arg3[%c11_119, %c0_120, %c0_121] : memref<12x48x48xf32, #tpu.memory_space<vmem>>, vector<1x48x48xf32>
    %207 = vector.shape_cast %206 : vector<1x48x48xf32> to vector<48x48xf32>
    %cst_122 = arith.constant dense<0.000000e+00> : vector<104x48xf32>
    %208 = tpu.matmul %205, %207, %cst_122 {dimension_numbers = #tpu.dot_dimension_numbers<[1], [0], [0], [1], [0, 0, 1, 1], [], []>} : vector<104x48xf32>, vector<48x48xf32>, vector<104x48xf32> -> vector<104x48xf32>
    %c15 = arith.constant 15 : index
    %c0_123 = arith.constant 0 : index
    %c0_124 = arith.constant 0 : index
    %209 = vector.load %arg4[%c15, %c0_123, %c0_124] : memref<16x1x48xf32, #tpu.memory_space<vmem>>, vector<1x1x48xf32>
    %210 = vector.shape_cast %209 : vector<1x1x48xf32> to vector<1x48xf32>
    %211 = vector.broadcast %210 : vector<1x48xf32> to vector<104x48xf32>
    %212 = arith.addf %208, %211 : vector<104x48xf32>
    %213 = vector.extract_strided_slice %212 {offsets = [0, 0], sizes = [104, 4], strides = [1, 1]} : vector<104x48xf32> to vector<104x4xf32>
    %214 = vector.extract_strided_slice %212 {offsets = [0, 4], sizes = [104, 4], strides = [1, 1]} : vector<104x48xf32> to vector<104x4xf32>
    %215 = math.exp %213 : vector<104x4xf32>
    %216 = arith.mulf %215, %181 : vector<104x4xf32>
    %217 = arith.addf %216, %214 : vector<104x4xf32>
    %218 = tpu.concatenate %217, %180 in 1 : vector<104x4xf32>, vector<104x4xf32> -> vector<104x8xf32>
    %cst_125 = arith.constant dense<0.000000e+00> : vector<104xf32>
    %219 = vector.multi_reduction <add>, %213, %cst_125 [1] : vector<104x4xf32> to vector<104xf32>
    %220 = vector.shape_cast %219 : vector<104xf32> to vector<104x1xf32>
    %221 = arith.addf %166, %220 : vector<104x1xf32>
    %222 = tpu.concatenate %53, %108, %163, %218, %221 in 1 : vector<104x8xf32>, vector<104x8xf32>, vector<104x8xf32>, vector<104x8xf32>, vector<104x1xf32> -> vector<104x33xf32>
    %c0_126 = arith.constant 0 : index
    %c0_127 = arith.constant 0 : index
    %223 = vector.load %arg5[%c0_126, %c0_127] : memref<104x33xf32, #tpu.memory_space<vmem>>, vector<104x33xf32>
    tpu.vector_store %arg5[%c0_126, %c0_127], %222 {strides = array<i32>} : memref<104x33xf32, #tpu.memory_space<vmem>>, vector<104x33xf32>,
    return
  }
  func.func @transform_0(%arg0: i32) -> (i32, i32) {
    %c0_i32 = arith.constant 0 : i32
    %c0_i32_0 = arith.constant 0 : i32
    return %arg0, %c0_i32 : i32, i32
  }
  func.func @transform_1(%arg0: i32) -> (i32, i32, i32) {
    %c0_i32 = arith.constant 0 : i32
    %c0_i32_0 = arith.constant 0 : i32
    %c0_i32_1 = arith.constant 0 : i32
    %c0_i32_2 = arith.constant 0 : i32
    return %c0_i32, %c0_i32_0, %c0_i32_1 : i32, i32, i32
  }
  func.func @transform_2(%arg0: i32) -> (i32, i32, i32) {
    %c0_i32 = arith.constant 0 : i32
    %c0_i32_0 = arith.constant 0 : i32
    %c0_i32_1 = arith.constant 0 : i32
    %c0_i32_2 = arith.constant 0 : i32
    return %c0_i32, %c0_i32_0, %c0_i32_1 : i32, i32, i32
  }
  func.func @transform_3(%arg0: i32) -> (i32, i32, i32) {
    %c0_i32 = arith.constant 0 : i32
    %c0_i32_0 = arith.constant 0 : i32
    %c0_i32_1 = arith.constant 0 : i32
    %c0_i32_2 = arith.constant 0 : i32
    return %c0_i32, %c0_i32_0, %c0_i32_1 : i32, i32, i32
  }
  func.func @transform_4(%arg0: i32) -> (i32, i32) {
    %c0_i32 = arith.constant 0 : i32
    %c0_i32_0 = arith.constant 0 : i32
    return %arg0, %c0_i32 : i32, i32
  }
}

</mosaic_0001>

<llo_original>
// kernel: tpu_custom_call.1
$region0: #{tpu_custom_call.1}
  #allocation0 [shape = 'u32[]', space=smem, size = 0x4, offset = 0x4, fixed_abs, tag = 'smem constant byte address 0x4 - core index']
  #allocation1 [shape = 'u32[144,128]{1,0:T(1,128)}', space=vmem, size = 0x12000, scoped, tag = 'internal scratch']
  %s0 = inlined_call_operand.vmem [shape: f32[208,8], index: 0, kind: input, shape index: {}]
  %s1 = inlined_call_operand.vmem [shape: f32[4,8,56], index: 1, kind: input, shape index: {}]
  %s2 = inlined_call_operand.hbm [shape: f32[12,48,48], index: 2, kind: input, shape index: {}]
  %s3 = inlined_call_operand.vmem [shape: f32[16,1,48], index: 3, kind: input, shape index: {}]
  %s4 = inlined_call_operand.vmem [shape: f32[208,33], index: 4, kind: output, shape index: {}]
  %s5 = sld [smem:[#allocation0]]
  $region53: #{tpu_custom_call.1} parent=0
    _
  %s7 = ssub.s32 1, %s5
  %s8 = scalar_select 0, %s7, %s5
  $region1: #{tpu_custom_call.1} parent=0
    #allocation2 [shape = 'u8[294912]{0}', space=vmem, size = 0x48000, scoped, tag = 'input window, operand 2, single buffered']
    #allocation3 [shape = 's32[2]{0}', space=sflag, size = 0x8, scoped, tag = 'scoped memory for tpu_custom_call.1']
    %9 = vsyncpa [#allocation3], 0
    loop: start=0, step=1, limit=4
    $region2: #{tpu_custom_call.1} parent=1 // loop_pre_header
      _
    $region3: #{tpu_custom_call.1} parent=1 // loop_header
      %s11 = sphi 0, %s15
      %p12 = scmp.ge.s32.totalorder %s11, 4
      %s21 = sphi 0, %s23
      %s24 = sphi 0, %s21
      %s25 = sphi 0, %s24
      %s41 = sphi 0, %s25
      %s45 = sphi 0, %s45
      %s47 = sphi 0, %s45
      %s48 = sphi 0, %s47
      %s62 = sphi 0, %s48
      %s66 = sphi 0, %s66
      %s68 = sphi 0, %s66
      %s69 = sphi 0, %s68
      %s83 = sphi 0, %s69
      %s87 = sphi 0, %s87
      %s89 = sphi 0, %s87
      %s90 = sphi 0, %s89
      %s104 = sphi 0, %s90
      %s110 = sphi 0, %s112
      %s113 = sphi 0, %s110
      %s114 = sphi 0, %s113
      %s130 = sphi 0, %s114
    $region4: #{tpu_custom_call.1} parent=1 // loop_header_branch
      %14 = sbr.rel (%p12) target = $region8
    $region5: #{tpu_custom_call.1} parent=1 // loop_body
      %s16 = ssub.s32 %s11, 1
      %s17 = ssub.s32 %s11, 2
      %s18 = sadd.s32 %s11, 1
      %s19 = ssub.s32 %s11, %s18
      %p20 = scmp.eq.s32.totalorder %s19, 0
      %s22 = sadd.s32 %s21, 1
      %s23 = scalar_select %p20, %s21, %s22
      %p26 = pneg %p20
      %p27 = scmp.eq.s32.totalorder %s11, 1
      %p28 = por %p26, %p27
      %p29 = scmp.ne.s32.totalorder %s21, %s24
      %p30 = scmp.eq.s32.totalorder %s11, 0
      %p31 = por %p29, %p30
      %p32 = scmp.ne.s32.totalorder %s21, %s24
      %p33 = scmp.eq.s32.totalorder %s16, 1
      %p34 = por %p32, %p33
      %p35 = scmp.ne.s32.totalorder %s24, %s25
      %p36 = scmp.eq.s32.totalorder %s16, 0
      %p37 = por %p35, %p36
      %p38 = scmp.ne.s32.totalorder %s24, %s25
      %p39 = scmp.eq.s32.totalorder %s17, 1
      %p40 = por %p38, %p39
      %p42 = scmp.ne.s32.totalorder %s25, %s41
      %p43 = scmp.eq.s32.totalorder %s17, 0
      %p44 = por %p42, %p43
      %s46 = sadd.s32 %s45, 1
      %p49 = scmp.eq.s32.totalorder %s11, 1
      %p50 = scmp.ne.s32.totalorder %s45, %s47
      %p51 = scmp.eq.s32.totalorder %s11, 0
      %p52 = por %p50, %p51
      %p53 = scmp.ne.s32.totalorder %s45, %s47
      %p54 = scmp.eq.s32.totalorder %s16, 1
      %p55 = por %p53, %p54
      %p56 = scmp.ne.s32.totalorder %s47, %s48
      %p57 = scmp.eq.s32.totalorder %s16, 0
      %p58 = por %p56, %p57
      %p59 = scmp.ne.s32.totalorder %s47, %s48
      %p60 = scmp.eq.s32.totalorder %s17, 1
      %p61 = por %p59, %p60
      %p63 = scmp.ne.s32.totalorder %s48, %s62
      %p64 = scmp.eq.s32.totalorder %s17, 0
      %p65 = por %p63, %p64
      %s67 = sadd.s32 %s66, 1
      %p70 = scmp.eq.s32.totalorder %s11, 1
      %p71 = scmp.ne.s32.totalorder %s66, %s68
      %p72 = scmp.eq.s32.totalorder %s11, 0
      %p73 = por %p71, %p72
      %p74 = scmp.ne.s32.totalorder %s66, %s68
      %p75 = scmp.eq.s32.totalorder %s16, 1
      %p76 = por %p74, %p75
      %p77 = scmp.ne.s32.totalorder %s68, %s69
      %p78 = scmp.eq.s32.totalorder %s16, 0
      %p79 = por %p77, %p78
      %p80 = scmp.ne.s32.totalorder %s68, %s69
      %p81 = scmp.eq.s32.totalorder %s17, 1
      %p82 = por %p80, %p81
      %p84 = scmp.ne.s32.totalorder %s69, %s83
      %p85 = scmp.eq.s32.totalorder %s17, 0
      %p86 = por %p84, %p85
      %s88 = sadd.s32 %s87, 1
      %p91 = scmp.eq.s32.totalorder %s11, 1
      %p92 = scmp.ne.s32.totalorder %s87, %s89
      %p93 = scmp.eq.s32.totalorder %s11, 0
      %p94 = por %p92, %p93
      %p95 = scmp.ne.s32.totalorder %s87, %s89
      %p96 = scmp.eq.s32.totalorder %s16, 1
      %p97 = por %p95, %p96
      %p98 = scmp.ne.s32.totalorder %s89, %s90
      %p99 = scmp.eq.s32.totalorder %s16, 0
      %p100 = por %p98, %p99
      %p101 = scmp.ne.s32.totalorder %s89, %s90
      %p102 = scmp.eq.s32.totalorder %s17, 1
      %p103 = por %p101, %p102
      %p105 = scmp.ne.s32.totalorder %s90, %s104
      %p106 = scmp.eq.s32.totalorder %s17, 0
      %p107 = por %p105, %p106
      %s108 = ssub.s32 %s11, %s18
      %p109 = scmp.eq.s32.totalorder %s108, 0
      %s111 = sadd.s32 %s110, 1
      %s112 = scalar_select %p109, %s110, %s111
      %p115 = pneg %p109
      %p116 = scmp.eq.s32.totalorder %s11, 1
      %p117 = por %p115, %p116
      %p118 = scmp.ne.s32.totalorder %s110, %s113
      %p119 = scmp.eq.s32.totalorder %s11, 0
      %p120 = por %p118, %p119
      %p121 = scmp.ne.s32.totalorder %s110, %s113
      %p122 = scmp.eq.s32.totalorder %s16, 1
      %p123 = por %p121, %p122
      %p124 = scmp.ne.s32.totalorder %s113, %s114
      %p125 = scmp.eq.s32.totalorder %s16, 0
      %p126 = por %p124, %p125
      %p127 = scmp.ne.s32.totalorder %s113, %s114
      %p128 = scmp.eq.s32.totalorder %s17, 1
      %p129 = por %p127, %p128
      %p131 = scmp.ne.s32.totalorder %s114, %s130
      %p132 = scmp.eq.s32.totalorder %s17, 0
      %p133 = por %p131, %p132
      %p134 = scmp.le.s32.totalorder 1, %s11
      %p135 = scmp.lt.s32.totalorder %s11, 3
      %p136 = pnand %p134, %p135
      %p137 = pneg %p136
      // Predicated region
      $region9: #{tpu_custom_call.1} parent=5 // pred_check
        _
      $region10: #{tpu_custom_call.1} parent=5 // pred_check_branch
        %139 = sbr.rel (%p136) target = $region12
      $region11: #{tpu_custom_call.1} parent=5 // pred_region
        %s140 = ssub.s32 %s11, 1
        // Predicated region
        $region13: #{tpu_custom_call.1} parent=11 // pred_check
          %p141 = pneg %p58
        $region14: #{tpu_custom_call.1} parent=11 // pred_check_branch
          %143 = sbr.rel (%p141) target = $region16
        $region15: #{tpu_custom_call.1} parent=11 // pred_region
          _
        $region16: #{tpu_custom_call.1} parent=11 // pred_fallthru
          _
        // Predicated region
        $region17: #{tpu_custom_call.1} parent=11 // pred_check
          %p144 = pneg %p79
        $region18: #{tpu_custom_call.1} parent=11 // pred_check_branch
          %146 = sbr.rel (%p144) target = $region20
        $region19: #{tpu_custom_call.1} parent=11 // pred_region
          %s148 = ssub.s32 9216, 9216
          %149 = vsyncadd [#allocation3], %s148
          %s150 = sshll.u32 [#allocation2], 4
          %s151 = int_to_ptr.vmem [resolvable:$true] %s150
          %156 = dma.hbm_to_vmem [thread:$0]  %s2, 9216, %s151, [#allocation3], 128, 128, 8
        $region20: #{tpu_custom_call.1} parent=11 // pred_fallthru
          _
        // Predicated region
        $region21: #{tpu_custom_call.1} parent=11 // pred_check
          %p157 = pneg %p100
        $region22: #{tpu_custom_call.1} parent=11 // pred_check_branch
          %159 = sbr.rel (%p157) target = $region24
        $region23: #{tpu_custom_call.1} parent=11 // pred_region
          _
        $region24: #{tpu_custom_call.1} parent=11 // pred_fallthru
          _
      $region12: #{tpu_custom_call.1} parent=5 // pred_fallthru
        _
      %p160 = scmp.lt.s32.totalorder %s11, 2
      // Predicated region
      $region25: #{tpu_custom_call.1} parent=5 // pred_check
        %p161 = pneg %p160
      $region26: #{tpu_custom_call.1} parent=5 // pred_check_branch
        %163 = sbr.rel (%p161) target = $region28
      $region27: #{tpu_custom_call.1} parent=5 // pred_region
        // Predicated region
        $region29: #{tpu_custom_call.1} parent=27 // pred_check
          %p164 = pneg %p31
        $region30: #{tpu_custom_call.1} parent=27 // pred_check_branch
          %166 = sbr.rel (%p164) target = $region32
        $region31: #{tpu_custom_call.1} parent=27 // pred_region
          %s167 = smul.u32 13, %s11
          %p168 = scmp.lt.s32.totalorder %s167, 25
          %s169 = scalar_select %p168, %s167, 25
          %s170 = smul.addr %s169, 8
          %s171 = scalar_lea.vmem %s0, %s170
          %s172 = smul.u32 13, %s11
        $region32: #{tpu_custom_call.1} parent=27 // pred_fallthru
          _
      $region28: #{tpu_custom_call.1} parent=5 // pred_fallthru
        _
      %p173 = scmp.le.s32.totalorder 1, %s11
      %p174 = scmp.lt.s32.totalorder %s11, 3
      %p175 = pnand %p173, %p174
      %p176 = pneg %p175
      // Predicated region
      $region33: #{tpu_custom_call.1} parent=5 // pred_check
        _
      $region34: #{tpu_custom_call.1} parent=5 // pred_check_branch
        %178 = sbr.rel (%p175) target = $region36
      $region35: #{tpu_custom_call.1} parent=5 // pred_region
        %s179 = ssub.s32 %s11, 1
        // Predicated region
        $region37: #{tpu_custom_call.1} parent=35 // pred_check
          %p180 = pneg %p79
        $region38: #{tpu_custom_call.1} parent=35 // pred_check_branch
          %182 = sbr.rel (%p180) target = $region40
        $region39: #{tpu_custom_call.1} parent=35 // pred_region
          %183 = dma.done [#allocation3], 9216
        $region40: #{tpu_custom_call.1} parent=35 // pred_fallthru
          _
        %s184 = smul.u32 13, %s16
        %p185 = scmp.lt.s32.totalorder %s184, 25
        %s186 = scalar_select %p185, %s184, 25
        %s187 = smul.addr %s186, 8
        %s188 = scalar_lea.vmem %s0, %s187
        %p189 = pneg %p37
        %p190 = pneg %p34
        %p191 = pneg %p58
        %p192 = pneg %p55
        %p193 = pneg %p79
        %p194 = pneg %p76
        %p195 = pneg %p100
        %p196 = pneg %p97
        %p197 = pneg %p126
        %p198 = pneg %p123
        %s199 = smul.u32 13, %s16
        %p200 = scmp.lt.s32.totalorder %s199, 25
        %s201 = scalar_select %p200, %s199, 25
        %s202 = smul.addr %s201, 8
        %s203 = scalar_lea.vmem %s4, %s202
        %s204 = smul.u32 13, %s16
        %p205 = scmp.lt.s32.totalorder %s204, 25
        %s206 = scalar_select %p205, %s204, 25
        %s207 = smul.addr %s206, 8
        %s208 = scalar_lea.vmem %s0, %s207
        %s209 = smul.u32 13, %s16
        %s210 = smul.u32 13, %s16
        %p211 = scmp.lt.s32.totalorder %s210, 25
        %s212 = scalar_select %p211, %s210, 25
        %s213 = smul.addr %s212, 8
        %s214 = scalar_lea.vmem %s4, %s213
        %s215 = smul.u32 13, %s16
        %v216 = vld [vmem:[%s208] sm:$0xff]
        %v217 = vld [vmem:[%s208 + $0x8] sm:$0xff]
        %v218 = vld [vmem:[%s208 + $0x10] sm:$0xff]
        %v219 = vld [vmem:[%s208 + $0x18] sm:$0xff]
        %v220 = vld [vmem:[%s208 + $0x20] sm:$0xff]
        %v221 = vld [vmem:[%s208 + $0x28] sm:$0xff]
        %v222 = vld [vmem:[%s208 + $0x30] sm:$0xff]
        %v223 = vld [vmem:[%s208 + $0x38] sm:$0xff]
        %v224 = vld [vmem:[%s208 + $0x40] sm:$0xff]
        %v225 = vld [vmem:[%s208 + $0x48] sm:$0xff]
        %v226 = vld [vmem:[%s208 + $0x50] sm:$0xff]
        %v227 = vld [vmem:[%s208 + $0x58] sm:$0xff]
        %v228 = vld [vmem:[%s208 + $0x60] sm:$0xff]
        %v229 = vld [vmem:[%s1] sm:$0xff]
        %vm230 = vcmask 64512
        %v232 = vsel %vm230, %v216, 0
        %v235 = vsel %vm230, %v217, 0
        %v238 = vsel %vm230, %v218, 0
        %v241 = vsel %vm230, %v219, 0
        %v244 = vsel %vm230, %v220, 0
        %v247 = vsel %vm230, %v221, 0
        %v250 = vsel %vm230, %v222, 0
        %v253 = vsel %vm230, %v223, 0
        %v256 = vsel %vm230, %v224, 0
        %v259 = vsel %vm230, %v225, 0
        %v262 = vsel %vm230, %v226, 0
        %v265 = vsel %vm230, %v227, 0
        %v268 = vsel %vm230, %v228, 0
        %270 = vmatprep.subr.mxu0 0.0
        %271 = vmatpush1.msra.mxu0 %v229
        %272 = vmatprep.subr.mxu0 0.0
        %273 = vmatpush1.msra.mxu0 0.0
        %274 = vmatprep.subr.mxu0 0.0
        %275 = vmatpush1.msra.mxu0 0.0
        %276 = vmatprep.subr.mxu0 0.0
        %277 = vmatpush1.msra.mxu0 0.0
        %278 = vmatprep.subr.mxu0 0.0
        %279 = vmatpush1.msra.mxu0 0.0
        %280 = vmatprep.subr.mxu0 0.0
        %281 = vmatpush1.msra.mxu0 0.0
        %282 = vmatprep.subr.mxu0 0.0
        %283 = vmatpush1.msra.mxu0 0.0
        %284 = vmatprep.subr.mxu0 0.0
        %285 = vmatpush1.msra.mxu0 0.0
        %286 = vmatprep.subr.mxu0 0.0
        %287 = vmatpush1.msra.mxu0 0.0
        %288 = vmatprep.subr.mxu0 0.0
        %289 = vmatpush1.msra.mxu0 0.0
        %290 = vmatprep.subr.mxu0 0.0
        %291 = vmatpush1.msra.mxu0 0.0
        %292 = vmatprep.subr.mxu0 0.0
        %293 = vmatpush1.msra.mxu0 0.0
        %294 = vmatprep.subr.mxu0 0.0
        %295 = vmatpush1.msra.mxu0 0.0
        %296 = vmatprep.subr.mxu0 0.0
        %297 = vmatpush1.msra.mxu0 0.0
        %298 = vmatprep.subr.mxu0 0.0
        %299 = vmatpush1.msra.mxu0 0.0
        %300 = vmatprep.subr.mxu0 0.0
        %301 = vmatpush1.msra.mxu0 0.0
        %302 = vmatprep.subr.mxu0 0.0
        %303 = vmatpush1.msra.mxu0 0.0
        %304 = vmatprep.subr.mxu0 0.0
        %305 = vmatpush1.msra.mxu0 0.0
        %306 = vmatprep.subr.mxu0 0.0
        %307 = vmatpush1.msra.mxu0 0.0
        %308 = vmatprep.subr.mxu0 0.0
        %309 = vmatpush1.msra.mxu0 0.0
        %310 = vmatprep.subr.mxu0 0.0
        %311 = vmatpush1.msra.mxu0 0.0
        %312 = vmatprep.subr.mxu0 0.0
        %313 = vmatpush1.msra.mxu0 0.0
        %314 = vmatprep.subr.mxu0 0.0
        %315 = vmatpush1.msra.mxu0 0.0
        %316 = vmatprep.subr.mxu0 0.0
        %317 = vmatpush1.msra.mxu0 0.0
        %318 = vmatprep.subr.mxu0 0.0
        %319 = vmatpush1.msra.mxu0 0.0
        %320 = vmatprep.subr.mxu0 0.0
        %321 = vmatpush1.msra.mxu0 0.0
        %322 = vmatprep.subr.mxu0 0.0
        %323 = vmatpush1.msra.mxu0 0.0
        %324 = vmatprep.subr.mxu0 0.0
        %325 = vmatpush1.msra.mxu0 0.0
        %326 = vmatprep.subr.mxu0 0.0
        %327 = vmatpush1.msra.mxu0 0.0
        %328 = vmatprep.subr.mxu0 0.0
        %329 = vmatpush1.msra.mxu0 0.0
        %330 = vmatprep.subr.mxu0 0.0
        %331 = vmatpush1.msra.mxu0 0.0
        %332 = vmatprep.subr.mxu0 0.0
        %333 = vmatpush1.msra.mxu0 0.0
        %334 = vmatprep.mubr.f32.mxu0 0.0
        %335 = vmatmul.mubr.f32.gmra.mrb[0].mxu0 %v232
        %v336 = vpop.f32.mrb[0].mxu0
        %v337 = vadd.f32 0.0, %v336
        %v338 = vpop.f32.mrb[0].mxu0
        %339 = vmatprep.mubr.f32.mxu0 0.0
        %340 = vmatmul.mubr.f32.gmra.mrb[0].mxu0 %v235
        %v341 = vpop.f32.mrb[0].mxu0
        %v342 = vadd.f32 0.0, %v341
        %v343 = vpop.f32.mrb[0].mxu0
        %344 = vmatprep.mubr.f32.mxu0 0.0
        %345 = vmatmul.mubr.f32.gmra.mrb[0].mxu0 %v238
        %v346 = vpop.f32.mrb[0].mxu0
        %v347 = vadd.f32 0.0, %v346
        %v348 = vpop.f32.mrb[0].mxu0
        %349 = vmatprep.mubr.f32.mxu0 0.0
        %350 = vmatmul.mubr.f32.gmra.mrb[0].mxu0 %v241
        %v351 = vpop.f32.mrb[0].mxu0
        %v352 = vadd.f32 0.0, %v351
        %v353 = vpop.f32.mrb[0].mxu0
        %354 = vmatprep.mubr.f32.mxu0 0.0
        %355 = vmatmul.mubr.f32.gmra.mrb[0].mxu0 %v244
        %v356 = vpop.f32.mrb[0].mxu0
        %v357 = vadd.f32 0.0, %v356
        %v358 = vpop.f32.mrb[0].mxu0
        %359 = vmatprep.mubr.f32.mxu0 0.0
        %360 = vmatmul.mubr.f32.gmra.mrb[0].mxu0 %v247
        %v361 = vpop.f32.mrb[0].mxu0
        %v362 = vadd.f32 0.0, %v361
        %v363 = vpop.f32.mrb[0].mxu0
        %364 = vmatprep.mubr.f32.mxu0 0.0
        %365 = vmatmul.mubr.f32.gmra.mrb[0].mxu0 %v250
        %v366 = vpop.f32.mrb[0].mxu0
        %v367 = vadd.f32 0.0, %v366
        %v368 = vpop.f32.mrb[0].mxu0
        %369 = vmatprep.mubr.f32.mxu0 0.0
        %370 = vmatmul.mubr.f32.gmra.mrb[0].mxu0 %v253
        %v371 = vpop.f32.mrb[0].mxu0
        %v372 = vadd.f32 0.0, %v371
        %v373 = vpop.f32.mrb[0].mxu0
        %374 = vmatprep.mubr.f32.mxu0 0.0
        %375 = vmatmul.mubr.f32.gmra.mrb[0].mxu0 %v256
        %v376 = vpop.f32.mrb[0].mxu0
        %v377 = vadd.f32 0.0, %v376
        %v378 = vpop.f32.mrb[0].mxu0
        %379 = vmatprep.mubr.f32.mxu0 0.0
        %380 = vmatmul.mubr.f32.gmra.mrb[0].mxu0 %v259
        %v381 = vpop.f32.mrb[0].mxu0
        %v382 = vadd.f32 0.0, %v381
        %v383 = vpop.f32.mrb[0].mxu0
        %384 = vmatprep.mubr.f32.mxu0 0.0
        %385 = vmatmul.mubr.f32.gmra.mrb[0].mxu0 %v262
        %v386 = vpop.f32.mrb[0].mxu0
        %v387 = vadd.f32 0.0, %v386
        %v388 = vpop.f32.mrb[0].mxu0
        %389 = vmatprep.mubr.f32.mxu0 0.0
        %390 = vmatmul.mubr.f32.gmra.mrb[0].mxu0 %v265
        %v391 = vpop.f32.mrb[0].mxu0
        %v392 = vadd.f32 0.0, %v391
        %v393 = vpop.f32.mrb[0].mxu0
        %394 = vmatprep.mubr.f32.mxu0 0.0
        %395 = vmatmul.mubr.f32.gmra.mrb[0].mxu0 %v268
        %v396 = vpop.f32.mrb[0].mxu0
        %v397 = vadd.f32 0.0, %v396
        %v398 = vpop.f32.mrb[0].mxu0
        %399 = vdwg.mxu0
        %v400 = vld [vmem:[%s3] sm:$0x1]
        %v402 = vlaneseq
        %v403 = vshrl.u32 %v402, 7
        %v404 = vsub.s32 0, %v403
        %v405 = vrot.slane %v400, %v404
        %v407 = vadd.f32 %v337, %v405
        %v408 = vadd.f32 %v342, %v405
        %v409 = vadd.f32 %v347, %v405
        %v410 = vadd.f32 %v352, %v405
        %v411 = vadd.f32 %v357, %v405
        %v412 = vadd.f32 %v362, %v405
        %v413 = vadd.f32 %v367, %v405
        %v414 = vadd.f32 %v372, %v405
        %v415 = vadd.f32 %v377, %v405
        %v416 = vadd.f32 %v382, %v405
        %v417 = vadd.f32 %v387, %v405
        %v418 = vadd.f32 %v392, %v405
        %v419 = vadd.f32 %v397, %v405
        %vm420 = vcmp.gt.f32.partialorder %v407, 0.0
        %vm421 = vcmp.gt.f32.partialorder %v408, 0.0
        %vm422 = vcmp.gt.f32.partialorder %v409, 0.0
        %vm423 = vcmp.gt.f32.partialorder %v410, 0.0
        %vm424 = vcmp.gt.f32.partialorder %v411, 0.0
        %vm425 = vcmp.gt.f32.partialorder %v412, 0.0
        %vm426 = vcmp.gt.f32.partialorder %v413, 0.0
        %vm427 = vcmp.gt.f32.partialorder %v414, 0.0
        %vm428 = vcmp.gt.f32.partialorder %v415, 0.0
        %vm429 = vcmp.gt.f32.partialorder %v416, 0.0
        %vm430 = vcmp.gt.f32.partialorder %v417, 0.0
        %vm431 = vcmp.gt.f32.partialorder %v418, 0.0
        %vm432 = vcmp.gt.f32.partialorder %v419, 0.0
        %v433 = vmul.f32 %v407, 0.2
        %v434 = vmul.f32 %v408, 0.2
        %v435 = vmul.f32 %v409, 0.2
        %v436 = vmul.f32 %v410, 0.2
        %v437 = vmul.f32 %v411, 0.2
        %v438 = vmul.f32 %v412, 0.2
        %v439 = vmul.f32 %v413, 0.2
        %v440 = vmul.f32 %v414, 0.2
        %v441 = vmul.f32 %v415, 0.2
        %v442 = vmul.f32 %v416, 0.2
        %v443 = vmul.f32 %v417, 0.2
        %v444 = vmul.f32 %v418, 0.2
        %v445 = vmul.f32 %v419, 0.2
        %v446 = vsel %vm420, %v407, %v433
        %v447 = vsel %vm421, %v408, %v434
        %v448 = vsel %vm422, %v409, %v435
        %v449 = vsel %vm423, %v410, %v436
        %v450 = vsel %vm424, %v411, %v437
        %v451 = vsel %vm425, %v412, %v438
        %v452 = vsel %vm426, %v413, %v439
        %v453 = vsel %vm427, %v414, %v440
        %v454 = vsel %vm428, %v415, %v441
        %v455 = vsel %vm429, %v416, %v442
        %v456 = vsel %vm430, %v417, %v443
        %v457 = vsel %vm431, %v418, %v444
        %v458 = vsel %vm432, %v419, %v445
        %v459 = vld [vmem:[#allocation2] sm:$0xff]
        %v460 = vld [vmem:[#allocation2 + $0x8] sm:$0xff]
        %v461 = vld [vmem:[#allocation2 + $0x10] sm:$0xff]
        %v462 = vld [vmem:[#allocation2 + $0x18] sm:$0xff]
        %v463 = vld [vmem:[#allocation2 + $0x20] sm:$0xff]
        %v464 = vld [vmem:[#allocation2 + $0x28] sm:$0xff]
        %s465 = scalar_lea.vmem %s3, 1
        %v466 = vld [vmem:[%s465] sm:$0x1]
        %v468 = vlaneseq
        %v469 = vshrl.u32 %v468, 7
        %v470 = vsub.s32 0, %v469
        %v471 = vrot.slane %v466, %v470
        %vm473 = vcmask 392192
        %v475 = vsel %vm473, %v446, 0
        %v478 = vsel %vm473, %v447, 0
        %v481 = vsel %vm473, %v448, 0
        %v484 = vsel %vm473, %v449, 0
        %v487 = vsel %vm473, %v450, 0
        %v490 = vsel %vm473, %v451, 0
        %v493 = vsel %vm473, %v452, 0
        %v496 = vsel %vm473, %v453, 0
        %v499 = vsel %vm473, %v454, 0
        %v502 = vsel %vm473, %v455, 0
        %v505 = vsel %vm473, %v456, 0
        %v508 = vsel %vm473, %v457, 0
        %v511 = vsel %vm473, %v458, 0
        %513 = vmatprep.subr.mxu0 0.0
        %514 = vmatpush1.msra.mxu0 %v459
        %515 = vmatprep.subr.mxu0 0.0
        %516 = vmatpush1.msra.mxu0 %v460
        %517 = vmatprep.subr.mxu0 0.0
        %518 = vmatpush1.msra.mxu0 %v461
        %519 = vmatprep.subr.mxu0 0.0
        %520 = vmatpush1.msra.mxu0 %v462
        %521 = vmatprep.subr.mxu0 0.0
        %522 = vmatpush1.msra.mxu0 %v463
        %523 = vmatprep.subr.mxu0 0.0
        %524 = vmatpush1.msra.mxu0 %v464
        %525 = vmatprep.subr.mxu0 0.0
        %526 = vmatpush1.msra.mxu0 0.0
        %527 = vmatprep.subr.mxu0 0.0
        %528 = vmatpush1.msra.mxu0 0.0
        %529 = vmatprep.subr.mxu0 0.0
        %530 = vmatpush1.msra.mxu0 0.0
        %531 = vmatprep.subr.mxu0 0.0
        %532 = vmatpush1.msra.mxu0 0.0
        %533 = vmatprep.subr.mxu0 0.0
        %534 = vmatpush1.msra.mxu0 0.0
        %535 = vmatprep.subr.mxu0 0.0
        %536 = vmatpush1.msra.mxu0 0.0
        %537 = vmatprep.subr.mxu0 0.0
        %538 = vmatpush1.msra.mxu0 0.0
        %539 = vmatprep.subr.mxu0 0.0
        %540 = vmatpush1.msra.mxu0 0.0
        %541 = vmatprep.subr.mxu0 0.0
        %542 = vmatpush1.msra.mxu0 0.0
        %543 = vmatprep.subr.mxu0 0.0
        %544 = vmatpush1.msra.mxu0 0.0
        %545 = vmatprep.subr.mxu0 0.0
        %546 = vmatpush1.msra.mxu0 0.0
        %547 = vmatprep.subr.mxu0 0.0
        %548 = vmatpush1.msra.mxu0 0.0
        %549 = vmatprep.subr.mxu0 0.0
        %550 = vmatpush1.msra.mxu0 0.0
        %551 = vmatprep.subr.mxu0 0.0
        %552 = vmatpush1.msra.mxu0 0.0
        %553 = vmatprep.subr.mxu0 0.0
        %554 = vmatpush1.msra.mxu0 0.0
        %555 = vmatprep.subr.mxu0 0.0
        %556 = vmatpush1.msra.mxu0 0.0
        %557 = vmatprep.subr.mxu0 0.0
        %558 = vmatpush1.msra.mxu0 0.0
        %559 = vmatprep.subr.mxu0 0.0
        %560 = vmatpush1.msra.mxu0 0.0
        %561 = vmatprep.subr.mxu0 0.0
        %562 = vmatpush1.msra.mxu0 0.0
        %563 = vmatprep.subr.mxu0 0.0
        %564 = vmatpush1.msra.mxu0 0.0
        %565 = vmatprep.subr.mxu0 0.0
        %566 = vmatpush1.msra.mxu0 0.0
        %567 = vmatprep.subr.mxu0 0.0
        %568 = vmatpush1.msra.mxu0 0.0
        %569 = vmatprep.subr.mxu0 0.0
        %570 = vmatpush1.msra.mxu0 0.0
        %571 = vmatprep.subr.mxu0 0.0
        %572 = vmatpush1.msra.mxu0 0.0
        %573 = vmatprep.subr.mxu0 0.0
        %574 = vmatpush1.msra.mxu0 0.0
        %575 = vmatprep.subr.mxu0 0.0
        %576 = vmatpush1.msra.mxu0 0.0
        %577 = vmatprep.mubr.f32.mxu0 0.0
        %578 = vmatmul.mubr.f32.gmra.mrb[0].mxu0 %v475
        %v579 = vpop.f32.mrb[0].mxu0
        %v580 = vadd.f32 %v471, %v579
        %v581 = vpop.f32.mrb[0].mxu0
        %582 = vmatprep.mubr.f32.mxu0 0.0
        %583 = vmatmul.mubr.f32.gmra.mrb[0].mxu0 %v478
        %v584 = vpop.f32.mrb[0].mxu0
        %v585 = vadd.f32 %v471, %v584
        %v586 = vpop.f32.mrb[0].mxu0
        %587 = vmatprep.mubr.f32.mxu0 0.0
        %588 = vmatmul.mubr.f32.gmra.mrb[0].mxu0 %v481
        %v589 = vpop.f32.mrb[0].mxu0
        %v590 = vadd.f32 %v471, %v589
        %v591 = vpop.f32.mrb[0].mxu0
        %592 = vmatprep.mubr.f32.mxu0 0.0
        %593 = vmatmul.mubr.f32.gmra.mrb[0].mxu0 %v484
        %v594 = vpop.f32.mrb[0].mxu0
        %v595 = vadd.f32 %v471, %v594
        %v596 = vpop.f32.mrb[0].mxu0
        %597 = vmatprep.mubr.f32.mxu0 0.0
        %598 = vmatmul.mubr.f32.gmra.mrb[0].mxu0 %v487
        %v599 = vpop.f32.mrb[0].mxu0
        %v600 = vadd.f32 %v471, %v599
        %v601 = vpop.f32.mrb[0].mxu0
        %602 = vmatprep.mubr.f32.mxu0 0.0
        %603 = vmatmul.mubr.f32.gmra.mrb[0].mxu0 %v490
        %v604 = vpop.f32.mrb[0].mxu0
        %v605 = vadd.f32 %v471, %v604
        %v606 = vpop.f32.mrb[0].mxu0
        %607 = vmatprep.mubr.f32.mxu0 0.0
        %608 = vmatmul.mubr.f32.gmra.mrb[0].mxu0 %v493
        %v609 = vpop.f32.mrb[0].mxu0
        %v610 = vadd.f32 %v471, %v609
        %v611 = vpop.f32.mrb[0].mxu0
        %612 = vmatprep.mubr.f32.mxu0 0.0
        %613 = vmatmul.mubr.f32.gmra.mrb[0].mxu0 %v496
        %v614 = vpop.f32.mrb[0].mxu0
        %v615 = vadd.f32 %v471, %v614
        %v616 = vpop.f32.mrb[0].mxu0
        %617 = vmatprep.mubr.f32.mxu0 0.0
        %618 = vmatmul.mubr.f32.gmra.mrb[0].mxu0 %v499
        %v619 = vpop.f32.mrb[0].mxu0
        %v620 = vadd.f32 %v471, %v619
        %v621 = vpop.f32.mrb[0].mxu0
        %622 = vmatprep.mubr.f32.mxu0 0.0
        %623 = vmatmul.mubr.f32.gmra.mrb[0].mxu0 %v502
        %v624 = vpop.f32.mrb[0].mxu0
        %v625 = vadd.f32 %v471, %v624
        %v626 = vpop.f32.mrb[0].mxu0
        %627 = vmatprep.mubr.f32.mxu0 0.0
        %628 = vmatmul.mubr.f32.gmra.mrb[0].mxu0 %v505
        %v629 = vpop.f32.mrb[0].mxu0
        %v630 = vadd.f32 %v471, %v629
        %v631 = vpop.f32.mrb[0].mxu0
        %632 = vmatprep.mubr.f32.mxu0 0.0
        %633 = vmatmul.mubr.f32.gmra.mrb[0].mxu0 %v508
        %v634 = vpop.f32.mrb[0].mxu0
        %v635 = vadd.f32 %v471, %v634
        %v636 = vpop.f32.mrb[0].mxu0
        %637 = vmatprep.mubr.f32.mxu0 0.0
        %638 = vmatmul.mubr.f32.gmra.mrb[0].mxu0 %v511
        %v639 = vpop.f32.mrb[0].mxu0
        %v640 = vadd.f32 %v471, %v639
        %v641 = vpop.f32.mrb[0].mxu0
        %642 = vdwg.mxu0
        %vm643 = vcmp.gt.f32.partialorder %v580, 0.0
        %vm644 = vcmp.gt.f32.partialorder %v585, 0.0
        %vm645 = vcmp.gt.f32.partialorder %v590, 0.0
        %vm646 = vcmp.gt.f32.partialorder %v595, 0.0
        %vm647 = vcmp.gt.f32.partialorder %v600, 0.0
        %vm648 = vcmp.gt.f32.partialorder %v605, 0.0
        %vm649 = vcmp.gt.f32.partialorder %v610, 0.0
        %vm650 = vcmp.gt.f32.partialorder %v615, 0.0
        %vm651 = vcmp.gt.f32.partialorder %v620, 0.0
        %vm652 = vcmp.gt.f32.partialorder %v625, 0.0
        %vm653 = vcmp.gt.f32.partialorder %v630, 0.0
        %vm654 = vcmp.gt.f32.partialorder %v635, 0.0
        %vm655 = vcmp.gt.f32.partialorder %v640, 0.0
        %v656 = vmul.f32 %v580, 0.2
        %v657 = vmul.f32 %v585, 0.2
        %v658 = vmul.f32 %v590, 0.2
        %v659 = vmul.f32 %v595, 0.2
        %v660 = vmul.f32 %v600, 0.2
        %v661 = vmul.f32 %v605, 0.2
        %v662 = vmul.f32 %v610, 0.2
        %v663 = vmul.f32 %v615, 0.2
        %v664 = vmul.f32 %v620, 0.2
        %v665 = vmul.f32 %v625, 0.2
        %v666 = vmul.f32 %v630, 0.2
        %v667 = vmul.f32 %v635, 0.2
        %v668 = vmul.f32 %v640, 0.2
        %v669 = vsel %vm643, %v580, %v656
        %v670 = vsel %vm644, %v585, %v657
        %v671 = vsel %vm645, %v590, %v658
        %v672 = vsel %vm646, %v595, %v659
        %v673 = vsel %vm647, %v600, %v660
        %v674 = vsel %vm648, %v605, %v661
        %v675 = vsel %vm649, %v610, %v662
        %v676 = vsel %vm650, %v615, %v663
        %v677 = vsel %vm651, %v620, %v664
        %v678 = vsel %vm652, %v625, %v665
        %v679 = vsel %vm653, %v630, %v666
        %v680 = vsel %vm654, %v635, %v667
        %v681 = vsel %vm655, %v640, %v668
        %s682 = scalar_lea.vmem [#allocation2], 48
        %v683 = vld [vmem:[%s682] sm:$0xff]
        %v684 = vld [vmem:[%s682 + $0x8] sm:$0xff]
        %v685 = vld [vmem:[%s682 + $0x10] sm:$0xff]
        %v686 = vld [vmem:[%s682 + $0x18] sm:$0xff]
        %v687 = vld [vmem:[%s682 + $0x20] sm:$0xff]
        %v688 = vld [vmem:[%s682 + $0x28] sm:$0xff]
        %s689 = scalar_lea.vmem %s3, 2
        %v690 = vld [vmem:[%s689] sm:$0x1]
        %v692 = vlaneseq
        %v693 = vshrl.u32 %v692, 7
        %v694 = vsub.s32 0, %v693
        %v695 = vrot.slane %v690, %v694
        %v698 = vsel %vm473, %v669, 0
        %v701 = vsel %vm473, %v670, 0
        %v704 = vsel %vm473, %v671, 0
        %v707 = vsel %vm473, %v672, 0
        %v710 = vsel %vm473, %v673, 0
        %v713 = vsel %vm473, %v674, 0
        %v716 = vsel %vm473, %v675, 0
        %v719 = vsel %vm473, %v676, 0
        %v722 = vsel %vm473, %v677, 0
        %v725 = vsel %vm473, %v678, 0
        %v728 = vsel %vm473, %v679, 0
        %v731 = vsel %vm473, %v680, 0
        %v734 = vsel %vm473, %v681, 0
        %736 = vmatprep.subr.mxu0 0.0
        %737 = vmatpush1.msra.mxu0 %v683
        %738 = vmatprep.subr.mxu0 0.0
        %739 = vmatpush1.msra.mxu0 %v684
        %740 = vmatprep.subr.mxu0 0.0
        %741 = vmatpush1.msra.mxu0 %v685
        %742 = vmatprep.subr.mxu0 0.0
        %743 = vmatpush1.msra.mxu0 %v686
        %744 = vmatprep.subr.mxu0 0.0
        %745 = vmatpush1.msra.mxu0 %v687
        %746 = vmatprep.subr.mxu0 0.0
        %747 = vmatpush1.msra.mxu0 %v688
        %748 = vmatprep.subr.mxu0 0.0
        %749 = vmatpush1.msra.mxu0 0.0
        %750 = vmatprep.subr.mxu0 0.0
        %751 = vmatpush1.msra.mxu0 0.0
        %752 = vmatprep.subr.mxu0 0.0
        %753 = vmatpush1.msra.mxu0 0.0
        %754 = vmatprep.subr.mxu0 0.0
        %755 = vmatpush1.msra.mxu0 0.0
        %756 = vmatprep.subr.mxu0 0.0
        %757 = vmatpush1.msra.mxu0 0.0
        %758 = vmatprep.subr.mxu0 0.0
        %759 = vmatpush1.msra.mxu0 0.0
        %760 = vmatprep.subr.mxu0 0.0
        %761 = vmatpush1.msra.mxu0 0.0
        %762 = vmatprep.subr.mxu0 0.0
        %763 = vmatpush1.msra.mxu0 0.0
        %764 = vmatprep.subr.mxu0 0.0
        %765 = vmatpush1.msra.mxu0 0.0
        %766 = vmatprep.subr.mxu0 0.0
        %767 = vmatpush1.msra.mxu0 0.0
        %768 = vmatprep.subr.mxu0 0.0
        %769 = vmatpush1.msra.mxu0 0.0
        %770 = vmatprep.subr.mxu0 0.0
        %771 = vmatpush1.msra.mxu0 0.0
        %772 = vmatprep.subr.mxu0 0.0
        %773 = vmatpush1.msra.mxu0 0.0
        %774 = vmatprep.subr.mxu0 0.0
        %775 = vmatpush1.msra.mxu0 0.0
        %776 = vmatprep.subr.mxu0 0.0
        %777 = vmatpush1.msra.mxu0 0.0
        %778 = vmatprep.subr.mxu0 0.0
        %779 = vmatpush1.msra.mxu0 0.0
        %780 = vmatprep.subr.mxu0 0.0
        %781 = vmatpush1.msra.mxu0 0.0
        %782 = vmatprep.subr.mxu0 0.0
        %783 = vmatpush1.msra.mxu0 0.0
        %784 = vmatprep.subr.mxu0 0.0
        %785 = vmatpush1.msra.mxu0 0.0
        %786 = vmatprep.subr.mxu0 0.0
        %787 = vmatpush1.msra.mxu0 0.0
        %788 = vmatprep.subr.mxu0 0.0
        %789 = vmatpush1.msra.mxu0 0.0
        %790 = vmatprep.subr.mxu0 0.0
        %791 = vmatpush1.msra.mxu0 0.0
        %792 = vmatprep.subr.mxu0 0.0
        %793 = vmatpush1.msra.mxu0 0.0
        %794 = vmatprep.subr.mxu0 0.0
        %795 = vmatpush1.msra.mxu0 0.0
        %796 = vmatprep.subr.mxu0 0.0
        %797 = vmatpush1.msra.mxu0 0.0
        %798 = vmatprep.subr.mxu0 0.0
        %799 = vmatpush1.msra.mxu0 0.0
        %800 = vmatprep.mubr.f32.mxu0 0.0
        %801 = vmatmul.mubr.f32.gmra.mrb[0].mxu0 %v698
        %v802 = vpop.f32.mrb[0].mxu0
        %v803 = vadd.f32 %v695, %v802
        %v804 = vpop.f32.mrb[0].mxu0
        %805 = vmatprep.mubr.f32.mxu0 0.0
        %806 = vmatmul.mubr.f32.gmra.mrb[0].mxu0 %v701
        %v807 = vpop.f32.mrb[0].mxu0
        %v808 = vadd.f32 %v695, %v807
        %v809 = vpop.f32.mrb[0].mxu0
        %810 = vmatprep.mubr.f32.mxu0 0.0
        %811 = vmatmul.mubr.f32.gmra.mrb[0].mxu0 %v704
        %v812 = vpop.f32.mrb[0].mxu0
        %v813 = vadd.f32 %v695, %v812
        %v814 = vpop.f32.mrb[0].mxu0
        %815 = vmatprep.mubr.f32.mxu0 0.0
        %816 = vmatmul.mubr.f32.gmra.mrb[0].mxu0 %v707
        %v817 = vpop.f32.mrb[0].mxu0
        %v818 = vadd.f32 %v695, %v817
        %v819 = vpop.f32.mrb[0].mxu0
        %820 = vmatprep.mubr.f32.mxu0 0.0
        %821 = vmatmul.mubr.f32.gmra.mrb[0].mxu0 %v710
        %v822 = vpop.f32.mrb[0].mxu0
        %v823 = vadd.f32 %v695, %v822
        %v824 = vpop.f32.mrb[0].mxu0
        %825 = vmatprep.mubr.f32.mxu0 0.0
        %826 = vmatmul.mubr.f32.gmra.mrb[0].mxu0 %v713
        %v827 = vpop.f32.mrb[0].mxu0
        %v828 = vadd.f32 %v695, %v827
        %v829 = vpop.f32.mrb[0].mxu0
        %830 = vmatprep.mubr.f32.mxu0 0.0
        %831 = vmatmul.mubr.f32.gmra.mrb[0].mxu0 %v716
        %v832 = vpop.f32.mrb[0].mxu0
        %v833 = vadd.f32 %v695, %v832
        %v834 = vpop.f32.mrb[0].mxu0
        %835 = vmatprep.mubr.f32.mxu0 0.0
        %836 = vmatmul.mubr.f32.gmra.mrb[0].mxu0 %v719
        %v837 = vpop.f32.mrb[0].mxu0
        %v838 = vadd.f32 %v695, %v837
        %v839 = vpop.f32.mrb[0].mxu0
        %840 = vmatprep.mubr.f32.mxu0 0.0
        %841 = vmatmul.mubr.f32.gmra.mrb[0].mxu0 %v722
        %v842 = vpop.f32.mrb[0].mxu0
        %v843 = vadd.f32 %v695, %v842
        %v844 = vpop.f32.mrb[0].mxu0
        %845 = vmatprep.mubr.f32.mxu0 0.0
        %846 = vmatmul.mubr.f32.gmra.mrb[0].mxu0 %v725
        %v847 = vpop.f32.mrb[0].mxu0
        %v848 = vadd.f32 %v695, %v847
        %v849 = vpop.f32.mrb[0].mxu0
        %850 = vmatprep.mubr.f32.mxu0 0.0
        %851 = vmatmul.mubr.f32.gmra.mrb[0].mxu0 %v728
        %v852 = vpop.f32.mrb[0].mxu0
        %v853 = vadd.f32 %v695, %v852
        %v854 = vpop.f32.mrb[0].mxu0
        %855 = vmatprep.mubr.f32.mxu0 0.0
        %856 = vmatmul.mubr.f32.gmra.mrb[0].mxu0 %v731
        %v857 = vpop.f32.mrb[0].mxu0
        %v858 = vadd.f32 %v695, %v857
        %v859 = vpop.f32.mrb[0].mxu0
        %860 = vmatprep.mubr.f32.mxu0 0.0
        %861 = vmatmul.mubr.f32.gmra.mrb[0].mxu0 %v734
        %v862 = vpop.f32.mrb[0].mxu0
        %v863 = vadd.f32 %v695, %v862
        %v864 = vpop.f32.mrb[0].mxu0
        %865 = vdwg.mxu0
        %vm866 = vcmp.gt.f32.partialorder %v803, 0.0
        %vm867 = vcmp.gt.f32.partialorder %v808, 0.0
        %vm868 = vcmp.gt.f32.partialorder %v813, 0.0
        %vm869 = vcmp.gt.f32.partialorder %v818, 0.0
        %vm870 = vcmp.gt.f32.partialorder %v823, 0.0
        %vm871 = vcmp.gt.f32.partialorder %v828, 0.0
        %vm872 = vcmp.gt.f32.partialorder %v833, 0.0
        %vm873 = vcmp.gt.f32.partialorder %v838, 0.0
        %vm874 = vcmp.gt.f32.partialorder %v843, 0.0
        %vm875 = vcmp.gt.f32.partialorder %v848, 0.0
        %vm876 = vcmp.gt.f32.partialorder %v853, 0.0
        %vm877 = vcmp.gt.f32.partialorder %v858, 0.0
        %vm878 = vcmp.gt.f32.partialorder %v863, 0.0
        %v879 = vmul.f32 %v803, 0.2
        %v880 = vmul.f32 %v808, 0.2
        %v881 = vmul.f32 %v813, 0.2
        %v882 = vmul.f32 %v818, 0.2
        %v883 = vmul.f32 %v823, 0.2
        %v884 = vmul.f32 %v828, 0.2
        %v885 = vmul.f32 %v833, 0.2
        %v886 = vmul.f32 %v838, 0.2
        %v887 = vmul.f32 %v843, 0.2
        %v888 = vmul.f32 %v848, 0.2
        %v889 = vmul.f32 %v853, 0.2
        %v890 = vmul.f32 %v858, 0.2
        %v891 = vmul.f32 %v863, 0.2
        %v892 = vsel %vm866, %v803, %v879
        %v893 = vsel %vm867, %v808, %v880
        %v894 = vsel %vm868, %v813, %v881
        %v895 = vsel %vm869, %v818, %v882
        %v896 = vsel %vm870, %v823, %v883
        %v897 = vsel %vm871, %v828, %v884
        %v898 = vsel %vm872, %v833, %v885
        %v899 = vsel %vm873, %v838, %v886
        %v900 = vsel %vm874, %v843, %v887
        %v901 = vsel %vm875, %v848, %v888
        %v902 = vsel %vm876, %v853, %v889
        %v903 = vsel %vm877, %v858, %v890
        %v904 = vsel %vm878, %v863, %v891
        %s905 = scalar_lea.vmem [#allocation2], 96
        %v906 = vld [vmem:[%s905] sm:$0xff]
        %v907 = vld [vmem:[%s905 + $0x8] sm:$0xff]
        %v908 = vld [vmem:[%s905 + $0x10] sm:$0xff]
        %v909 = vld [vmem:[%s905 + $0x18] sm:$0xff]
        %v910 = vld [vmem:[%s905 + $0x20] sm:$0xff]
        %v911 = vld [vmem:[%s905 + $0x28] sm:$0xff]
        %s912 = scalar_lea.vmem %s3, 3
        %v913 = vld [vmem:[%s912] sm:$0x1]
        %v915 = vlaneseq
        %v916 = vshrl.u32 %v915, 7
        %v917 = vsub.s32 0, %v916
        %v918 = vrot.slane %v913, %v917
        %v921 = vsel %vm473, %v892, 0
        %v924 = vsel %vm473, %v893, 0
        %v927 = vsel %vm473, %v894, 0
        %v930 = vsel %vm473, %v895, 0
        %v933 = vsel %vm473, %v896, 0
        %v936 = vsel %vm473, %v897, 0
        %v939 = vsel %vm473, %v898, 0
        %v942 = vsel %vm473, %v899, 0
        %v945 = vsel %vm473, %v900, 0
        %v948 = vsel %vm473, %v901, 0
        %v951 = vsel %vm473, %v902, 0
        %v954 = vsel %vm473, %v903, 0
        %v957 = vsel %vm473, %v904, 0
        %959 = vmatprep.subr.mxu0 0.0
        %960 = vmatpush1.msra.mxu0 %v906
        %961 = vmatprep.subr.mxu0 0.0
        %962 = vmatpush1.msra.mxu0 %v907
        %963 = vmatprep.subr.mxu0 0.0
        %964 = vmatpush1.msra.mxu0 %v908
        %965 = vmatprep.subr.mxu0 0.0
        %966 = vmatpush1.msra.mxu0 %v909
        %967 = vmatprep.subr.mxu0 0.0
        %968 = vmatpush1.msra.mxu0 %v910
        %969 = vmatprep.subr.mxu0 0.0
        %970 = vmatpush1.msra.mxu0 %v911
        %971 = vmatprep.subr.mxu0 0.0
        %972 = vmatpush1.msra.mxu0 0.0
        %973 = vmatprep.subr.mxu0 0.0
        %974 = vmatpush1.msra.mxu0 0.0
        %975 = vmatprep.subr.mxu0 0.0
        %976 = vmatpush1.msra.mxu0 0.0
        %977 = vmatprep.subr.mxu0 0.0
        %978 = vmatpush1.msra.mxu0 0.0
        %979 = vmatprep.subr.mxu0 0.0
        %980 = vmatpush1.msra.mxu0 0.0
        %981 = vmatprep.subr.mxu0 0.0
        %982 = vmatpush1.msra.mxu0 0.0
        %983 = vmatprep.subr.mxu0 0.0
        %984 = vmatpush1.msra.mxu0 0.0
        %985 = vmatprep.subr.mxu0 0.0
        %986 = vmatpush1.msra.mxu0 0.0
        %987 = vmatprep.subr.mxu0 0.0
        %988 = vmatpush1.msra.mxu0 0.0
        %989 = vmatprep.subr.mxu0 0.0
        %990 = vmatpush1.msra.mxu0 0.0
        %991 = vmatprep.subr.mxu0 0.0
        %992 = vmatpush1.msra.mxu0 0.0
        %993 = vmatprep.subr.mxu0 0.0
        %994 = vmatpush1.msra.mxu0 0.0
        %995 = vmatprep.subr.mxu0 0.0
        %996 = vmatpush1.msra.mxu0 0.0
        %997 = vmatprep.subr.mxu0 0.0
        %998 = vmatpush1.msra.mxu0 0.0
        %999 = vmatprep.subr.mxu0 0.0
        %1000 = vmatpush1.msra.mxu0 0.0
        %1001 = vmatprep.subr.mxu0 0.0
        %1002 = vmatpush1.msra.mxu0 0.0
        %1003 = vmatprep.subr.mxu0 0.0
        %1004 = vmatpush1.msra.mxu0 0.0
        %1005 = vmatprep.subr.mxu0 0.0
        %1006 = vmatpush1.msra.mxu0 0.0
        %1007 = vmatprep.subr.mxu0 0.0
        %1008 = vmatpush1.msra.mxu0 0.0
        %1009 = vmatprep.subr.mxu0 0.0
        %1010 = vmatpush1.msra.mxu0 0.0
        %1011 = vmatprep.subr.mxu0 0.0
        %1012 = vmatpush1.msra.mxu0 0.0
        %1013 = vmatprep.subr.mxu0 0.0
        %1014 = vmatpush1.msra.mxu0 0.0
        %1015 = vmatprep.subr.mxu0 0.0
        %1016 = vmatpush1.msra.mxu0 0.0
        %1017 = vmatprep.subr.mxu0 0.0
        %1018 = vmatpush1.msra.mxu0 0.0
        %1019 = vmatprep.subr.mxu0 0.0
        %1020 = vmatpush1.msra.mxu0 0.0
        %1021 = vmatprep.subr.mxu0 0.0
        %1022 = vmatpush1.msra.mxu0 0.0
        %1023 = vmatprep.mubr.f32.mxu0 0.0
        %1024 = vmatmul.mubr.f32.gmra.mrb[0].mxu0 %v921
        %v1025 = vpop.f32.mrb[0].mxu0
        %v1026 = vadd.f32 %v918, %v1025
        %v1027 = vpop.f32.mrb[0].mxu0
        %1028 = vmatprep.mubr.f32.mxu0 0.0
        %1029 = vmatmul.mubr.f32.gmra.mrb[0].mxu0 %v924
        %v1030 = vpop.f32.mrb[0].mxu0
        %v1031 = vadd.f32 %v918, %v1030
        %v1032 = vpop.f32.mrb[0].mxu0
        %1033 = vmatprep.mubr.f32.mxu0 0.0
        %1034 = vmatmul.mubr.f32.gmra.mrb[0].mxu0 %v927
        %v1035 = vpop.f32.mrb[0].mxu0
        %v1036 = vadd.f32 %v918, %v1035
        %v1037 = vpop.f32.mrb[0].mxu0
        %1038 = vmatprep.mubr.f32.mxu0 0.0
        %1039 = vmatmul.mubr.f32.gmra.mrb[0].mxu0 %v930
        %v1040 = vpop.f32.mrb[0].mxu0
        %v1041 = vadd.f32 %v918, %v1040
        %v1042 = vpop.f32.mrb[0].mxu0
        %1043 = vmatprep.mubr.f32.mxu0 0.0
        %1044 = vmatmul.mubr.f32.gmra.mrb[0].mxu0 %v933
        %v1045 = vpop.f32.mrb[0].mxu0
        %v1046 = vadd.f32 %v918, %v1045
        %v1047 = vpop.f32.mrb[0].mxu0
        %1048 = vmatprep.mubr.f32.mxu0 0.0
        %1049 = vmatmul.mubr.f32.gmra.mrb[0].mxu0 %v936
        %v1050 = vpop.f32.mrb[0].mxu0
        %v1051 = vadd.f32 %v918, %v1050
        %v1052 = vpop.f32.mrb[0].mxu0
        %1053 = vmatprep.mubr.f32.mxu0 0.0
        %1054 = vmatmul.mubr.f32.gmra.mrb[0].mxu0 %v939
        %v1055 = vpop.f32.mrb[0].mxu0
        %v1056 = vadd.f32 %v918, %v1055
        %v1057 = vpop.f32.mrb[0].mxu0
        %1058 = vmatprep.mubr.f32.mxu0 0.0
        %1059 = vmatmul.mubr.f32.gmra.mrb[0].mxu0 %v942
        %v1060 = vpop.f32.mrb[0].mxu0
        %v1061 = vadd.f32 %v918, %v1060
        %v1062 = vpop.f32.mrb[0].mxu0
        %1063 = vmatprep.mubr.f32.mxu0 0.0
        %1064 = vmatmul.mubr.f32.gmra.mrb[0].mxu0 %v945
        %v1065 = vpop.f32.mrb[0].mxu0
        %v1066 = vadd.f32 %v918, %v1065
        %v1067 = vpop.f32.mrb[0].mxu0
        %1068 = vmatprep.mubr.f32.mxu0 0.0
        %1069 = vmatmul.mubr.f32.gmra.mrb[0].mxu0 %v948
        %v1070 = vpop.f32.mrb[0].mxu0
        %v1071 = vadd.f32 %v918, %v1070
        %v1072 = vpop.f32.mrb[0].mxu0
        %1073 = vmatprep.mubr.f32.mxu0 0.0
        %1074 = vmatmul.mubr.f32.gmra.mrb[0].mxu0 %v951
        %v1075 = vpop.f32.mrb[0].mxu0
        %v1076 = vadd.f32 %v918, %v1075
        %v1077 = vpop.f32.mrb[0].mxu0
        %1078 = vmatprep.mubr.f32.mxu0 0.0
        %1079 = vmatmul.mubr.f32.gmra.mrb[0].mxu0 %v954
        %v1080 = vpop.f32.mrb[0].mxu0
        %v1081 = vadd.f32 %v918, %v1080
        %v1082 = vpop.f32.mrb[0].mxu0
        %1083 = vmatprep.mubr.f32.mxu0 0.0
        %1084 = vmatmul.mubr.f32.gmra.mrb[0].mxu0 %v957
        %v1085 = vpop.f32.mrb[0].mxu0
        %v1086 = vadd.f32 %v918, %v1085
        %v1087 = vpop.f32.mrb[0].mxu0
        %1088 = vdwg.mxu0
        %v1089 = vmul.f32 %v1026, 1.442695
        %v1090 = vpow.pop %v1089
        %v1091 = vmul.f32 %v1031, 1.442695
        %v1092 = vpow.pop %v1091
        %v1093 = vmul.f32 %v1036, 1.442695
        %v1094 = vpow.pop %v1093
        %v1095 = vmul.f32 %v1041, 1.442695
        %v1096 = vpow.pop %v1095
        %v1097 = vmul.f32 %v1046, 1.442695
        %v1098 = vpow.pop %v1097
        %v1099 = vmul.f32 %v1051, 1.442695
        %v1100 = vpow.pop %v1099
        %v1101 = vmul.f32 %v1056, 1.442695
        %v1102 = vpow.pop %v1101
        %v1103 = vmul.f32 %v1061, 1.442695
        %v1104 = vpow.pop %v1103
        %v1105 = vmul.f32 %v1066, 1.442695
        %v1106 = vpow.pop %v1105
        %v1107 = vmul.f32 %v1071, 1.442695
        %v1108 = vpow.pop %v1107
        %v1109 = vmul.f32 %v1076, 1.442695
        %v1110 = vpow.pop %v1109
        %v1111 = vmul.f32 %v1081, 1.442695
        %v1112 = vpow.pop %v1111
        %v1113 = vmul.f32 %v1086, 1.442695
        %v1114 = vpow.pop %v1113
        %1128 = vrot.lane.b32.xlu0 %v337, 76
        %v1129 = vpop.permute.xlu0 %1128
        %1130 = vrot.lane.b32.xlu0 %v342, 76
        %v1131 = vpop.permute.xlu0 %1130
        %1132 = vrot.lane.b32.xlu0 %v347, 76
        %v1133 = vpop.permute.xlu0 %1132
        %1134 = vrot.lane.b32.xlu0 %v352, 76
        %v1135 = vpop.permute.xlu0 %1134
        %1136 = vrot.lane.b32.xlu0 %v357, 76
        %v1137 = vpop.permute.xlu0 %1136
        %1138 = vrot.lane.b32.xlu0 %v362, 76
        %v1139 = vpop.permute.xlu0 %1138
        %1140 = vrot.lane.b32.xlu0 %v367, 76
        %v1141 = vpop.permute.xlu0 %1140
        %1142 = vrot.lane.b32.xlu0 %v372, 76
        %v1143 = vpop.permute.xlu0 %1142
        %1144 = vrot.lane.b32.xlu0 %v377, 76
        %v1145 = vpop.permute.xlu0 %1144
        %1146 = vrot.lane.b32.xlu0 %v382, 76
        %v1147 = vpop.permute.xlu0 %1146
        %1148 = vrot.lane.b32.xlu0 %v387, 76
        %v1149 = vpop.permute.xlu0 %1148
        %1150 = vrot.lane.b32.xlu0 %v392, 76
        %v1151 = vpop.permute.xlu0 %1150
        %1152 = vrot.lane.b32.xlu0 %v397, 76
        %v1153 = vpop.permute.xlu0 %1152
        %v1167 = vmul.f32 %v1090, %v1129
        %v1168 = vmul.f32 %v1092, %v1131
        %v1169 = vmul.f32 %v1094, %v1133
        %v1170 = vmul.f32 %v1096, %v1135
        %v1171 = vmul.f32 %v1098, %v1137
        %v1172 = vmul.f32 %v1100, %v1139
        %v1173 = vmul.f32 %v1102, %v1141
        %v1174 = vmul.f32 %v1104, %v1143
        %v1175 = vmul.f32 %v1106, %v1145
        %v1176 = vmul.f32 %v1108, %v1147
        %v1177 = vmul.f32 %v1110, %v1149
        %v1178 = vmul.f32 %v1112, %v1151
        %v1179 = vmul.f32 %v1114, %v1153
        %1193 = vrot.lane.b32.xlu0 %v1026, 124
        %v1194 = vpop.permute.xlu0 %1193
        %1195 = vrot.lane.b32.xlu0 %v1031, 124
        %v1196 = vpop.permute.xlu0 %1195
        %1197 = vrot.lane.b32.xlu0 %v1036, 124
        %v1198 = vpop.permute.xlu0 %1197
        %1199 = vrot.lane.b32.xlu0 %v1041, 124
        %v1200 = vpop.permute.xlu0 %1199
        %1201 = vrot.lane.b32.xlu0 %v1046, 124
        %v1202 = vpop.permute.xlu0 %1201
        %1203 = vrot.lane.b32.xlu0 %v1051, 124
        %v1204 = vpop.permute.xlu0 %1203
        %1205 = vrot.lane.b32.xlu0 %v1056, 124
        %v1206 = vpop.permute.xlu0 %1205
        %1207 = vrot.lane.b32.xlu0 %v1061, 124
        %v1208 = vpop.permute.xlu0 %1207
        %1209 = vrot.lane.b32.xlu0 %v1066, 124
        %v1210 = vpop.permute.xlu0 %1209
        %1211 = vrot.lane.b32.xlu0 %v1071, 124
        %v1212 = vpop.permute.xlu0 %1211
        %1213 = vrot.lane.b32.xlu0 %v1076, 124
        %v1214 = vpop.permute.xlu0 %1213
        %1215 = vrot.lane.b32.xlu0 %v1081, 124
        %v1216 = vpop.permute.xlu0 %1215
        %1217 = vrot.lane.b32.xlu0 %v1086, 124
        %v1218 = vpop.permute.xlu0 %1217
        %v1232 = vadd.f32 %v1167, %v1194
        %v1233 = vadd.f32 %v1168, %v1196
        %v1234 = vadd.f32 %v1169, %v1198
        %v1235 = vadd.f32 %v1170, %v1200
        %v1236 = vadd.f32 %v1171, %v1202
        %v1237 = vadd.f32 %v1172, %v1204
        %v1238 = vadd.f32 %v1173, %v1206
        %v1239 = vadd.f32 %v1174, %v1208
        %v1240 = vadd.f32 %v1175, %v1210
        %v1241 = vadd.f32 %v1176, %v1212
        %v1242 = vadd.f32 %v1177, %v1214
        %v1243 = vadd.f32 %v1178, %v1216
        %v1244 = vadd.f32 %v1179, %v1218
        %1245 = vrot.lane.b32.xlu0 %v337, 80
        %v1246 = vpop.permute.xlu0 %1245
        %1247 = vrot.lane.b32.xlu0 %v342, 80
        %v1248 = vpop.permute.xlu0 %1247
        %1249 = vrot.lane.b32.xlu0 %v347, 80
        %v1250 = vpop.permute.xlu0 %1249
        %1251 = vrot.lane.b32.xlu0 %v352, 80
        %v1252 = vpop.permute.xlu0 %1251
        %1253 = vrot.lane.b32.xlu0 %v357, 80
        %v1254 = vpop.permute.xlu0 %1253
        %1255 = vrot.lane.b32.xlu0 %v362, 80
        %v1256 = vpop.permute.xlu0 %1255
        %1257 = vrot.lane.b32.xlu0 %v367, 80
        %v1258 = vpop.permute.xlu0 %1257
        %1259 = vrot.lane.b32.xlu0 %v372, 80
        %v1260 = vpop.permute.xlu0 %1259
        %1261 = vrot.lane.b32.xlu0 %v377, 80
        %v1262 = vpop.permute.xlu0 %1261
        %1263 = vrot.lane.b32.xlu0 %v382, 80
        %v1264 = vpop.permute.xlu0 %1263
        %1265 = vrot.lane.b32.xlu0 %v387, 80
        %v1266 = vpop.permute.xlu0 %1265
        %1267 = vrot.lane.b32.xlu0 %v392, 80
        %v1268 = vpop.permute.xlu0 %1267
        %1269 = vrot.lane.b32.xlu0 %v397, 80
        %v1270 = vpop.permute.xlu0 %1269
        %1297 = vrot.lane.b32.xlu0 %v1232, 4
        %v1298 = vpop.permute.xlu0 %1297
        %1299 = vrot.lane.b32.xlu0 %v1233, 4
        %v1300 = vpop.permute.xlu0 %1299
        %1301 = vrot.lane.b32.xlu0 %v1234, 4
        %v1302 = vpop.permute.xlu0 %1301
        %1303 = vrot.lane.b32.xlu0 %v1235, 4
        %v1304 = vpop.permute.xlu0 %1303
        %1305 = vrot.lane.b32.xlu0 %v1236, 4
        %v1306 = vpop.permute.xlu0 %1305
        %1307 = vrot.lane.b32.xlu0 %v1237, 4
        %v1308 = vpop.permute.xlu0 %1307
        %1309 = vrot.lane.b32.xlu0 %v1238, 4
        %v1310 = vpop.permute.xlu0 %1309
        %1311 = vrot.lane.b32.xlu0 %v1239, 4
        %v1312 = vpop.permute.xlu0 %1311
        %1313 = vrot.lane.b32.xlu0 %v1240, 4
        %v1314 = vpop.permute.xlu0 %1313
        %1315 = vrot.lane.b32.xlu0 %v1241, 4
        %v1316 = vpop.permute.xlu0 %1315
        %1317 = vrot.lane.b32.xlu0 %v1242, 4
        %v1318 = vpop.permute.xlu0 %1317
        %1319 = vrot.lane.b32.xlu0 %v1243, 4
        %v1320 = vpop.permute.xlu0 %1319
        %1321 = vrot.lane.b32.xlu0 %v1244, 4
        %v1322 = vpop.permute.xlu0 %1321
        %vm1336 = vcmask 31744
        %v1337 = vsel %vm1336, %v1246, %v1298
        %v1338 = vsel %vm1336, %v1248, %v1300
        %v1339 = vsel %vm1336, %v1250, %v1302
        %v1340 = vsel %vm1336, %v1252, %v1304
        %v1341 = vsel %vm1336, %v1254, %v1306
        %v1342 = vsel %vm1336, %v1256, %v1308
        %v1343 = vsel %vm1336, %v1258, %v1310
        %v1344 = vsel %vm1336, %v1260, %v1312
        %v1345 = vsel %vm1336, %v1262, %v1314
        %v1346 = vsel %vm1336, %v1264, %v1316
        %v1347 = vsel %vm1336, %v1266, %v1318
        %v1348 = vsel %vm1336, %v1268, %v1320
        %v1349 = vsel %vm1336, %v1270, %v1322
        %v1350 = vsel %vm1336, %v1026, 0.0
        %1351 = vadd.xlane.f32.xlu0 %v1350
        %v1352 = vpop.xlane.xlu0 %1351
        %v1353 = vsel %vm1336, %v1031, 0.0
        %1354 = vadd.xlane.f32.xlu0 %v1353
        %v1355 = vpop.xlane.xlu0 %1354
        %v1356 = vsel %vm1336, %v1036, 0.0
        %1357 = vadd.xlane.f32.xlu0 %v1356
        %v1358 = vpop.xlane.xlu0 %1357
        %v1359 = vsel %vm1336, %v1041, 0.0
        %1360 = vadd.xlane.f32.xlu0 %v1359
        %v1361 = vpop.xlane.xlu0 %1360
        %v1362 = vsel %vm1336, %v1046, 0.0
        %1363 = vadd.xlane.f32.xlu0 %v1362
        %v1364 = vpop.xlane.xlu0 %1363
        %v1365 = vsel %vm1336, %v1051, 0.0
        %1366 = vadd.xlane.f32.xlu0 %v1365
        %v1367 = vpop.xlane.xlu0 %1366
        %v1368 = vsel %vm1336, %v1056, 0.0
        %1369 = vadd.xlane.f32.xlu0 %v1368
        %v1370 = vpop.xlane.xlu0 %1369
        %v1371 = vsel %vm1336, %v1061, 0.0
        %1372 = vadd.xlane.f32.xlu0 %v1371
        %v1373 = vpop.xlane.xlu0 %1372
        %v1374 = vsel %vm1336, %v1066, 0.0
        %1375 = vadd.xlane.f32.xlu0 %v1374
        %v1376 = vpop.xlane.xlu0 %1375
        %v1377 = vsel %vm1336, %v1071, 0.0
        %1378 = vadd.xlane.f32.xlu0 %v1377
        %v1379 = vpop.xlane.xlu0 %1378
        %v1380 = vsel %vm1336, %v1076, 0.0
        %1381 = vadd.xlane.f32.xlu0 %v1380
        %v1382 = vpop.xlane.xlu0 %1381
        %v1383 = vsel %vm1336, %v1081, 0.0
        %1384 = vadd.xlane.f32.xlu0 %v1383
        %v1385 = vpop.xlane.xlu0 %1384
        %v1386 = vsel %vm1336, %v1086, 0.0
        %1387 = vadd.xlane.f32.xlu0 %v1386
        %v1388 = vpop.xlane.xlu0 %1387
        %v1389 = vadd.f32 %v1352, 0.0
        %v1390 = vadd.f32 %v1355, 0.0
        %v1391 = vadd.f32 %v1358, 0.0
        %v1392 = vadd.f32 %v1361, 0.0
        %v1393 = vadd.f32 %v1364, 0.0
        %v1394 = vadd.f32 %v1367, 0.0
        %v1395 = vadd.f32 %v1370, 0.0
        %v1396 = vadd.f32 %v1373, 0.0
        %v1397 = vadd.f32 %v1376, 0.0
        %v1398 = vadd.f32 %v1379, 0.0
        %v1399 = vadd.f32 %v1382, 0.0
        %v1400 = vadd.f32 %v1385, 0.0
        %v1401 = vadd.f32 %v1388, 0.0
        %s1402 = scalar_lea.vmem %s1, 8
        %v1403 = vld [vmem:[%s1402] sm:$0xff]
        %v1405 = vsel %vm230, %v1337, 0
        %v1408 = vsel %vm230, %v1338, 0
        %v1411 = vsel %vm230, %v1339, 0
        %v1414 = vsel %vm230, %v1340, 0
        %v1417 = vsel %vm230, %v1341, 0
        %v1420 = vsel %vm230, %v1342, 0
        %v1423 = vsel %vm230, %v1343, 0
        %v1426 = vsel %vm230, %v1344, 0
        %v1429 = vsel %vm230, %v1345, 0
        %v1432 = vsel %vm230, %v1346, 0
        %v1435 = vsel %vm230, %v1347, 0
        %v1438 = vsel %vm230, %v1348, 0
        %v1441 = vsel %vm230, %v1349, 0
        %1443 = vmatprep.subr.mxu0 0.0
        %1444 = vmatpush1.msra.mxu0 %v1403
        %1445 = vmatprep.subr.mxu0 0.0
        %1446 = vmatpush1.msra.mxu0 0.0
        %1447 = vmatprep.subr.mxu0 0.0
        %1448 = vmatpush1.msra.mxu0 0.0
        %1449 = vmatprep.subr.mxu0 0.0
        %1450 = vmatpush1.msra.mxu0 0.0
        %1451 = vmatprep.subr.mxu0 0.0
        %1452 = vmatpush1.msra.mxu0 0.0
        %1453 = vmatprep.subr.mxu0 0.0
        %1454 = vmatpush1.msra.mxu0 0.0
        %1455 = vmatprep.subr.mxu0 0.0
        %1456 = vmatpush1.msra.mxu0 0.0
        %1457 = vmatprep.subr.mxu0 0.0
        %1458 = vmatpush1.msra.mxu0 0.0
        %1459 = vmatprep.subr.mxu0 0.0
        %1460 = vmatpush1.msra.mxu0 0.0
        %1461 = vmatprep.subr.mxu0 0.0
        %1462 = vmatpush1.msra.mxu0 0.0
        %1463 = vmatprep.subr.mxu0 0.0
        %1464 = vmatpush1.msra.mxu0 0.0
        %1465 = vmatprep.subr.mxu0 0.0
        %1466 = vmatpush1.msra.mxu0 0.0
        %1467 = vmatprep.subr.mxu0 0.0
        %1468 = vmatpush1.msra.mxu0 0.0
        %1469 = vmatprep.subr.mxu0 0.0
        %1470 = vmatpush1.msra.mxu0 0.0
        %1471 = vmatprep.subr.mxu0 0.0
        %1472 = vmatpush1.msra.mxu0 0.0
        %1473 = vmatprep.subr.mxu0 0.0
        %1474 = vmatpush1.msra.mxu0 0.0
        %1475 = vmatprep.subr.mxu0 0.0
        %1476 = vmatpush1.msra.mxu0 0.0
        %1477 = vmatprep.subr.mxu0 0.0
        %1478 = vmatpush1.msra.mxu0 0.0
        %1479 = vmatprep.subr.mxu0 0.0
        %1480 = vmatpush1.msra.mxu0 0.0
        %1481 = vmatprep.subr.mxu0 0.0
        %1482 = vmatpush1.msra.mxu0 0.0
        %1483 = vmatprep.subr.mxu0 0.0
        %1484 = vmatpush1.msra.mxu0 0.0
        %1485 = vmatprep.subr.mxu0 0.0
        %1486 = vmatpush1.msra.mxu0 0.0
        %1487 = vmatprep.subr.mxu0 0.0
        %1488 = vmatpush1.msra.mxu0 0.0
        %1489 = vmatprep.subr.mxu0 0.0
        %1490 = vmatpush1.msra.mxu0 0.0
        %1491 = vmatprep.subr.mxu0 0.0
        %1492 = vmatpush1.msra.mxu0 0.0
        %1493 = vmatprep.subr.mxu0 0.0
        %1494 = vmatpush1.msra.mxu0 0.0
        %1495 = vmatprep.subr.mxu0 0.0
        %1496 = vmatpush1.msra.mxu0 0.0
        %1497 = vmatprep.subr.mxu0 0.0
        %1498 = vmatpush1.msra.mxu0 0.0
        %1499 = vmatprep.subr.mxu0 0.0
        %1500 = vmatpush1.msra.mxu0 0.0
        %1501 = vmatprep.subr.mxu0 0.0
        %1502 = vmatpush1.msra.mxu0 0.0
        %1503 = vmatprep.subr.mxu0 0.0
        %1504 = vmatpush1.msra.mxu0 0.0
        %1505 = vmatprep.subr.mxu0 0.0
        %1506 = vmatpush1.msra.mxu0 0.0
        %1507 = vmatprep.mubr.f32.mxu0 0.0
        %1508 = vmatmul.mubr.f32.gmra.mrb[0].mxu0 %v1405
        %v1509 = vpop.f32.mrb[0].mxu0
        %v1510 = vadd.f32 0.0, %v1509
        %v1511 = vpop.f32.mrb[0].mxu0
        %1512 = vmatprep.mubr.f32.mxu0 0.0
        %1513 = vmatmul.mubr.f32.gmra.mrb[0].mxu0 %v1408
        %v1514 = vpop.f32.mrb[0].mxu0
        %v1515 = vadd.f32 0.0, %v1514
        %v1516 = vpop.f32.mrb[0].mxu0
        %1517 = vmatprep.mubr.f32.mxu0 0.0
        %1518 = vmatmul.mubr.f32.gmra.mrb[0].mxu0 %v1411
        %v1519 = vpop.f32.mrb[0].mxu0
        %v1520 = vadd.f32 0.0, %v1519
        %v1521 = vpop.f32.mrb[0].mxu0
        %1522 = vmatprep.mubr.f32.mxu0 0.0
        %1523 = vmatmul.mubr.f32.gmra.mrb[0].mxu0 %v1414
        %v1524 = vpop.f32.mrb[0].mxu0
        %v1525 = vadd.f32 0.0, %v1524
        %v1526 = vpop.f32.mrb[0].mxu0
        %1527 = vmatprep.mubr.f32.mxu0 0.0
        %1528 = vmatmul.mubr.f32.gmra.mrb[0].mxu0 %v1417
        %v1529 = vpop.f32.mrb[0].mxu0
        %v1530 = vadd.f32 0.0, %v1529
        %v1531 = vpop.f32.mrb[0].mxu0
        %1532 = vmatprep.mubr.f32.mxu0 0.0
        %1533 = vmatmul.mubr.f32.gmra.mrb[0].mxu0 %v1420
        %v1534 = vpop.f32.mrb[0].mxu0
        %v1535 = vadd.f32 0.0, %v1534
        %v1536 = vpop.f32.mrb[0].mxu0
        %1537 = vmatprep.mubr.f32.mxu0 0.0
        %1538 = vmatmul.mubr.f32.gmra.mrb[0].mxu0 %v1423
        %v1539 = vpop.f32.mrb[0].mxu0
        %v1540 = vadd.f32 0.0, %v1539
        %v1541 = vpop.f32.mrb[0].mxu0
        %1542 = vmatprep.mubr.f32.mxu0 0.0
        %1543 = vmatmul.mubr.f32.gmra.mrb[0].mxu0 %v1426
        %v1544 = vpop.f32.mrb[0].mxu0
        %v1545 = vadd.f32 0.0, %v1544
        %v1546 = vpop.f32.mrb[0].mxu0
        %1547 = vmatprep.mubr.f32.mxu0 0.0
        %1548 = vmatmul.mubr.f32.gmra.mrb[0].mxu0 %v1429
        %v1549 = vpop.f32.mrb[0].mxu0
        %v1550 = vadd.f32 0.0, %v1549
        %v1551 = vpop.f32.mrb[0].mxu0
        %1552 = vmatprep.mubr.f32.mxu0 0.0
        %1553 = vmatmul.mubr.f32.gmra.mrb[0].mxu0 %v1432
        %v1554 = vpop.f32.mrb[0].mxu0
        %v1555 = vadd.f32 0.0, %v1554
        %v1556 = vpop.f32.mrb[0].mxu0
        %1557 = vmatprep.mubr.f32.mxu0 0.0
        %1558 = vmatmul.mubr.f32.gmra.mrb[0].mxu0 %v1435
        %v1559 = vpop.f32.mrb[0].mxu0
        %v1560 = vadd.f32 0.0, %v1559
        %v1561 = vpop.f32.mrb[0].mxu0
        %1562 = vmatprep.mubr.f32.mxu0 0.0
        %1563 = vmatmul.mubr.f32.gmra.mrb[0].mxu0 %v1438
        %v1564 = vpop.f32.mrb[0].mxu0
        %v1565 = vadd.f32 0.0, %v1564
        %v1566 = vpop.f32.mrb[0].mxu0
        %1567 = vmatprep.mubr.f32.mxu0 0.0
        %1568 = vmatmul.mubr.f32.gmra.mrb[0].mxu0 %v1441
        %v1569 = vpop.f32.mrb[0].mxu0
        %v1570 = vadd.f32 0.0, %v1569
        %v1571 = vpop.f32.mrb[0].mxu0
        %1572 = vdwg.mxu0
        %s1573 = scalar_lea.vmem %s3, 4
        %v1574 = vld [vmem:[%s1573] sm:$0x1]
        %v1576 = vlaneseq
        %v1577 = vshrl.u32 %v1576, 7
        %v1578 = vsub.s32 0, %v1577
        %v1579 = vrot.slane %v1574, %v1578
        %v1581 = vadd.f32 %v1510, %v1579
        %v1582 = vadd.f32 %v1515, %v1579
        %v1583 = vadd.f32 %v1520, %v1579
        %v1584 = vadd.f32 %v1525, %v1579
        %v1585 = vadd.f32 %v1530, %v1579
        %v1586 = vadd.f32 %v1535, %v1579
        %v1587 = vadd.f32 %v1540, %v1579
        %v1588 = vadd.f32 %v1545, %v1579
        %v1589 = vadd.f32 %v1550, %v1579
        %v1590 = vadd.f32 %v1555, %v1579
        %v1591 = vadd.f32 %v1560, %v1579
        %v1592 = vadd.f32 %v1565, %v1579
        %v1593 = vadd.f32 %v1570, %v1579
        %vm1594 = vcmp.gt.f32.partialorder %v1581, 0.0
        %vm1595 = vcmp.gt.f32.partialorder %v1582, 0.0
        %vm1596 = vcmp.gt.f32.partialorder %v1583, 0.0
        %vm1597 = vcmp.gt.f32.partialorder %v1584, 0.0
        %vm1598 = vcmp.gt.f32.partialorder %v1585, 0.0
        %vm1599 = vcmp.gt.f32.partialorder %v1586, 0.0
        %vm1600 = vcmp.gt.f32.partialorder %v1587, 0.0
        %vm1601 = vcmp.gt.f32.partialorder %v1588, 0.0
        %vm1602 = vcmp.gt.f32.partialorder %v1589, 0.0
        %vm1603 = vcmp.gt.f32.partialorder %v1590, 0.0
        %vm1604 = vcmp.gt.f32.partialorder %v1591, 0.0
        %vm1605 = vcmp.gt.f32.partialorder %v1592, 0.0
        %vm1606 = vcmp.gt.f32.partialorder %v1593, 0.0
        %v1607 = vmul.f32 %v1581, 0.2
        %v1608 = vmul.f32 %v1582, 0.2
        %v1609 = vmul.f32 %v1583, 0.2
        %v1610 = vmul.f32 %v1584, 0.2
        %v1611 = vmul.f32 %v1585, 0.2
        %v1612 = vmul.f32 %v1586, 0.2
        %v1613 = vmul.f32 %v1587, 0.2
        %v1614 = vmul.f32 %v1588, 0.2
        %v1615 = vmul.f32 %v1589, 0.2
        %v1616 = vmul.f32 %v1590, 0.2
        %v1617 = vmul.f32 %v1591, 0.2
        %v1618 = vmul.f32 %v1592, 0.2
        %v1619 = vmul.f32 %v1593, 0.2
        %v1620 = vsel %vm1594, %v1581, %v1607
        %v1621 = vsel %vm1595, %v1582, %v1608
        %v1622 = vsel %vm1596, %v1583, %v1609
        %v1623 = vsel %vm1597, %v1584, %v1610
        %v1624 = vsel %vm1598, %v1585, %v1611
        %v1625 = vsel %vm1599, %v1586, %v1612
        %v1626 = vsel %vm1600, %v1587, %v1613
        %v1627 = vsel %vm1601, %v1588, %v1614
        %v1628 = vsel %vm1602, %v1589, %v1615
        %v1629 = vsel %vm1603, %v1590, %v1616
        %v1630 = vsel %vm1604, %v1591, %v1617
        %v1631 = vsel %vm1605, %v1592, %v1618
        %v1632 = vsel %vm1606, %v1593, %v1619
        %s1633 = scalar_lea.vmem [#allocation2], 144
        %v1634 = vld [vmem:[%s1633] sm:$0xff]
        %v1635 = vld [vmem:[%s1633 + $0x8] sm:$0xff]
        %v1636 = vld [vmem:[%s1633 + $0x10] sm:$0xff]
        %v1637 = vld [vmem:[%s1633 + $0x18] sm:$0xff]
        %v1638 = vld [vmem:[%s1633 + $0x20] sm:$0xff]
        %v1639 = vld [vmem:[%s1633 + $0x28] sm:$0xff]
        %s1640 = scalar_lea.vmem %s3, 5
        %v1641 = vld [vmem:[%s1640] sm:$0x1]
        %v1643 = vlaneseq
        %v1644 = vshrl.u32 %v1643, 7
        %v1645 = vsub.s32 0, %v1644
        %v1646 = vrot.slane %v1641, %v1645
        %v1649 = vsel %vm473, %v1620, 0
        %v1652 = vsel %vm473, %v1621, 0
        %v1655 = vsel %vm473, %v1622, 0
        %v1658 = vsel %vm473, %v1623, 0
        %v1661 = vsel %vm473, %v1624, 0
        %v1664 = vsel %vm473, %v1625, 0
        %v1667 = vsel %vm473, %v1626, 0
        %v1670 = vsel %vm473, %v1627, 0
        %v1673 = vsel %vm473, %v1628, 0
        %v1676 = vsel %vm473, %v1629, 0
        %v1679 = vsel %vm473, %v1630, 0
        %v1682 = vsel %vm473, %v1631, 0
        %v1685 = vsel %vm473, %v1632, 0
        %1687 = vmatprep.subr.mxu0 0.0
        %1688 = vmatpush1.msra.mxu0 %v1634
        %1689 = vmatprep.subr.mxu0 0.0
        %1690 = vmatpush1.msra.mxu0 %v1635
        %1691 = vmatprep.subr.mxu0 0.0
        %1692 = vmatpush1.msra.mxu0 %v1636
        %1693 = vmatprep.subr.mxu0 0.0
        %1694 = vmatpush1.msra.mxu0 %v1637
        %1695 = vmatprep.subr.mxu0 0.0
        %1696 = vmatpush1.msra.mxu0 %v1638
        %1697 = vmatprep.subr.mxu0 0.0
        %1698 = vmatpush1.msra.mxu0 %v1639
        %1699 = vmatprep.subr.mxu0 0.0
        %1700 = vmatpush1.msra.mxu0 0.0
        %1701 = vmatprep.subr.mxu0 0.0
        %1702 = vmatpush1.msra.mxu0 0.0
        %1703 = vmatprep.subr.mxu0 0.0
        %1704 = vmatpush1.msra.mxu0 0.0
        %1705 = vmatprep.subr.mxu0 0.0
        %1706 = vmatpush1.msra.mxu0 0.0
        %1707 = vmatprep.subr.mxu0 0.0
        %1708 = vmatpush1.msra.mxu0 0.0
        %1709 = vmatprep.subr.mxu0 0.0
        %1710 = vmatpush1.msra.mxu0 0.0
        %1711 = vmatprep.subr.mxu0 0.0
        %1712 = vmatpush1.msra.mxu0 0.0
        %1713 = vmatprep.subr.mxu0 0.0
        %1714 = vmatpush1.msra.mxu0 0.0
        %1715 = vmatprep.subr.mxu0 0.0
        %1716 = vmatpush1.msra.mxu0 0.0
        %1717 = vmatprep.subr.mxu0 0.0
        %1718 = vmatpush1.msra.mxu0 0.0
        %1719 = vmatprep.subr.mxu0 0.0
        %1720 = vmatpush1.msra.mxu0 0.0
        %1721 = vmatprep.subr.mxu0 0.0
        %1722 = vmatpush1.msra.mxu0 0.0
        %1723 = vmatprep.subr.mxu0 0.0
        %1724 = vmatpush1.msra.mxu0 0.0
        %1725 = vmatprep.subr.mxu0 0.0
        %1726 = vmatpush1.msra.mxu0 0.0
        %1727 = vmatprep.subr.mxu0 0.0
        %1728 = vmatpush1.msra.mxu0 0.0
        %1729 = vmatprep.subr.mxu0 0.0
        %1730 = vmatpush1.msra.mxu0 0.0
        %1731 = vmatprep.subr.mxu0 0.0
        %1732 = vmatpush1.msra.mxu0 0.0
        %1733 = vmatprep.subr.mxu0 0.0
        %1734 = vmatpush1.msra.mxu0 0.0
        %1735 = vmatprep.subr.mxu0 0.0
        %1736 = vmatpush1.msra.mxu0 0.0
        %1737 = vmatprep.subr.mxu0 0.0
        %1738 = vmatpush1.msra.mxu0 0.0
        %1739 = vmatprep.subr.mxu0 0.0
        %1740 = vmatpush1.msra.mxu0 0.0
        %1741 = vmatprep.subr.mxu0 0.0
        %1742 = vmatpush1.msra.mxu0 0.0
        %1743 = vmatprep.subr.mxu0 0.0
        %1744 = vmatpush1.msra.mxu0 0.0
        %1745 = vmatprep.subr.mxu0 0.0
        %1746 = vmatpush1.msra.mxu0 0.0
        %1747 = vmatprep.subr.mxu0 0.0
        %1748 = vmatpush1.msra.mxu0 0.0
        %1749 = vmatprep.subr.mxu0 0.0
        %1750 = vmatpush1.msra.mxu0 0.0
        %1751 = vmatprep.mubr.f32.mxu0 0.0
        %1752 = vmatmul.mubr.f32.gmra.mrb[0].mxu0 %v1649
        %v1753 = vpop.f32.mrb[0].mxu0
        %v1754 = vadd.f32 %v1646, %v1753
        %v1755 = vpop.f32.mrb[0].mxu0
        %1756 = vmatprep.mubr.f32.mxu0 0.0
        %1757 = vmatmul.mubr.f32.gmra.mrb[0].mxu0 %v1652
        %v1758 = vpop.f32.mrb[0].mxu0
        %v1759 = vadd.f32 %v1646, %v1758
        %v1760 = vpop.f32.mrb[0].mxu0
        %1761 = vmatprep.mubr.f32.mxu0 0.0
        %1762 = vmatmul.mubr.f32.gmra.mrb[0].mxu0 %v1655
        %v1763 = vpop.f32.mrb[0].mxu0
        %v1764 = vadd.f32 %v1646, %v1763
        %v1765 = vpop.f32.mrb[0].mxu0
        %1766 = vmatprep.mubr.f32.mxu0 0.0
        %1767 = vmatmul.mubr.f32.gmra.mrb[0].mxu0 %v1658
        %v1768 = vpop.f32.mrb[0].mxu0
        %v1769 = vadd.f32 %v1646, %v1768
        %v1770 = vpop.f32.mrb[0].mxu0
        %1771 = vmatprep.mubr.f32.mxu0 0.0
        %1772 = vmatmul.mubr.f32.gmra.mrb[0].mxu0 %v1661
        %v1773 = vpop.f32.mrb[0].mxu0
        %v1774 = vadd.f32 %v1646, %v1773
        %v1775 = vpop.f32.mrb[0].mxu0
        %1776 = vmatprep.mubr.f32.mxu0 0.0
        %1777 = vmatmul.mubr.f32.gmra.mrb[0].mxu0 %v1664
        %v1778 = vpop.f32.mrb[0].mxu0
        %v1779 = vadd.f32 %v1646, %v1778
        %v1780 = vpop.f32.mrb[0].mxu0
        %1781 = vmatprep.mubr.f32.mxu0 0.0
        %1782 = vmatmul.mubr.f32.gmra.mrb[0].mxu0 %v1667
        %v1783 = vpop.f32.mrb[0].mxu0
        %v1784 = vadd.f32 %v1646, %v1783
        %v1785 = vpop.f32.mrb[0].mxu0
        %1786 = vmatprep.mubr.f32.mxu0 0.0
        %1787 = vmatmul.mubr.f32.gmra.mrb[0].mxu0 %v1670
        %v1788 = vpop.f32.mrb[0].mxu0
        %v1789 = vadd.f32 %v1646, %v1788
        %v1790 = vpop.f32.mrb[0].mxu0
        %1791 = vmatprep.mubr.f32.mxu0 0.0
        %1792 = vmatmul.mubr.f32.gmra.mrb[0].mxu0 %v1673
        %v1793 = vpop.f32.mrb[0].mxu0
        %v1794 = vadd.f32 %v1646, %v1793
        %v1795 = vpop.f32.mrb[0].mxu0
        %1796 = vmatprep.mubr.f32.mxu0 0.0
        %1797 = vmatmul.mubr.f32.gmra.mrb[0].mxu0 %v1676
        %v1798 = vpop.f32.mrb[0].mxu0
        %v1799 = vadd.f32 %v1646, %v1798
        %v1800 = vpop.f32.mrb[0].mxu0
        %1801 = vmatprep.mubr.f32.mxu0 0.0
        %1802 = vmatmul.mubr.f32.gmra.mrb[0].mxu0 %v1679
        %v1803 = vpop.f32.mrb[0].mxu0
        %v1804 = vadd.f32 %v1646, %v1803
        %v1805 = vpop.f32.mrb[0].mxu0
        %1806 = vmatprep.mubr.f32.mxu0 0.0
        %1807 = vmatmul.mubr.f32.gmra.mrb[0].mxu0 %v1682
        %v1808 = vpop.f32.mrb[0].mxu0
        %v1809 = vadd.f32 %v1646, %v1808
        %v1810 = vpop.f32.mrb[0].mxu0
        %1811 = vmatprep.mubr.f32.mxu0 0.0
        %1812 = vmatmul.mubr.f32.gmra.mrb[0].mxu0 %v1685
        %v1813 = vpop.f32.mrb[0].mxu0
        %v1814 = vadd.f32 %v1646, %v1813
        %v1815 = vpop.f32.mrb[0].mxu0
        %1816 = vdwg.mxu0
        %vm1817 = vcmp.gt.f32.partialorder %v1754, 0.0
        %vm1818 = vcmp.gt.f32.partialorder %v1759, 0.0
        %vm1819 = vcmp.gt.f32.partialorder %v1764, 0.0
        %vm1820 = vcmp.gt.f32.partialorder %v1769, 0.0
        %vm1821 = vcmp.gt.f32.partialorder %v1774, 0.0
        %vm1822 = vcmp.gt.f32.partialorder %v1779, 0.0
        %vm1823 = vcmp.gt.f32.partialorder %v1784, 0.0
        %vm1824 = vcmp.gt.f32.partialorder %v1789, 0.0
        %vm1825 = vcmp.gt.f32.partialorder %v1794, 0.0
        %vm1826 = vcmp.gt.f32.partialorder %v1799, 0.0
        %vm1827 = vcmp.gt.f32.partialorder %v1804, 0.0
        %vm1828 = vcmp.gt.f32.partialorder %v1809, 0.0
        %vm1829 = vcmp.gt.f32.partialorder %v1814, 0.0
        %v1830 = vmul.f32 %v1754, 0.2
        %v1831 = vmul.f32 %v1759, 0.2
        %v1832 = vmul.f32 %v1764, 0.2
        %v1833 = vmul.f32 %v1769, 0.2
        %v1834 = vmul.f32 %v1774, 0.2
        %v1835 = vmul.f32 %v1779, 0.2
        %v1836 = vmul.f32 %v1784, 0.2
        %v1837 = vmul.f32 %v1789, 0.2
        %v1838 = vmul.f32 %v1794, 0.2
        %v1839 = vmul.f32 %v1799, 0.2
        %v1840 = vmul.f32 %v1804, 0.2
        %v1841 = vmul.f32 %v1809, 0.2
        %v1842 = vmul.f32 %v1814, 0.2
        %v1843 = vsel %vm1817, %v1754, %v1830
        %v1844 = vsel %vm1818, %v1759, %v1831
        %v1845 = vsel %vm1819, %v1764, %v1832
        %v1846 = vsel %vm1820, %v1769, %v1833
        %v1847 = vsel %vm1821, %v1774, %v1834
        %v1848 = vsel %vm1822, %v1779, %v1835
        %v1849 = vsel %vm1823, %v1784, %v1836
        %v1850 = vsel %vm1824, %v1789, %v1837
        %v1851 = vsel %vm1825, %v1794, %v1838
        %v1852 = vsel %vm1826, %v1799, %v1839
        %v1853 = vsel %vm1827, %v1804, %v1840
        %v1854 = vsel %vm1828, %v1809, %v1841
        %v1855 = vsel %vm1829, %v1814, %v1842
        %s1856 = scalar_lea.vmem [#allocation2], 192
        %v1857 = vld [vmem:[%s1856] sm:$0xff]
        %v1858 = vld [vmem:[%s1856 + $0x8] sm:$0xff]
        %v1859 = vld [vmem:[%s1856 + $0x10] sm:$0xff]
        %v1860 = vld [vmem:[%s1856 + $0x18] sm:$0xff]
        %v1861 = vld [vmem:[%s1856 + $0x20] sm:$0xff]
        %v1862 = vld [vmem:[%s1856 + $0x28] sm:$0xff]
        %s1863 = scalar_lea.vmem %s3, 6
        %v1864 = vld [vmem:[%s1863] sm:$0x1]
        %v1866 = vlaneseq
        %v1867 = vshrl.u32 %v1866, 7
        %v1868 = vsub.s32 0, %v1867
        %v1869 = vrot.slane %v1864, %v1868
        %v1872 = vsel %vm473, %v1843, 0
        %v1875 = vsel %vm473, %v1844, 0
        %v1878 = vsel %vm473, %v1845, 0
        %v1881 = vsel %vm473, %v1846, 0
        %v1884 = vsel %vm473, %v1847, 0
        %v1887 = vsel %vm473, %v1848, 0
        %v1890 = vsel %vm473, %v1849, 0
        %v1893 = vsel %vm473, %v1850, 0
        %v1896 = vsel %vm473, %v1851, 0
        %v1899 = vsel %vm473, %v1852, 0
        %v1902 = vsel %vm473, %v1853, 0
        %v1905 = vsel %vm473, %v1854, 0
        %v1908 = vsel %vm473, %v1855, 0
        %1910 = vmatprep.subr.mxu0 0.0
        %1911 = vmatpush1.msra.mxu0 %v1857
        %1912 = vmatprep.subr.mxu0 0.0
        %1913 = vmatpush1.msra.mxu0 %v1858
        %1914 = vmatprep.subr.mxu0 0.0
        %1915 = vmatpush1.msra.mxu0 %v1859
        %1916 = vmatprep.subr.mxu0 0.0
        %1917 = vmatpush1.msra.mxu0 %v1860
        %1918 = vmatprep.subr.mxu0 0.0
        %1919 = vmatpush1.msra.mxu0 %v1861
        %1920 = vmatprep.subr.mxu0 0.0
        %1921 = vmatpush1.msra.mxu0 %v1862
        %1922 = vmatprep.subr.mxu0 0.0
        %1923 = vmatpush1.msra.mxu0 0.0
        %1924 = vmatprep.subr.mxu0 0.0
        %1925 = vmatpush1.msra.mxu0 0.0
        %1926 = vmatprep.subr.mxu0 0.0
        %1927 = vmatpush1.msra.mxu0 0.0
        %1928 = vmatprep.subr.mxu0 0.0
        %1929 = vmatpush1.msra.mxu0 0.0
        %1930 = vmatprep.subr.mxu0 0.0
        %1931 = vmatpush1.msra.mxu0 0.0
        %1932 = vmatprep.subr.mxu0 0.0
        %1933 = vmatpush1.msra.mxu0 0.0
        %1934 = vmatprep.subr.mxu0 0.0
        %1935 = vmatpush1.msra.mxu0 0.0
        %1936 = vmatprep.subr.mxu0 0.0
        %1937 = vmatpush1.msra.mxu0 0.0
        %1938 = vmatprep.subr.mxu0 0.0
        %1939 = vmatpush1.msra.mxu0 0.0
        %1940 = vmatprep.subr.mxu0 0.0
        %1941 = vmatpush1.msra.mxu0 0.0
        %1942 = vmatprep.subr.mxu0 0.0
        %1943 = vmatpush1.msra.mxu0 0.0
        %1944 = vmatprep.subr.mxu0 0.0
        %1945 = vmatpush1.msra.mxu0 0.0
        %1946 = vmatprep.subr.mxu0 0.0
        %1947 = vmatpush1.msra.mxu0 0.0
        %1948 = vmatprep.subr.mxu0 0.0
        %1949 = vmatpush1.msra.mxu0 0.0
        %1950 = vmatprep.subr.mxu0 0.0
        %1951 = vmatpush1.msra.mxu0 0.0
        %1952 = vmatprep.subr.mxu0 0.0
        %1953 = vmatpush1.msra.mxu0 0.0
        %1954 = vmatprep.subr.mxu0 0.0
        %1955 = vmatpush1.msra.mxu0 0.0
        %1956 = vmatprep.subr.mxu0 0.0
        %1957 = vmatpush1.msra.mxu0 0.0
        %1958 = vmatprep.subr.mxu0 0.0
        %1959 = vmatpush1.msra.mxu0 0.0
        %1960 = vmatprep.subr.mxu0 0.0
        %1961 = vmatpush1.msra.mxu0 0.0
        %1962 = vmatprep.subr.mxu0 0.0
        %1963 = vmatpush1.msra.mxu0 0.0
        %1964 = vmatprep.subr.mxu0 0.0
        %1965 = vmatpush1.msra.mxu0 0.0
        %1966 = vmatprep.subr.mxu0 0.0
        %1967 = vmatpush1.msra.mxu0 0.0
        %1968 = vmatprep.subr.mxu0 0.0
        %1969 = vmatpush1.msra.mxu0 0.0
        %1970 = vmatprep.subr.mxu0 0.0
        %1971 = vmatpush1.msra.mxu0 0.0
        %1972 = vmatprep.subr.mxu0 0.0
        %1973 = vmatpush1.msra.mxu0 0.0
        %1974 = vmatprep.mubr.f32.mxu0 0.0
        %1975 = vmatmul.mubr.f32.gmra.mrb[0].mxu0 %v1872
        %v1976 = vpop.f32.mrb[0].mxu0
        %v1977 = vadd.f32 %v1869, %v1976
        %v1978 = vpop.f32.mrb[0].mxu0
        %1979 = vmatprep.mubr.f32.mxu0 0.0
        %1980 = vmatmul.mubr.f32.gmra.mrb[0].mxu0 %v1875
        %v1981 = vpop.f32.mrb[0].mxu0
        %v1982 = vadd.f32 %v1869, %v1981
        %v1983 = vpop.f32.mrb[0].mxu0
        %1984 = vmatprep.mubr.f32.mxu0 0.0
        %1985 = vmatmul.mubr.f32.gmra.mrb[0].mxu0 %v1878
        %v1986 = vpop.f32.mrb[0].mxu0
        %v1987 = vadd.f32 %v1869, %v1986
        %v1988 = vpop.f32.mrb[0].mxu0
        %1989 = vmatprep.mubr.f32.mxu0 0.0
        %1990 = vmatmul.mubr.f32.gmra.mrb[0].mxu0 %v1881
        %v1991 = vpop.f32.mrb[0].mxu0
        %v1992 = vadd.f32 %v1869, %v1991
        %v1993 = vpop.f32.mrb[0].mxu0
        %1994 = vmatprep.mubr.f32.mxu0 0.0
        %1995 = vmatmul.mubr.f32.gmra.mrb[0].mxu0 %v1884
        %v1996 = vpop.f32.mrb[0].mxu0
        %v1997 = vadd.f32 %v1869, %v1996
        %v1998 = vpop.f32.mrb[0].mxu0
        %1999 = vmatprep.mubr.f32.mxu0 0.0
        %2000 = vmatmul.mubr.f32.gmra.mrb[0].mxu0 %v1887
        %v2001 = vpop.f32.mrb[0].mxu0
        %v2002 = vadd.f32 %v1869, %v2001
        %v2003 = vpop.f32.mrb[0].mxu0
        %2004 = vmatprep.mubr.f32.mxu0 0.0
        %2005 = vmatmul.mubr.f32.gmra.mrb[0].mxu0 %v1890
        %v2006 = vpop.f32.mrb[0].mxu0
        %v2007 = vadd.f32 %v1869, %v2006
        %v2008 = vpop.f32.mrb[0].mxu0
        %2009 = vmatprep.mubr.f32.mxu0 0.0
        %2010 = vmatmul.mubr.f32.gmra.mrb[0].mxu0 %v1893
        %v2011 = vpop.f32.mrb[0].mxu0
        %v2012 = vadd.f32 %v1869, %v2011
        %v2013 = vpop.f32.mrb[0].mxu0
        %2014 = vmatprep.mubr.f32.mxu0 0.0
        %2015 = vmatmul.mubr.f32.gmra.mrb[0].mxu0 %v1896
        %v2016 = vpop.f32.mrb[0].mxu0
        %v2017 = vadd.f32 %v1869, %v2016
        %v2018 = vpop.f32.mrb[0].mxu0
        %2019 = vmatprep.mubr.f32.mxu0 0.0
        %2020 = vmatmul.mubr.f32.gmra.mrb[0].mxu0 %v1899
        %v2021 = vpop.f32.mrb[0].mxu0
        %v2022 = vadd.f32 %v1869, %v2021
        %v2023 = vpop.f32.mrb[0].mxu0
        %2024 = vmatprep.mubr.f32.mxu0 0.0
        %2025 = vmatmul.mubr.f32.gmra.mrb[0].mxu0 %v1902
        %v2026 = vpop.f32.mrb[0].mxu0
        %v2027 = vadd.f32 %v1869, %v2026
        %v2028 = vpop.f32.mrb[0].mxu0
        %2029 = vmatprep.mubr.f32.mxu0 0.0
        %2030 = vmatmul.mubr.f32.gmra.mrb[0].mxu0 %v1905
        %v2031 = vpop.f32.mrb[0].mxu0
        %v2032 = vadd.f32 %v1869, %v2031
        %v2033 = vpop.f32.mrb[0].mxu0
        %2034 = vmatprep.mubr.f32.mxu0 0.0
        %2035 = vmatmul.mubr.f32.gmra.mrb[0].mxu0 %v1908
        %v2036 = vpop.f32.mrb[0].mxu0
        %v2037 = vadd.f32 %v1869, %v2036
        %v2038 = vpop.f32.mrb[0].mxu0
        %2039 = vdwg.mxu0
        %vm2040 = vcmp.gt.f32.partialorder %v1977, 0.0
        %vm2041 = vcmp.gt.f32.partialorder %v1982, 0.0
        %vm2042 = vcmp.gt.f32.partialorder %v1987, 0.0
        %vm2043 = vcmp.gt.f32.partialorder %v1992, 0.0
        %vm2044 = vcmp.gt.f32.partialorder %v1997, 0.0
        %vm2045 = vcmp.gt.f32.partialorder %v2002, 0.0
        %vm2046 = vcmp.gt.f32.partialorder %v2007, 0.0
        %vm2047 = vcmp.gt.f32.partialorder %v2012, 0.0
        %vm2048 = vcmp.gt.f32.partialorder %v2017, 0.0
        %vm2049 = vcmp.gt.f32.partialorder %v2022, 0.0
        %vm2050 = vcmp.gt.f32.partialorder %v2027, 0.0
        %vm2051 = vcmp.gt.f32.partialorder %v2032, 0.0
        %vm2052 = vcmp.gt.f32.partialorder %v2037, 0.0
        %v2053 = vmul.f32 %v1977, 0.2
        %v2054 = vmul.f32 %v1982, 0.2
        %v2055 = vmul.f32 %v1987, 0.2
        %v2056 = vmul.f32 %v1992, 0.2
        %v2057 = vmul.f32 %v1997, 0.2
        %v2058 = vmul.f32 %v2002, 0.2
        %v2059 = vmul.f32 %v2007, 0.2
        %v2060 = vmul.f32 %v2012, 0.2
        %v2061 = vmul.f32 %v2017, 0.2
        %v2062 = vmul.f32 %v2022, 0.2
        %v2063 = vmul.f32 %v2027, 0.2
        %v2064 = vmul.f32 %v2032, 0.2
        %v2065 = vmul.f32 %v2037, 0.2
        %v2066 = vsel %vm2040, %v1977, %v2053
        %v2067 = vsel %vm2041, %v1982, %v2054
        %v2068 = vsel %vm2042, %v1987, %v2055
        %v2069 = vsel %vm2043, %v1992, %v2056
        %v2070 = vsel %vm2044, %v1997, %v2057
        %v2071 = vsel %vm2045, %v2002, %v2058
        %v2072 = vsel %vm2046, %v2007, %v2059
        %v2073 = vsel %vm2047, %v2012, %v2060
        %v2074 = vsel %vm2048, %v2017, %v2061
        %v2075 = vsel %vm2049, %v2022, %v2062
        %v2076 = vsel %vm2050, %v2027, %v2063
        %v2077 = vsel %vm2051, %v2032, %v2064
        %v2078 = vsel %vm2052, %v2037, %v2065
        %s2079 = scalar_lea.vmem [#allocation2], 240
        %v2080 = vld [vmem:[%s2079] sm:$0xff]
        %v2081 = vld [vmem:[%s2079 + $0x8] sm:$0xff]
        %v2082 = vld [vmem:[%s2079 + $0x10] sm:$0xff]
        %v2083 = vld [vmem:[%s2079 + $0x18] sm:$0xff]
        %v2084 = vld [vmem:[%s2079 + $0x20] sm:$0xff]
        %v2085 = vld [vmem:[%s2079 + $0x28] sm:$0xff]
        %s2086 = scalar_lea.vmem %s3, 7
        %v2087 = vld [vmem:[%s2086] sm:$0x1]
        %v2089 = vlaneseq
        %v2090 = vshrl.u32 %v2089, 7
        %v2091 = vsub.s32 0, %v2090
        %v2092 = vrot.slane %v2087, %v2091
        %v2095 = vsel %vm473, %v2066, 0
        %v2098 = vsel %vm473, %v2067, 0
        %v2101 = vsel %vm473, %v2068, 0
        %v2104 = vsel %vm473, %v2069, 0
        %v2107 = vsel %vm473, %v2070, 0
        %v2110 = vsel %vm473, %v2071, 0
        %v2113 = vsel %vm473, %v2072, 0
        %v2116 = vsel %vm473, %v2073, 0
        %v2119 = vsel %vm473, %v2074, 0
        %v2122 = vsel %vm473, %v2075, 0
        %v2125 = vsel %vm473, %v2076, 0
        %v2128 = vsel %vm473, %v2077, 0
        %v2131 = vsel %vm473, %v2078, 0
        %2133 = vmatprep.subr.mxu0 0.0
        %2134 = vmatpush1.msra.mxu0 %v2080
        %2135 = vmatprep.subr.mxu0 0.0
        %2136 = vmatpush1.msra.mxu0 %v2081
        %2137 = vmatprep.subr.mxu0 0.0
        %2138 = vmatpush1.msra.mxu0 %v2082
        %2139 = vmatprep.subr.mxu0 0.0
        %2140 = vmatpush1.msra.mxu0 %v2083
        %2141 = vmatprep.subr.mxu0 0.0
        %2142 = vmatpush1.msra.mxu0 %v2084
        %2143 = vmatprep.subr.mxu0 0.0
        %2144 = vmatpush1.msra.mxu0 %v2085
        %2145 = vmatprep.subr.mxu0 0.0
        %2146 = vmatpush1.msra.mxu0 0.0
        %2147 = vmatprep.subr.mxu0 0.0
        %2148 = vmatpush1.msra.mxu0 0.0
        %2149 = vmatprep.subr.mxu0 0.0
        %2150 = vmatpush1.msra.mxu0 0.0
        %2151 = vmatprep.subr.mxu0 0.0
        %2152 = vmatpush1.msra.mxu0 0.0
        %2153 = vmatprep.subr.mxu0 0.0
        %2154 = vmatpush1.msra.mxu0 0.0
        %2155 = vmatprep.subr.mxu0 0.0
        %2156 = vmatpush1.msra.mxu0 0.0
        %2157 = vmatprep.subr.mxu0 0.0
        %2158 = vmatpush1.msra.mxu0 0.0
        %2159 = vmatprep.subr.mxu0 0.0
        %2160 = vmatpush1.msra.mxu0 0.0
        %2161 = vmatprep.subr.mxu0 0.0
        %2162 = vmatpush1.msra.mxu0 0.0
        %2163 = vmatprep.subr.mxu0 0.0
        %2164 = vmatpush1.msra.mxu0 0.0
        %2165 = vmatprep.subr.mxu0 0.0
        %2166 = vmatpush1.msra.mxu0 0.0
        %2167 = vmatprep.subr.mxu0 0.0
        %2168 = vmatpush1.msra.mxu0 0.0
        %2169 = vmatprep.subr.mxu0 0.0
        %2170 = vmatpush1.msra.mxu0 0.0
        %2171 = vmatprep.subr.mxu0 0.0
        %2172 = vmatpush1.msra.mxu0 0.0
        %2173 = vmatprep.subr.mxu0 0.0
        %2174 = vmatpush1.msra.mxu0 0.0
        %2175 = vmatprep.subr.mxu0 0.0
        %2176 = vmatpush1.msra.mxu0 0.0
        %2177 = vmatprep.subr.mxu0 0.0
        %2178 = vmatpush1.msra.mxu0 0.0
        %2179 = vmatprep.subr.mxu0 0.0
        %2180 = vmatpush1.msra.mxu0 0.0
        %2181 = vmatprep.subr.mxu0 0.0
        %2182 = vmatpush1.msra.mxu0 0.0
        %2183 = vmatprep.subr.mxu0 0.0
        %2184 = vmatpush1.msra.mxu0 0.0
        %2185 = vmatprep.subr.mxu0 0.0
        %2186 = vmatpush1.msra.mxu0 0.0
        %2187 = vmatprep.subr.mxu0 0.0
        %2188 = vmatpush1.msra.mxu0 0.0
        %2189 = vmatprep.subr.mxu0 0.0
        %2190 = vmatpush1.msra.mxu0 0.0
        %2191 = vmatprep.subr.mxu0 0.0
        %2192 = vmatpush1.msra.mxu0 0.0
        %2193 = vmatprep.subr.mxu0 0.0
        %2194 = vmatpush1.msra.mxu0 0.0
        %2195 = vmatprep.subr.mxu0 0.0
        %2196 = vmatpush1.msra.mxu0 0.0
        %2197 = vmatprep.mubr.f32.mxu0 0.0
        %2198 = vmatmul.mubr.f32.gmra.mrb[0].mxu0 %v2095
        %v2199 = vpop.f32.mrb[0].mxu0
        %v2200 = vadd.f32 %v2092, %v2199
        %v2201 = vpop.f32.mrb[0].mxu0
        %2202 = vmatprep.mubr.f32.mxu0 0.0
        %2203 = vmatmul.mubr.f32.gmra.mrb[0].mxu0 %v2098
        %v2204 = vpop.f32.mrb[0].mxu0
        %v2205 = vadd.f32 %v2092, %v2204
        %v2206 = vpop.f32.mrb[0].mxu0
        %2207 = vmatprep.mubr.f32.mxu0 0.0
        %2208 = vmatmul.mubr.f32.gmra.mrb[0].mxu0 %v2101
        %v2209 = vpop.f32.mrb[0].mxu0
        %v2210 = vadd.f32 %v2092, %v2209
        %v2211 = vpop.f32.mrb[0].mxu0
        %2212 = vmatprep.mubr.f32.mxu0 0.0
        %2213 = vmatmul.mubr.f32.gmra.mrb[0].mxu0 %v2104
        %v2214 = vpop.f32.mrb[0].mxu0
        %v2215 = vadd.f32 %v2092, %v2214
        %v2216 = vpop.f32.mrb[0].mxu0
        %2217 = vmatprep.mubr.f32.mxu0 0.0
        %2218 = vmatmul.mubr.f32.gmra.mrb[0].mxu0 %v2107
        %v2219 = vpop.f32.mrb[0].mxu0
        %v2220 = vadd.f32 %v2092, %v2219
        %v2221 = vpop.f32.mrb[0].mxu0
        %2222 = vmatprep.mubr.f32.mxu0 0.0
        %2223 = vmatmul.mubr.f32.gmra.mrb[0].mxu0 %v2110
        %v2224 = vpop.f32.mrb[0].mxu0
        %v2225 = vadd.f32 %v2092, %v2224
        %v2226 = vpop.f32.mrb[0].mxu0
        %2227 = vmatprep.mubr.f32.mxu0 0.0
        %2228 = vmatmul.mubr.f32.gmra.mrb[0].mxu0 %v2113
        %v2229 = vpop.f32.mrb[0].mxu0
        %v2230 = vadd.f32 %v2092, %v2229
        %v2231 = vpop.f32.mrb[0].mxu0
        %2232 = vmatprep.mubr.f32.mxu0 0.0
        %2233 = vmatmul.mubr.f32.gmra.mrb[0].mxu0 %v2116
        %v2234 = vpop.f32.mrb[0].mxu0
        %v2235 = vadd.f32 %v2092, %v2234
        %v2236 = vpop.f32.mrb[0].mxu0
        %2237 = vmatprep.mubr.f32.mxu0 0.0
        %2238 = vmatmul.mubr.f32.gmra.mrb[0].mxu0 %v2119
        %v2239 = vpop.f32.mrb[0].mxu0
        %v2240 = vadd.f32 %v2092, %v2239
        %v2241 = vpop.f32.mrb[0].mxu0
        %2242 = vmatprep.mubr.f32.mxu0 0.0
        %2243 = vmatmul.mubr.f32.gmra.mrb[0].mxu0 %v2122
        %v2244 = vpop.f32.mrb[0].mxu0
        %v2245 = vadd.f32 %v2092, %v2244
        %v2246 = vpop.f32.mrb[0].mxu0
        %2247 = vmatprep.mubr.f32.mxu0 0.0
        %2248 = vmatmul.mubr.f32.gmra.mrb[0].mxu0 %v2125
        %v2249 = vpop.f32.mrb[0].mxu0
        %v2250 = vadd.f32 %v2092, %v2249
        %v2251 = vpop.f32.mrb[0].mxu0
        %2252 = vmatprep.mubr.f32.mxu0 0.0
        %2253 = vmatmul.mubr.f32.gmra.mrb[0].mxu0 %v2128
        %v2254 = vpop.f32.mrb[0].mxu0
        %v2255 = vadd.f32 %v2092, %v2254
        %v2256 = vpop.f32.mrb[0].mxu0
        %2257 = vmatprep.mubr.f32.mxu0 0.0
        %2258 = vmatmul.mubr.f32.gmra.mrb[0].mxu0 %v2131
        %v2259 = vpop.f32.mrb[0].mxu0
        %v2260 = vadd.f32 %v2092, %v2259
        %v2261 = vpop.f32.mrb[0].mxu0
        %2262 = vdwg.mxu0
        %v2263 = vmul.f32 %v2200, 1.442695
        %v2264 = vpow.pop %v2263
        %v2265 = vmul.f32 %v2205, 1.442695
        %v2266 = vpow.pop %v2265
        %v2267 = vmul.f32 %v2210, 1.442695
        %v2268 = vpow.pop %v2267
        %v2269 = vmul.f32 %v2215, 1.442695
        %v2270 = vpow.pop %v2269
        %v2271 = vmul.f32 %v2220, 1.442695
        %v2272 = vpow.pop %v2271
        %v2273 = vmul.f32 %v2225, 1.442695
        %v2274 = vpow.pop %v2273
        %v2275 = vmul.f32 %v2230, 1.442695
        %v2276 = vpow.pop %v2275
        %v2277 = vmul.f32 %v2235, 1.442695
        %v2278 = vpow.pop %v2277
        %v2279 = vmul.f32 %v2240, 1.442695
        %v2280 = vpow.pop %v2279
        %v2281 = vmul.f32 %v2245, 1.442695
        %v2282 = vpow.pop %v2281
        %v2283 = vmul.f32 %v2250, 1.442695
        %v2284 = vpow.pop %v2283
        %v2285 = vmul.f32 %v2255, 1.442695
        %v2286 = vpow.pop %v2285
        %v2287 = vmul.f32 %v2260, 1.442695
        %v2288 = vpow.pop %v2287
        %2302 = vrot.lane.b32.xlu0 %v1510, 76
        %v2303 = vpop.permute.xlu0 %2302
        %2304 = vrot.lane.b32.xlu0 %v1515, 76
        %v2305 = vpop.permute.xlu0 %2304
        %2306 = vrot.lane.b32.xlu0 %v1520, 76
        %v2307 = vpop.permute.xlu0 %2306
        %2308 = vrot.lane.b32.xlu0 %v1525, 76
        %v2309 = vpop.permute.xlu0 %2308
        %2310 = vrot.lane.b32.xlu0 %v1530, 76
        %v2311 = vpop.permute.xlu0 %2310
        %2312 = vrot.lane.b32.xlu0 %v1535, 76
        %v2313 = vpop.permute.xlu0 %2312
        %2314 = vrot.lane.b32.xlu0 %v1540, 76
        %v2315 = vpop.permute.xlu0 %2314
        %2316 = vrot.lane.b32.xlu0 %v1545, 76
        %v2317 = vpop.permute.xlu0 %2316
        %2318 = vrot.lane.b32.xlu0 %v1550, 76
        %v2319 = vpop.permute.xlu0 %2318
        %2320 = vrot.lane.b32.xlu0 %v1555, 76
        %v2321 = vpop.permute.xlu0 %2320
        %2322 = vrot.lane.b32.xlu0 %v1560, 76
        %v2323 = vpop.permute.xlu0 %2322
        %2324 = vrot.lane.b32.xlu0 %v1565, 76
        %v2325 = vpop.permute.xlu0 %2324
        %2326 = vrot.lane.b32.xlu0 %v1570, 76
        %v2327 = vpop.permute.xlu0 %2326
        %v2341 = vmul.f32 %v2264, %v2303
        %v2342 = vmul.f32 %v2266, %v2305
        %v2343 = vmul.f32 %v2268, %v2307
        %v2344 = vmul.f32 %v2270, %v2309
        %v2345 = vmul.f32 %v2272, %v2311
        %v2346 = vmul.f32 %v2274, %v2313
        %v2347 = vmul.f32 %v2276, %v2315
        %v2348 = vmul.f32 %v2278, %v2317
        %v2349 = vmul.f32 %v2280, %v2319
        %v2350 = vmul.f32 %v2282, %v2321
        %v2351 = vmul.f32 %v2284, %v2323
        %v2352 = vmul.f32 %v2286, %v2325
        %v2353 = vmul.f32 %v2288, %v2327
        %2367 = vrot.lane.b32.xlu0 %v2200, 124
        %v2368 = vpop.permute.xlu0 %2367
        %2369 = vrot.lane.b32.xlu0 %v2205, 124
        %v2370 = vpop.permute.xlu0 %2369
        %2371 = vrot.lane.b32.xlu0 %v2210, 124
        %v2372 = vpop.permute.xlu0 %2371
        %2373 = vrot.lane.b32.xlu0 %v2215, 124
        %v2374 = vpop.permute.xlu0 %2373
        %2375 = vrot.lane.b32.xlu0 %v2220, 124
        %v2376 = vpop.permute.xlu0 %2375
        %2377 = vrot.lane.b32.xlu0 %v2225, 124
        %v2378 = vpop.permute.xlu0 %2377
        %2379 = vrot.lane.b32.xlu0 %v2230, 124
        %v2380 = vpop.permute.xlu0 %2379
        %2381 = vrot.lane.b32.xlu0 %v2235, 124
        %v2382 = vpop.permute.xlu0 %2381
        %2383 = vrot.lane.b32.xlu0 %v2240, 124
        %v2384 = vpop.permute.xlu0 %2383
        %2385 = vrot.lane.b32.xlu0 %v2245, 124
        %v2386 = vpop.permute.xlu0 %2385
        %2387 = vrot.lane.b32.xlu0 %v2250, 124
        %v2388 = vpop.permute.xlu0 %2387
        %2389 = vrot.lane.b32.xlu0 %v2255, 124
        %v2390 = vpop.permute.xlu0 %2389
        %2391 = vrot.lane.b32.xlu0 %v2260, 124
        %v2392 = vpop.permute.xlu0 %2391
        %v2406 = vadd.f32 %v2341, %v2368
        %v2407 = vadd.f32 %v2342, %v2370
        %v2408 = vadd.f32 %v2343, %v2372
        %v2409 = vadd.f32 %v2344, %v2374
        %v2410 = vadd.f32 %v2345, %v2376
        %v2411 = vadd.f32 %v2346, %v2378
        %v2412 = vadd.f32 %v2347, %v2380
        %v2413 = vadd.f32 %v2348, %v2382
        %v2414 = vadd.f32 %v2349, %v2384
        %v2415 = vadd.f32 %v2350, %v2386
        %v2416 = vadd.f32 %v2351, %v2388
        %v2417 = vadd.f32 %v2352, %v2390
        %v2418 = vadd.f32 %v2353, %v2392
        %2419 = vrot.lane.b32.xlu0 %v1510, 84
        %v2420 = vpop.permute.xlu0 %2419
        %2421 = vrot.lane.b32.xlu0 %v1515, 84
        %v2422 = vpop.permute.xlu0 %2421
        %2423 = vrot.lane.b32.xlu0 %v1520, 84
        %v2424 = vpop.permute.xlu0 %2423
        %2425 = vrot.lane.b32.xlu0 %v1525, 84
        %v2426 = vpop.permute.xlu0 %2425
        %2427 = vrot.lane.b32.xlu0 %v1530, 84
        %v2428 = vpop.permute.xlu0 %2427
        %2429 = vrot.lane.b32.xlu0 %v1535, 84
        %v2430 = vpop.permute.xlu0 %2429
        %2431 = vrot.lane.b32.xlu0 %v1540, 84
        %v2432 = vpop.permute.xlu0 %2431
        %2433 = vrot.lane.b32.xlu0 %v1545, 84
        %v2434 = vpop.permute.xlu0 %2433
        %2435 = vrot.lane.b32.xlu0 %v1550, 84
        %v2436 = vpop.permute.xlu0 %2435
        %2437 = vrot.lane.b32.xlu0 %v1555, 84
        %v2438 = vpop.permute.xlu0 %2437
        %2439 = vrot.lane.b32.xlu0 %v1560, 84
        %v2440 = vpop.permute.xlu0 %2439
        %2441 = vrot.lane.b32.xlu0 %v1565, 84
        %v2442 = vpop.permute.xlu0 %2441
        %2443 = vrot.lane.b32.xlu0 %v1570, 84
        %v2444 = vpop.permute.xlu0 %2443
        %v2458 = vsel %vm1336, %v2406, %v2420
        %v2459 = vsel %vm1336, %v2407, %v2422
        %v2460 = vsel %vm1336, %v2408, %v2424
        %v2461 = vsel %vm1336, %v2409, %v2426
        %v2462 = vsel %vm1336, %v2410, %v2428
        %v2463 = vsel %vm1336, %v2411, %v2430
        %v2464 = vsel %vm1336, %v2412, %v2432
        %v2465 = vsel %vm1336, %v2413, %v2434
        %v2466 = vsel %vm1336, %v2414, %v2436
        %v2467 = vsel %vm1336, %v2415, %v2438
        %v2468 = vsel %vm1336, %v2416, %v2440
        %v2469 = vsel %vm1336, %v2417, %v2442
        %v2470 = vsel %vm1336, %v2418, %v2444
        %v2471 = vsel %vm1336, %v2200, 0.0
        %2472 = vadd.xlane.f32.xlu0 %v2471
        %v2473 = vpop.xlane.xlu0 %2472
        %v2474 = vsel %vm1336, %v2205, 0.0
        %2475 = vadd.xlane.f32.xlu0 %v2474
        %v2476 = vpop.xlane.xlu0 %2475
        %v2477 = vsel %vm1336, %v2210, 0.0
        %2478 = vadd.xlane.f32.xlu0 %v2477
        %v2479 = vpop.xlane.xlu0 %2478
        %v2480 = vsel %vm1336, %v2215, 0.0
        %2481 = vadd.xlane.f32.xlu0 %v2480
        %v2482 = vpop.xlane.xlu0 %2481
        %v2483 = vsel %vm1336, %v2220, 0.0
        %2484 = vadd.xlane.f32.xlu0 %v2483
        %v2485 = vpop.xlane.xlu0 %2484
        %v2486 = vsel %vm1336, %v2225, 0.0
        %2487 = vadd.xlane.f32.xlu0 %v2486
        %v2488 = vpop.xlane.xlu0 %2487
        %v2489 = vsel %vm1336, %v2230, 0.0
        %2490 = vadd.xlane.f32.xlu0 %v2489
        %v2491 = vpop.xlane.xlu0 %2490
        %v2492 = vsel %vm1336, %v2235, 0.0
        %2493 = vadd.xlane.f32.xlu0 %v2492
        %v2494 = vpop.xlane.xlu0 %2493
        %v2495 = vsel %vm1336, %v2240, 0.0
        %2496 = vadd.xlane.f32.xlu0 %v2495
        %v2497 = vpop.xlane.xlu0 %2496
        %v2498 = vsel %vm1336, %v2245, 0.0
        %2499 = vadd.xlane.f32.xlu0 %v2498
        %v2500 = vpop.xlane.xlu0 %2499
        %v2501 = vsel %vm1336, %v2250, 0.0
        %2502 = vadd.xlane.f32.xlu0 %v2501
        %v2503 = vpop.xlane.xlu0 %2502
        %v2504 = vsel %vm1336, %v2255, 0.0
        %2505 = vadd.xlane.f32.xlu0 %v2504
        %v2506 = vpop.xlane.xlu0 %2505
        %v2507 = vsel %vm1336, %v2260, 0.0
        %2508 = vadd.xlane.f32.xlu0 %v2507
        %v2509 = vpop.xlane.xlu0 %2508
        %v2510 = vadd.f32 %v1389, %v2473
        %v2511 = vadd.f32 %v1390, %v2476
        %v2512 = vadd.f32 %v1391, %v2479
        %v2513 = vadd.f32 %v1392, %v2482
        %v2514 = vadd.f32 %v1393, %v2485
        %v2515 = vadd.f32 %v1394, %v2488
        %v2516 = vadd.f32 %v1395, %v2491
        %v2517 = vadd.f32 %v1396, %v2494
        %v2518 = vadd.f32 %v1397, %v2497
        %v2519 = vadd.f32 %v1398, %v2500
        %v2520 = vadd.f32 %v1399, %v2503
        %v2521 = vadd.f32 %v1400, %v2506
        %v2522 = vadd.f32 %v1401, %v2509
        %s2523 = scalar_lea.vmem %s1, 16
        %v2524 = vld [vmem:[%s2523] sm:$0xff]
        %v2526 = vsel %vm230, %v2458, 0
        %v2529 = vsel %vm230, %v2459, 0
        %v2532 = vsel %vm230, %v2460, 0
        %v2535 = vsel %vm230, %v2461, 0
        %v2538 = vsel %vm230, %v2462, 0
        %v2541 = vsel %vm230, %v2463, 0
        %v2544 = vsel %vm230, %v2464, 0
        %v2547 = vsel %vm230, %v2465, 0
        %v2550 = vsel %vm230, %v2466, 0
        %v2553 = vsel %vm230, %v2467, 0
        %v2556 = vsel %vm230, %v2468, 0
        %v2559 = vsel %vm230, %v2469, 0
        %v2562 = vsel %vm230, %v2470, 0
        %2564 = vmatprep.subr.mxu0 0.0
        %2565 = vmatpush1.msra.mxu0 %v2524
        %2566 = vmatprep.subr.mxu0 0.0
        %2567 = vmatpush1.msra.mxu0 0.0
        %2568 = vmatprep.subr.mxu0 0.0
        %2569 = vmatpush1.msra.mxu0 0.0
        %2570 = vmatprep.subr.mxu0 0.0
        %2571 = vmatpush1.msra.mxu0 0.0
        %2572 = vmatprep.subr.mxu0 0.0
        %2573 = vmatpush1.msra.mxu0 0.0
        %2574 = vmatprep.subr.mxu0 0.0
        %2575 = vmatpush1.msra.mxu0 0.0
        %2576 = vmatprep.subr.mxu0 0.0
        %2577 = vmatpush1.msra.mxu0 0.0
        %2578 = vmatprep.subr.mxu0 0.0
        %2579 = vmatpush1.msra.mxu0 0.0
        %2580 = vmatprep.subr.mxu0 0.0
        %2581 = vmatpush1.msra.mxu0 0.0
        %2582 = vmatprep.subr.mxu0 0.0
        %2583 = vmatpush1.msra.mxu0 0.0
        %2584 = vmatprep.subr.mxu0 0.0
        %2585 = vmatpush1.msra.mxu0 0.0
        %2586 = vmatprep.subr.mxu0 0.0
        %2587 = vmatpush1.msra.mxu0 0.0
        %2588 = vmatprep.subr.mxu0 0.0
        %2589 = vmatpush1.msra.mxu0 0.0
        %2590 = vmatprep.subr.mxu0 0.0
        %2591 = vmatpush1.msra.mxu0 0.0
        %2592 = vmatprep.subr.mxu0 0.0
        %2593 = vmatpush1.msra.mxu0 0.0
        %2594 = vmatprep.subr.mxu0 0.0
        %2595 = vmatpush1.msra.mxu0 0.0
        %2596 = vmatprep.subr.mxu0 0.0
        %2597 = vmatpush1.msra.mxu0 0.0
        %2598 = vmatprep.subr.mxu0 0.0
        %2599 = vmatpush1.msra.mxu0 0.0
        %2600 = vmatprep.subr.mxu0 0.0
        %2601 = vmatpush1.msra.mxu0 0.0
        %2602 = vmatprep.subr.mxu0 0.0
        %2603 = vmatpush1.msra.mxu0 0.0
        %2604 = vmatprep.subr.mxu0 0.0
        %2605 = vmatpush1.msra.mxu0 0.0
        %2606 = vmatprep.subr.mxu0 0.0
        %2607 = vmatpush1.msra.mxu0 0.0
        %2608 = vmatprep.subr.mxu0 0.0
        %2609 = vmatpush1.msra.mxu0 0.0
        %2610 = vmatprep.subr.mxu0 0.0
        %2611 = vmatpush1.msra.mxu0 0.0
        %2612 = vmatprep.subr.mxu0 0.0
        %2613 = vmatpush1.msra.mxu0 0.0
        %2614 = vmatprep.subr.mxu0 0.0
        %2615 = vmatpush1.msra.mxu0 0.0
        %2616 = vmatprep.subr.mxu0 0.0
        %2617 = vmatpush1.msra.mxu0 0.0
        %2618 = vmatprep.subr.mxu0 0.0
        %2619 = vmatpush1.msra.mxu0 0.0
        %2620 = vmatprep.subr.mxu0 0.0
        %2621 = vmatpush1.msra.mxu0 0.0
        %2622 = vmatprep.subr.mxu0 0.0
        %2623 = vmatpush1.msra.mxu0 0.0
        %2624 = vmatprep.subr.mxu0 0.0
        %2625 = vmatpush1.msra.mxu0 0.0
        %2626 = vmatprep.subr.mxu0 0.0
        %2627 = vmatpush1.msra.mxu0 0.0
        %2628 = vmatprep.mubr.f32.mxu0 0.0
        %2629 = vmatmul.mubr.f32.gmra.mrb[0].mxu0 %v2526
        %v2630 = vpop.f32.mrb[0].mxu0
        %v2631 = vadd.f32 0.0, %v2630
        %v2632 = vpop.f32.mrb[0].mxu0
        %2633 = vmatprep.mubr.f32.mxu0 0.0
        %2634 = vmatmul.mubr.f32.gmra.mrb[0].mxu0 %v2529
        %v2635 = vpop.f32.mrb[0].mxu0
        %v2636 = vadd.f32 0.0, %v2635
        %v2637 = vpop.f32.mrb[0].mxu0
        %2638 = vmatprep.mubr.f32.mxu0 0.0
        %2639 = vmatmul.mubr.f32.gmra.mrb[0].mxu0 %v2532
        %v2640 = vpop.f32.mrb[0].mxu0
        %v2641 = vadd.f32 0.0, %v2640
        %v2642 = vpop.f32.mrb[0].mxu0
        %2643 = vmatprep.mubr.f32.mxu0 0.0
        %2644 = vmatmul.mubr.f32.gmra.mrb[0].mxu0 %v2535
        %v2645 = vpop.f32.mrb[0].mxu0
        %v2646 = vadd.f32 0.0, %v2645
        %v2647 = vpop.f32.mrb[0].mxu0
        %2648 = vmatprep.mubr.f32.mxu0 0.0
        %2649 = vmatmul.mubr.f32.gmra.mrb[0].mxu0 %v2538
        %v2650 = vpop.f32.mrb[0].mxu0
        %v2651 = vadd.f32 0.0, %v2650
        %v2652 = vpop.f32.mrb[0].mxu0
        %2653 = vmatprep.mubr.f32.mxu0 0.0
        %2654 = vmatmul.mubr.f32.gmra.mrb[0].mxu0 %v2541
        %v2655 = vpop.f32.mrb[0].mxu0
        %v2656 = vadd.f32 0.0, %v2655
        %v2657 = vpop.f32.mrb[0].mxu0
        %2658 = vmatprep.mubr.f32.mxu0 0.0
        %2659 = vmatmul.mubr.f32.gmra.mrb[0].mxu0 %v2544
        %v2660 = vpop.f32.mrb[0].mxu0
        %v2661 = vadd.f32 0.0, %v2660
        %v2662 = vpop.f32.mrb[0].mxu0
        %2663 = vmatprep.mubr.f32.mxu0 0.0
        %2664 = vmatmul.mubr.f32.gmra.mrb[0].mxu0 %v2547
        %v2665 = vpop.f32.mrb[0].mxu0
        %v2666 = vadd.f32 0.0, %v2665
        %v2667 = vpop.f32.mrb[0].mxu0
        %2668 = vmatprep.mubr.f32.mxu0 0.0
        %2669 = vmatmul.mubr.f32.gmra.mrb[0].mxu0 %v2550
        %v2670 = vpop.f32.mrb[0].mxu0
        %v2671 = vadd.f32 0.0, %v2670
        %v2672 = vpop.f32.mrb[0].mxu0
        %2673 = vmatprep.mubr.f32.mxu0 0.0
        %2674 = vmatmul.mubr.f32.gmra.mrb[0].mxu0 %v2553
        %v2675 = vpop.f32.mrb[0].mxu0
        %v2676 = vadd.f32 0.0, %v2675
        %v2677 = vpop.f32.mrb[0].mxu0
        %2678 = vmatprep.mubr.f32.mxu0 0.0
        %2679 = vmatmul.mubr.f32.gmra.mrb[0].mxu0 %v2556
        %v2680 = vpop.f32.mrb[0].mxu0
        %v2681 = vadd.f32 0.0, %v2680
        %v2682 = vpop.f32.mrb[0].mxu0
        %2683 = vmatprep.mubr.f32.mxu0 0.0
        %2684 = vmatmul.mubr.f32.gmra.mrb[0].mxu0 %v2559
        %v2685 = vpop.f32.mrb[0].mxu0
        %v2686 = vadd.f32 0.0, %v2685
        %v2687 = vpop.f32.mrb[0].mxu0
        %2688 = vmatprep.mubr.f32.mxu0 0.0
        %2689 = vmatmul.mubr.f32.gmra.mrb[0].mxu0 %v2562
        %v2690 = vpop.f32.mrb[0].mxu0
        %v2691 = vadd.f32 0.0, %v2690
        %v2692 = vpop.f32.mrb[0].mxu0
        %2693 = vdwg.mxu0
        %s2694 = scalar_lea.vmem %s3, 8
        %v2695 = vld [vmem:[%s2694] sm:$0x1]
        %v2697 = vlaneseq
        %v2698 = vshrl.u32 %v2697, 7
        %v2699 = vsub.s32 0, %v2698
        %v2700 = vrot.slane %v2695, %v2699
        %v2702 = vadd.f32 %v2631, %v2700
        %v2703 = vadd.f32 %v2636, %v2700
        %v2704 = vadd.f32 %v2641, %v2700
        %v2705 = vadd.f32 %v2646, %v2700
        %v2706 = vadd.f32 %v2651, %v2700
        %v2707 = vadd.f32 %v2656, %v2700
        %v2708 = vadd.f32 %v2661, %v2700
        %v2709 = vadd.f32 %v2666, %v2700
        %v2710 = vadd.f32 %v2671, %v2700
        %v2711 = vadd.f32 %v2676, %v2700
        %v2712 = vadd.f32 %v2681, %v2700
        %v2713 = vadd.f32 %v2686, %v2700
        %v2714 = vadd.f32 %v2691, %v2700
        %vm2715 = vcmp.gt.f32.partialorder %v2702, 0.0
        %vm2716 = vcmp.gt.f32.partialorder %v2703, 0.0
        %vm2717 = vcmp.gt.f32.partialorder %v2704, 0.0
        %vm2718 = vcmp.gt.f32.partialorder %v2705, 0.0
        %vm2719 = vcmp.gt.f32.partialorder %v2706, 0.0
        %vm2720 = vcmp.gt.f32.partialorder %v2707, 0.0
        %vm2721 = vcmp.gt.f32.partialorder %v2708, 0.0
        %vm2722 = vcmp.gt.f32.partialorder %v2709, 0.0
        %vm2723 = vcmp.gt.f32.partialorder %v2710, 0.0
        %vm2724 = vcmp.gt.f32.partialorder %v2711, 0.0
        %vm2725 = vcmp.gt.f32.partialorder %v2712, 0.0
        %vm2726 = vcmp.gt.f32.partialorder %v2713, 0.0
        %vm2727 = vcmp.gt.f32.partialorder %v2714, 0.0
        %v2728 = vmul.f32 %v2702, 0.2
        %v2729 = vmul.f32 %v2703, 0.2
        %v2730 = vmul.f32 %v2704, 0.2
        %v2731 = vmul.f32 %v2705, 0.2
        %v2732 = vmul.f32 %v2706, 0.2
        %v2733 = vmul.f32 %v2707, 0.2
        %v2734 = vmul.f32 %v2708, 0.2
        %v2735 = vmul.f32 %v2709, 0.2
        %v2736 = vmul.f32 %v2710, 0.2
        %v2737 = vmul.f32 %v2711, 0.2
        %v2738 = vmul.f32 %v2712, 0.2
        %v2739 = vmul.f32 %v2713, 0.2
        %v2740 = vmul.f32 %v2714, 0.2
        %v2741 = vsel %vm2715, %v2702, %v2728
        %v2742 = vsel %vm2716, %v2703, %v2729
        %v2743 = vsel %vm2717, %v2704, %v2730
        %v2744 = vsel %vm2718, %v2705, %v2731
        %v2745 = vsel %vm2719, %v2706, %v2732
        %v2746 = vsel %vm2720, %v2707, %v2733
        %v2747 = vsel %vm2721, %v2708, %v2734
        %v2748 = vsel %vm2722, %v2709, %v2735
        %v2749 = vsel %vm2723, %v2710, %v2736
        %v2750 = vsel %vm2724, %v2711, %v2737
        %v2751 = vsel %vm2725, %v2712, %v2738
        %v2752 = vsel %vm2726, %v2713, %v2739
        %v2753 = vsel %vm2727, %v2714, %v2740
        %s2754 = scalar_lea.vmem [#allocation2], 288
        %v2755 = vld [vmem:[%s2754] sm:$0xff]
        %v2756 = vld [vmem:[%s2754 + $0x8] sm:$0xff]
        %v2757 = vld [vmem:[%s2754 + $0x10] sm:$0xff]
        %v2758 = vld [vmem:[%s2754 + $0x18] sm:$0xff]
        %v2759 = vld [vmem:[%s2754 + $0x20] sm:$0xff]
        %v2760 = vld [vmem:[%s2754 + $0x28] sm:$0xff]
        %s2761 = scalar_lea.vmem %s3, 9
        %v2762 = vld [vmem:[%s2761] sm:$0x1]
        %v2764 = vlaneseq
        %v2765 = vshrl.u32 %v2764, 7
        %v2766 = vsub.s32 0, %v2765
        %v2767 = vrot.slane %v2762, %v2766
        %v2770 = vsel %vm473, %v2741, 0
        %v2773 = vsel %vm473, %v2742, 0
        %v2776 = vsel %vm473, %v2743, 0
        %v2779 = vsel %vm473, %v2744, 0
        %v2782 = vsel %vm473, %v2745, 0
        %v2785 = vsel %vm473, %v2746, 0
        %v2788 = vsel %vm473, %v2747, 0
        %v2791 = vsel %vm473, %v2748, 0
        %v2794 = vsel %vm473, %v2749, 0
        %v2797 = vsel %vm473, %v2750, 0
        %v2800 = vsel %vm473, %v2751, 0
        %v2803 = vsel %vm473, %v2752, 0
        %v2806 = vsel %vm473, %v2753, 0
        %2808 = vmatprep.subr.mxu0 0.0
        %2809 = vmatpush1.msra.mxu0 %v2755
        %2810 = vmatprep.subr.mxu0 0.0
        %2811 = vmatpush1.msra.mxu0 %v2756
        %2812 = vmatprep.subr.mxu0 0.0
        %2813 = vmatpush1.msra.mxu0 %v2757
        %2814 = vmatprep.subr.mxu0 0.0
        %2815 = vmatpush1.msra.mxu0 %v2758
        %2816 = vmatprep.subr.mxu0 0.0
        %2817 = vmatpush1.msra.mxu0 %v2759
        %2818 = vmatprep.subr.mxu0 0.0
        %2819 = vmatpush1.msra.mxu0 %v2760
        %2820 = vmatprep.subr.mxu0 0.0
        %2821 = vmatpush1.msra.mxu0 0.0
        %2822 = vmatprep.subr.mxu0 0.0
        %2823 = vmatpush1.msra.mxu0 0.0
        %2824 = vmatprep.subr.mxu0 0.0
        %2825 = vmatpush1.msra.mxu0 0.0
        %2826 = vmatprep.subr.mxu0 0.0
        %2827 = vmatpush1.msra.mxu0 0.0
        %2828 = vmatprep.subr.mxu0 0.0
        %2829 = vmatpush1.msra.mxu0 0.0
        %2830 = vmatprep.subr.mxu0 0.0
        %2831 = vmatpush1.msra.mxu0 0.0
        %2832 = vmatprep.subr.mxu0 0.0
        %2833 = vmatpush1.msra.mxu0 0.0
        %2834 = vmatprep.subr.mxu0 0.0
        %2835 = vmatpush1.msra.mxu0 0.0
        %2836 = vmatprep.subr.mxu0 0.0
        %2837 = vmatpush1.msra.mxu0 0.0
        %2838 = vmatprep.subr.mxu0 0.0
        %2839 = vmatpush1.msra.mxu0 0.0
        %2840 = vmatprep.subr.mxu0 0.0
        %2841 = vmatpush1.msra.mxu0 0.0
        %2842 = vmatprep.subr.mxu0 0.0
        %2843 = vmatpush1.msra.mxu0 0.0
        %2844 = vmatprep.subr.mxu0 0.0
        %2845 = vmatpush1.msra.mxu0 0.0
        %2846 = vmatprep.subr.mxu0 0.0
        %2847 = vmatpush1.msra.mxu0 0.0
        %2848 = vmatprep.subr.mxu0 0.0
        %2849 = vmatpush1.msra.mxu0 0.0
        %2850 = vmatprep.subr.mxu0 0.0
        %2851 = vmatpush1.msra.mxu0 0.0
        %2852 = vmatprep.subr.mxu0 0.0
        %2853 = vmatpush1.msra.mxu0 0.0
        %2854 = vmatprep.subr.mxu0 0.0
        %2855 = vmatpush1.msra.mxu0 0.0
        %2856 = vmatprep.subr.mxu0 0.0
        %2857 = vmatpush1.msra.mxu0 0.0
        %2858 = vmatprep.subr.mxu0 0.0
        %2859 = vmatpush1.msra.mxu0 0.0
        %2860 = vmatprep.subr.mxu0 0.0
        %2861 = vmatpush1.msra.mxu0 0.0
        %2862 = vmatprep.subr.mxu0 0.0
        %2863 = vmatpush1.msra.mxu0 0.0
        %2864 = vmatprep.subr.mxu0 0.0
        %2865 = vmatpush1.msra.mxu0 0.0
        %2866 = vmatprep.subr.mxu0 0.0
        %2867 = vmatpush1.msra.mxu0 0.0
        %2868 = vmatprep.subr.mxu0 0.0
        %2869 = vmatpush1.msra.mxu0 0.0
        %2870 = vmatprep.subr.mxu0 0.0
        %2871 = vmatpush1.msra.mxu0 0.0
        %2872 = vmatprep.mubr.f32.mxu0 0.0
        %2873 = vmatmul.mubr.f32.gmra.mrb[0].mxu0 %v2770
        %v2874 = vpop.f32.mrb[0].mxu0
        %v2875 = vadd.f32 %v2767, %v2874
        %v2876 = vpop.f32.mrb[0].mxu0
        %2877 = vmatprep.mubr.f32.mxu0 0.0
        %2878 = vmatmul.mubr.f32.gmra.mrb[0].mxu0 %v2773
        %v2879 = vpop.f32.mrb[0].mxu0
        %v2880 = vadd.f32 %v2767, %v2879
        %v2881 = vpop.f32.mrb[0].mxu0
        %2882 = vmatprep.mubr.f32.mxu0 0.0
        %2883 = vmatmul.mubr.f32.gmra.mrb[0].mxu0 %v2776
        %v2884 = vpop.f32.mrb[0].mxu0
        %v2885 = vadd.f32 %v2767, %v2884
        %v2886 = vpop.f32.mrb[0].mxu0
        %2887 = vmatprep.mubr.f32.mxu0 0.0
        %2888 = vmatmul.mubr.f32.gmra.mrb[0].mxu0 %v2779
        %v2889 = vpop.f32.mrb[0].mxu0
        %v2890 = vadd.f32 %v2767, %v2889
        %v2891 = vpop.f32.mrb[0].mxu0
        %2892 = vmatprep.mubr.f32.mxu0 0.0
        %2893 = vmatmul.mubr.f32.gmra.mrb[0].mxu0 %v2782
        %v2894 = vpop.f32.mrb[0].mxu0
        %v2895 = vadd.f32 %v2767, %v2894
        %v2896 = vpop.f32.mrb[0].mxu0
        %2897 = vmatprep.mubr.f32.mxu0 0.0
        %2898 = vmatmul.mubr.f32.gmra.mrb[0].mxu0 %v2785
        %v2899 = vpop.f32.mrb[0].mxu0
        %v2900 = vadd.f32 %v2767, %v2899
        %v2901 = vpop.f32.mrb[0].mxu0
        %2902 = vmatprep.mubr.f32.mxu0 0.0
        %2903 = vmatmul.mubr.f32.gmra.mrb[0].mxu0 %v2788
        %v2904 = vpop.f32.mrb[0].mxu0
        %v2905 = vadd.f32 %v2767, %v2904
        %v2906 = vpop.f32.mrb[0].mxu0
        %2907 = vmatprep.mubr.f32.mxu0 0.0
        %2908 = vmatmul.mubr.f32.gmra.mrb[0].mxu0 %v2791
        %v2909 = vpop.f32.mrb[0].mxu0
        %v2910 = vadd.f32 %v2767, %v2909
        %v2911 = vpop.f32.mrb[0].mxu0
        %2912 = vmatprep.mubr.f32.mxu0 0.0
        %2913 = vmatmul.mubr.f32.gmra.mrb[0].mxu0 %v2794
        %v2914 = vpop.f32.mrb[0].mxu0
        %v2915 = vadd.f32 %v2767, %v2914
        %v2916 = vpop.f32.mrb[0].mxu0
        %2917 = vmatprep.mubr.f32.mxu0 0.0
        %2918 = vmatmul.mubr.f32.gmra.mrb[0].mxu0 %v2797
        %v2919 = vpop.f32.mrb[0].mxu0
        %v2920 = vadd.f32 %v2767, %v2919
        %v2921 = vpop.f32.mrb[0].mxu0
        %2922 = vmatprep.mubr.f32.mxu0 0.0
        %2923 = vmatmul.mubr.f32.gmra.mrb[0].mxu0 %v2800
        %v2924 = vpop.f32.mrb[0].mxu0
        %v2925 = vadd.f32 %v2767, %v2924
        %v2926 = vpop.f32.mrb[0].mxu0
        %2927 = vmatprep.mubr.f32.mxu0 0.0
        %2928 = vmatmul.mubr.f32.gmra.mrb[0].mxu0 %v2803
        %v2929 = vpop.f32.mrb[0].mxu0
        %v2930 = vadd.f32 %v2767, %v2929
        %v2931 = vpop.f32.mrb[0].mxu0
        %2932 = vmatprep.mubr.f32.mxu0 0.0
        %2933 = vmatmul.mubr.f32.gmra.mrb[0].mxu0 %v2806
        %v2934 = vpop.f32.mrb[0].mxu0
        %v2935 = vadd.f32 %v2767, %v2934
        %v2936 = vpop.f32.mrb[0].mxu0
        %2937 = vdwg.mxu0
        %vm2938 = vcmp.gt.f32.partialorder %v2875, 0.0
        %vm2939 = vcmp.gt.f32.partialorder %v2880, 0.0
        %vm2940 = vcmp.gt.f32.partialorder %v2885, 0.0
        %vm2941 = vcmp.gt.f32.partialorder %v2890, 0.0
        %vm2942 = vcmp.gt.f32.partialorder %v2895, 0.0
        %vm2943 = vcmp.gt.f32.partialorder %v2900, 0.0
        %vm2944 = vcmp.gt.f32.partialorder %v2905, 0.0
        %vm2945 = vcmp.gt.f32.partialorder %v2910, 0.0
        %vm2946 = vcmp.gt.f32.partialorder %v2915, 0.0
        %vm2947 = vcmp.gt.f32.partialorder %v2920, 0.0
        %vm2948 = vcmp.gt.f32.partialorder %v2925, 0.0
        %vm2949 = vcmp.gt.f32.partialorder %v2930, 0.0
        %vm2950 = vcmp.gt.f32.partialorder %v2935, 0.0
        %v2951 = vmul.f32 %v2875, 0.2
        %v2952 = vmul.f32 %v2880, 0.2
        %v2953 = vmul.f32 %v2885, 0.2
        %v2954 = vmul.f32 %v2890, 0.2
        %v2955 = vmul.f32 %v2895, 0.2
        %v2956 = vmul.f32 %v2900, 0.2
        %v2957 = vmul.f32 %v2905, 0.2
        %v2958 = vmul.f32 %v2910, 0.2
        %v2959 = vmul.f32 %v2915, 0.2
        %v2960 = vmul.f32 %v2920, 0.2
        %v2961 = vmul.f32 %v2925, 0.2
        %v2962 = vmul.f32 %v2930, 0.2
        %v2963 = vmul.f32 %v2935, 0.2
        %v2964 = vsel %vm2938, %v2875, %v2951
        %v2965 = vsel %vm2939, %v2880, %v2952
        %v2966 = vsel %vm2940, %v2885, %v2953
        %v2967 = vsel %vm2941, %v2890, %v2954
        %v2968 = vsel %vm2942, %v2895, %v2955
        %v2969 = vsel %vm2943, %v2900, %v2956
        %v2970 = vsel %vm2944, %v2905, %v2957
        %v2971 = vsel %vm2945, %v2910, %v2958
        %v2972 = vsel %vm2946, %v2915, %v2959
        %v2973 = vsel %vm2947, %v2920, %v2960
        %v2974 = vsel %vm2948, %v2925, %v2961
        %v2975 = vsel %vm2949, %v2930, %v2962
        %v2976 = vsel %vm2950, %v2935, %v2963
        %s2977 = scalar_lea.vmem [#allocation2], 336
        %v2978 = vld [vmem:[%s2977] sm:$0xff]
        %v2979 = vld [vmem:[%s2977 + $0x8] sm:$0xff]
        %v2980 = vld [vmem:[%s2977 + $0x10] sm:$0xff]
        %v2981 = vld [vmem:[%s2977 + $0x18] sm:$0xff]
        %v2982 = vld [vmem:[%s2977 + $0x20] sm:$0xff]
        %v2983 = vld [vmem:[%s2977 + $0x28] sm:$0xff]
        %s2984 = scalar_lea.vmem %s3, 10
        %v2985 = vld [vmem:[%s2984] sm:$0x1]
        %v2987 = vlaneseq
        %v2988 = vshrl.u32 %v2987, 7
        %v2989 = vsub.s32 0, %v2988
        %v2990 = vrot.slane %v2985, %v2989
        %v2993 = vsel %vm473, %v2964, 0
        %v2996 = vsel %vm473, %v2965, 0
        %v2999 = vsel %vm473, %v2966, 0
        %v3002 = vsel %vm473, %v2967, 0
        %v3005 = vsel %vm473, %v2968, 0
        %v3008 = vsel %vm473, %v2969, 0
        %v3011 = vsel %vm473, %v2970, 0
        %v3014 = vsel %vm473, %v2971, 0
        %v3017 = vsel %vm473, %v2972, 0
        %v3020 = vsel %vm473, %v2973, 0
        %v3023 = vsel %vm473, %v2974, 0
        %v3026 = vsel %vm473, %v2975, 0
        %v3029 = vsel %vm473, %v2976, 0
        %3031 = vmatprep.subr.mxu0 0.0
        %3032 = vmatpush1.msra.mxu0 %v2978
        %3033 = vmatprep.subr.mxu0 0.0
        %3034 = vmatpush1.msra.mxu0 %v2979
        %3035 = vmatprep.subr.mxu0 0.0
        %3036 = vmatpush1.msra.mxu0 %v2980
        %3037 = vmatprep.subr.mxu0 0.0
        %3038 = vmatpush1.msra.mxu0 %v2981
        %3039 = vmatprep.subr.mxu0 0.0
        %3040 = vmatpush1.msra.mxu0 %v2982
        %3041 = vmatprep.subr.mxu0 0.0
        %3042 = vmatpush1.msra.mxu0 %v2983
        %3043 = vmatprep.subr.mxu0 0.0
        %3044 = vmatpush1.msra.mxu0 0.0
        %3045 = vmatprep.subr.mxu0 0.0
        %3046 = vmatpush1.msra.mxu0 0.0
        %3047 = vmatprep.subr.mxu0 0.0
        %3048 = vmatpush1.msra.mxu0 0.0
        %3049 = vmatprep.subr.mxu0 0.0
        %3050 = vmatpush1.msra.mxu0 0.0
        %3051 = vmatprep.subr.mxu0 0.0
        %3052 = vmatpush1.msra.mxu0 0.0
        %3053 = vmatprep.subr.mxu0 0.0
        %3054 = vmatpush1.msra.mxu0 0.0
        %3055 = vmatprep.subr.mxu0 0.0
        %3056 = vmatpush1.msra.mxu0 0.0
        %3057 = vmatprep.subr.mxu0 0.0
        %3058 = vmatpush1.msra.mxu0 0.0
        %3059 = vmatprep.subr.mxu0 0.0
        %3060 = vmatpush1.msra.mxu0 0.0
        %3061 = vmatprep.subr.mxu0 0.0
        %3062 = vmatpush1.msra.mxu0 0.0
        %3063 = vmatprep.subr.mxu0 0.0
        %3064 = vmatpush1.msra.mxu0 0.0
        %3065 = vmatprep.subr.mxu0 0.0
        %3066 = vmatpush1.msra.mxu0 0.0
        %3067 = vmatprep.subr.mxu0 0.0
        %3068 = vmatpush1.msra.mxu0 0.0
        %3069 = vmatprep.subr.mxu0 0.0
        %3070 = vmatpush1.msra.mxu0 0.0
        %3071 = vmatprep.subr.mxu0 0.0
        %3072 = vmatpush1.msra.mxu0 0.0
        %3073 = vmatprep.subr.mxu0 0.0
        %3074 = vmatpush1.msra.mxu0 0.0
        %3075 = vmatprep.subr.mxu0 0.0
        %3076 = vmatpush1.msra.mxu0 0.0
        %3077 = vmatprep.subr.mxu0 0.0
        %3078 = vmatpush1.msra.mxu0 0.0
        %3079 = vmatprep.subr.mxu0 0.0
        %3080 = vmatpush1.msra.mxu0 0.0
        %3081 = vmatprep.subr.mxu0 0.0
        %3082 = vmatpush1.msra.mxu0 0.0
        %3083 = vmatprep.subr.mxu0 0.0
        %3084 = vmatpush1.msra.mxu0 0.0
        %3085 = vmatprep.subr.mxu0 0.0
        %3086 = vmatpush1.msra.mxu0 0.0
        %3087 = vmatprep.subr.mxu0 0.0
        %3088 = vmatpush1.msra.mxu0 0.0
        %3089 = vmatprep.subr.mxu0 0.0
        %3090 = vmatpush1.msra.mxu0 0.0
        %3091 = vmatprep.subr.mxu0 0.0
        %3092 = vmatpush1.msra.mxu0 0.0
        %3093 = vmatprep.subr.mxu0 0.0
        %3094 = vmatpush1.msra.mxu0 0.0
        %3095 = vmatprep.mubr.f32.mxu0 0.0
        %3096 = vmatmul.mubr.f32.gmra.mrb[0].mxu0 %v2993
        %v3097 = vpop.f32.mrb[0].mxu0
        %v3098 = vadd.f32 %v2990, %v3097
        %v3099 = vpop.f32.mrb[0].mxu0
        %3100 = vmatprep.mubr.f32.mxu0 0.0
        %3101 = vmatmul.mubr.f32.gmra.mrb[0].mxu0 %v2996
        %v3102 = vpop.f32.mrb[0].mxu0
        %v3103 = vadd.f32 %v2990, %v3102
        %v3104 = vpop.f32.mrb[0].mxu0
        %3105 = vmatprep.mubr.f32.mxu0 0.0
        %3106 = vmatmul.mubr.f32.gmra.mrb[0].mxu0 %v2999
        %v3107 = vpop.f32.mrb[0].mxu0
        %v3108 = vadd.f32 %v2990, %v3107
        %v3109 = vpop.f32.mrb[0].mxu0
        %3110 = vmatprep.mubr.f32.mxu0 0.0
        %3111 = vmatmul.mubr.f32.gmra.mrb[0].mxu0 %v3002
        %v3112 = vpop.f32.mrb[0].mxu0
        %v3113 = vadd.f32 %v2990, %v3112
        %v3114 = vpop.f32.mrb[0].mxu0
        %3115 = vmatprep.mubr.f32.mxu0 0.0
        %3116 = vmatmul.mubr.f32.gmra.mrb[0].mxu0 %v3005
        %v3117 = vpop.f32.mrb[0].mxu0
        %v3118 = vadd.f32 %v2990, %v3117
        %v3119 = vpop.f32.mrb[0].mxu0
        %3120 = vmatprep.mubr.f32.mxu0 0.0
        %3121 = vmatmul.mubr.f32.gmra.mrb[0].mxu0 %v3008
        %v3122 = vpop.f32.mrb[0].mxu0
        %v3123 = vadd.f32 %v2990, %v3122
        %v3124 = vpop.f32.mrb[0].mxu0
        %3125 = vmatprep.mubr.f32.mxu0 0.0
        %3126 = vmatmul.mubr.f32.gmra.mrb[0].mxu0 %v3011
        %v3127 = vpop.f32.mrb[0].mxu0
        %v3128 = vadd.f32 %v2990, %v3127
        %v3129 = vpop.f32.mrb[0].mxu0
        %3130 = vmatprep.mubr.f32.mxu0 0.0
        %3131 = vmatmul.mubr.f32.gmra.mrb[0].mxu0 %v3014
        %v3132 = vpop.f32.mrb[0].mxu0
        %v3133 = vadd.f32 %v2990, %v3132
        %v3134 = vpop.f32.mrb[0].mxu0
        %3135 = vmatprep.mubr.f32.mxu0 0.0
        %3136 = vmatmul.mubr.f32.gmra.mrb[0].mxu0 %v3017
        %v3137 = vpop.f32.mrb[0].mxu0
        %v3138 = vadd.f32 %v2990, %v3137
        %v3139 = vpop.f32.mrb[0].mxu0
        %3140 = vmatprep.mubr.f32.mxu0 0.0
        %3141 = vmatmul.mubr.f32.gmra.mrb[0].mxu0 %v3020
        %v3142 = vpop.f32.mrb[0].mxu0
        %v3143 = vadd.f32 %v2990, %v3142
        %v3144 = vpop.f32.mrb[0].mxu0
        %3145 = vmatprep.mubr.f32.mxu0 0.0
        %3146 = vmatmul.mubr.f32.gmra.mrb[0].mxu0 %v3023
        %v3147 = vpop.f32.mrb[0].mxu0
        %v3148 = vadd.f32 %v2990, %v3147
        %v3149 = vpop.f32.mrb[0].mxu0
        %3150 = vmatprep.mubr.f32.mxu0 0.0
        %3151 = vmatmul.mubr.f32.gmra.mrb[0].mxu0 %v3026
        %v3152 = vpop.f32.mrb[0].mxu0
        %v3153 = vadd.f32 %v2990, %v3152
        %v3154 = vpop.f32.mrb[0].mxu0
        %3155 = vmatprep.mubr.f32.mxu0 0.0
        %3156 = vmatmul.mubr.f32.gmra.mrb[0].mxu0 %v3029
        %v3157 = vpop.f32.mrb[0].mxu0
        %v3158 = vadd.f32 %v2990, %v3157
        %v3159 = vpop.f32.mrb[0].mxu0
        %3160 = vdwg.mxu0
        %vm3161 = vcmp.gt.f32.partialorder %v3098, 0.0
        %vm3162 = vcmp.gt.f32.partialorder %v3103, 0.0
        %vm3163 = vcmp.gt.f32.partialorder %v3108, 0.0
        %vm3164 = vcmp.gt.f32.partialorder %v3113, 0.0
        %vm3165 = vcmp.gt.f32.partialorder %v3118, 0.0
        %vm3166 = vcmp.gt.f32.partialorder %v3123, 0.0
        %vm3167 = vcmp.gt.f32.partialorder %v3128, 0.0
        %vm3168 = vcmp.gt.f32.partialorder %v3133, 0.0
        %vm3169 = vcmp.gt.f32.partialorder %v3138, 0.0
        %vm3170 = vcmp.gt.f32.partialorder %v3143, 0.0
        %vm3171 = vcmp.gt.f32.partialorder %v3148, 0.0
        %vm3172 = vcmp.gt.f32.partialorder %v3153, 0.0
        %vm3173 = vcmp.gt.f32.partialorder %v3158, 0.0
        %v3174 = vmul.f32 %v3098, 0.2
        %v3175 = vmul.f32 %v3103, 0.2
        %v3176 = vmul.f32 %v3108, 0.2
        %v3177 = vmul.f32 %v3113, 0.2
        %v3178 = vmul.f32 %v3118, 0.2
        %v3179 = vmul.f32 %v3123, 0.2
        %v3180 = vmul.f32 %v3128, 0.2
        %v3181 = vmul.f32 %v3133, 0.2
        %v3182 = vmul.f32 %v3138, 0.2
        %v3183 = vmul.f32 %v3143, 0.2
        %v3184 = vmul.f32 %v3148, 0.2
        %v3185 = vmul.f32 %v3153, 0.2
        %v3186 = vmul.f32 %v3158, 0.2
        %v3187 = vsel %vm3161, %v3098, %v3174
        %v3188 = vsel %vm3162, %v3103, %v3175
        %v3189 = vsel %vm3163, %v3108, %v3176
        %v3190 = vsel %vm3164, %v3113, %v3177
        %v3191 = vsel %vm3165, %v3118, %v3178
        %v3192 = vsel %vm3166, %v3123, %v3179
        %v3193 = vsel %vm3167, %v3128, %v3180
        %v3194 = vsel %vm3168, %v3133, %v3181
        %v3195 = vsel %vm3169, %v3138, %v3182
        %v3196 = vsel %vm3170, %v3143, %v3183
        %v3197 = vsel %vm3171, %v3148, %v3184
        %v3198 = vsel %vm3172, %v3153, %v3185
        %v3199 = vsel %vm3173, %v3158, %v3186
        %s3200 = scalar_lea.vmem [#allocation2], 384
        %v3201 = vld [vmem:[%s3200] sm:$0xff]
        %v3202 = vld [vmem:[%s3200 + $0x8] sm:$0xff]
        %v3203 = vld [vmem:[%s3200 + $0x10] sm:$0xff]
        %v3204 = vld [vmem:[%s3200 + $0x18] sm:$0xff]
        %v3205 = vld [vmem:[%s3200 + $0x20] sm:$0xff]
        %v3206 = vld [vmem:[%s3200 + $0x28] sm:$0xff]
        %s3207 = scalar_lea.vmem %s3, 11
        %v3208 = vld [vmem:[%s3207] sm:$0x1]
        %v3210 = vlaneseq
        %v3211 = vshrl.u32 %v3210, 7
        %v3212 = vsub.s32 0, %v3211
        %v3213 = vrot.slane %v3208, %v3212
        %v3216 = vsel %vm473, %v3187, 0
        %v3219 = vsel %vm473, %v3188, 0
        %v3222 = vsel %vm473, %v3189, 0
        %v3225 = vsel %vm473, %v3190, 0
        %v3228 = vsel %vm473, %v3191, 0
        %v3231 = vsel %vm473, %v3192, 0
        %v3234 = vsel %vm473, %v3193, 0
        %v3237 = vsel %vm473, %v3194, 0
        %v3240 = vsel %vm473, %v3195, 0
        %v3243 = vsel %vm473, %v3196, 0
        %v3246 = vsel %vm473, %v3197, 0
        %v3249 = vsel %vm473, %v3198, 0
        %v3252 = vsel %vm473, %v3199, 0
        %3254 = vmatprep.subr.mxu0 0.0
        %3255 = vmatpush1.msra.mxu0 %v3201
        %3256 = vmatprep.subr.mxu0 0.0
        %3257 = vmatpush1.msra.mxu0 %v3202
        %3258 = vmatprep.subr.mxu0 0.0
        %3259 = vmatpush1.msra.mxu0 %v3203
        %3260 = vmatprep.subr.mxu0 0.0
        %3261 = vmatpush1.msra.mxu0 %v3204
        %3262 = vmatprep.subr.mxu0 0.0
        %3263 = vmatpush1.msra.mxu0 %v3205
        %3264 = vmatprep.subr.mxu0 0.0
        %3265 = vmatpush1.msra.mxu0 %v3206
        %3266 = vmatprep.subr.mxu0 0.0
        %3267 = vmatpush1.msra.mxu0 0.0
        %3268 = vmatprep.subr.mxu0 0.0
        %3269 = vmatpush1.msra.mxu0 0.0
        %3270 = vmatprep.subr.mxu0 0.0
        %3271 = vmatpush1.msra.mxu0 0.0
        %3272 = vmatprep.subr.mxu0 0.0
        %3273 = vmatpush1.msra.mxu0 0.0
        %3274 = vmatprep.subr.mxu0 0.0
        %3275 = vmatpush1.msra.mxu0 0.0
        %3276 = vmatprep.subr.mxu0 0.0
        %3277 = vmatpush1.msra.mxu0 0.0
        %3278 = vmatprep.subr.mxu0 0.0
        %3279 = vmatpush1.msra.mxu0 0.0
        %3280 = vmatprep.subr.mxu0 0.0
        %3281 = vmatpush1.msra.mxu0 0.0
        %3282 = vmatprep.subr.mxu0 0.0
        %3283 = vmatpush1.msra.mxu0 0.0
        %3284 = vmatprep.subr.mxu0 0.0
        %3285 = vmatpush1.msra.mxu0 0.0
        %3286 = vmatprep.subr.mxu0 0.0
        %3287 = vmatpush1.msra.mxu0 0.0
        %3288 = vmatprep.subr.mxu0 0.0
        %3289 = vmatpush1.msra.mxu0 0.0
        %3290 = vmatprep.subr.mxu0 0.0
        %3291 = vmatpush1.msra.mxu0 0.0
        %3292 = vmatprep.subr.mxu0 0.0
        %3293 = vmatpush1.msra.mxu0 0.0
        %3294 = vmatprep.subr.mxu0 0.0
        %3295 = vmatpush1.msra.mxu0 0.0
        %3296 = vmatprep.subr.mxu0 0.0
        %3297 = vmatpush1.msra.mxu0 0.0
        %3298 = vmatprep.subr.mxu0 0.0
        %3299 = vmatpush1.msra.mxu0 0.0
        %3300 = vmatprep.subr.mxu0 0.0
        %3301 = vmatpush1.msra.mxu0 0.0
        %3302 = vmatprep.subr.mxu0 0.0
        %3303 = vmatpush1.msra.mxu0 0.0
        %3304 = vmatprep.subr.mxu0 0.0
        %3305 = vmatpush1.msra.mxu0 0.0
        %3306 = vmatprep.subr.mxu0 0.0
        %3307 = vmatpush1.msra.mxu0 0.0
        %3308 = vmatprep.subr.mxu0 0.0
        %3309 = vmatpush1.msra.mxu0 0.0
        %3310 = vmatprep.subr.mxu0 0.0
        %3311 = vmatpush1.msra.mxu0 0.0
        %3312 = vmatprep.subr.mxu0 0.0
        %3313 = vmatpush1.msra.mxu0 0.0
        %3314 = vmatprep.subr.mxu0 0.0
        %3315 = vmatpush1.msra.mxu0 0.0
        %3316 = vmatprep.subr.mxu0 0.0
        %3317 = vmatpush1.msra.mxu0 0.0
        %3318 = vmatprep.mubr.f32.mxu0 0.0
        %3319 = vmatmul.mubr.f32.gmra.mrb[0].mxu0 %v3216
        %v3320 = vpop.f32.mrb[0].mxu0
        %v3321 = vadd.f32 %v3213, %v3320
        %v3322 = vpop.f32.mrb[0].mxu0
        %3323 = vmatprep.mubr.f32.mxu0 0.0
        %3324 = vmatmul.mubr.f32.gmra.mrb[0].mxu0 %v3219
        %v3325 = vpop.f32.mrb[0].mxu0
        %v3326 = vadd.f32 %v3213, %v3325
        %v3327 = vpop.f32.mrb[0].mxu0
        %3328 = vmatprep.mubr.f32.mxu0 0.0
        %3329 = vmatmul.mubr.f32.gmra.mrb[0].mxu0 %v3222
        %v3330 = vpop.f32.mrb[0].mxu0
        %v3331 = vadd.f32 %v3213, %v3330
        %v3332 = vpop.f32.mrb[0].mxu0
        %3333 = vmatprep.mubr.f32.mxu0 0.0
        %3334 = vmatmul.mubr.f32.gmra.mrb[0].mxu0 %v3225
        %v3335 = vpop.f32.mrb[0].mxu0
        %v3336 = vadd.f32 %v3213, %v3335
        %v3337 = vpop.f32.mrb[0].mxu0
        %3338 = vmatprep.mubr.f32.mxu0 0.0
        %3339 = vmatmul.mubr.f32.gmra.mrb[0].mxu0 %v3228
        %v3340 = vpop.f32.mrb[0].mxu0
        %v3341 = vadd.f32 %v3213, %v3340
        %v3342 = vpop.f32.mrb[0].mxu0
        %3343 = vmatprep.mubr.f32.mxu0 0.0
        %3344 = vmatmul.mubr.f32.gmra.mrb[0].mxu0 %v3231
        %v3345 = vpop.f32.mrb[0].mxu0
        %v3346 = vadd.f32 %v3213, %v3345
        %v3347 = vpop.f32.mrb[0].mxu0
        %3348 = vmatprep.mubr.f32.mxu0 0.0
        %3349 = vmatmul.mubr.f32.gmra.mrb[0].mxu0 %v3234
        %v3350 = vpop.f32.mrb[0].mxu0
        %v3351 = vadd.f32 %v3213, %v3350
        %v3352 = vpop.f32.mrb[0].mxu0
        %3353 = vmatprep.mubr.f32.mxu0 0.0
        %3354 = vmatmul.mubr.f32.gmra.mrb[0].mxu0 %v3237
        %v3355 = vpop.f32.mrb[0].mxu0
        %v3356 = vadd.f32 %v3213, %v3355
        %v3357 = vpop.f32.mrb[0].mxu0
        %3358 = vmatprep.mubr.f32.mxu0 0.0
        %3359 = vmatmul.mubr.f32.gmra.mrb[0].mxu0 %v3240
        %v3360 = vpop.f32.mrb[0].mxu0
        %v3361 = vadd.f32 %v3213, %v3360
        %v3362 = vpop.f32.mrb[0].mxu0
        %3363 = vmatprep.mubr.f32.mxu0 0.0
        %3364 = vmatmul.mubr.f32.gmra.mrb[0].mxu0 %v3243
        %v3365 = vpop.f32.mrb[0].mxu0
        %v3366 = vadd.f32 %v3213, %v3365
        %v3367 = vpop.f32.mrb[0].mxu0
        %3368 = vmatprep.mubr.f32.mxu0 0.0
        %3369 = vmatmul.mubr.f32.gmra.mrb[0].mxu0 %v3246
        %v3370 = vpop.f32.mrb[0].mxu0
        %v3371 = vadd.f32 %v3213, %v3370
        %v3372 = vpop.f32.mrb[0].mxu0
        %3373 = vmatprep.mubr.f32.mxu0 0.0
        %3374 = vmatmul.mubr.f32.gmra.mrb[0].mxu0 %v3249
        %v3375 = vpop.f32.mrb[0].mxu0
        %v3376 = vadd.f32 %v3213, %v3375
        %v3377 = vpop.f32.mrb[0].mxu0
        %3378 = vmatprep.mubr.f32.mxu0 0.0
        %3379 = vmatmul.mubr.f32.gmra.mrb[0].mxu0 %v3252
        %v3380 = vpop.f32.mrb[0].mxu0
        %v3381 = vadd.f32 %v3213, %v3380
        %v3382 = vpop.f32.mrb[0].mxu0
        %3383 = vdwg.mxu0
        %v3384 = vmul.f32 %v3321, 1.442695
        %v3385 = vpow.pop %v3384
        %v3386 = vmul.f32 %v3326, 1.442695
        %v3387 = vpow.pop %v3386
        %v3388 = vmul.f32 %v3331, 1.442695
        %v3389 = vpow.pop %v3388
        %v3390 = vmul.f32 %v3336, 1.442695
        %v3391 = vpow.pop %v3390
        %v3392 = vmul.f32 %v3341, 1.442695
        %v3393 = vpow.pop %v3392
        %v3394 = vmul.f32 %v3346, 1.442695
        %v3395 = vpow.pop %v3394
        %v3396 = vmul.f32 %v3351, 1.442695
        %v3397 = vpow.pop %v3396
        %v3398 = vmul.f32 %v3356, 1.442695
        %v3399 = vpow.pop %v3398
        %v3400 = vmul.f32 %v3361, 1.442695
        %v3401 = vpow.pop %v3400
        %v3402 = vmul.f32 %v3366, 1.442695
        %v3403 = vpow.pop %v3402
        %v3404 = vmul.f32 %v3371, 1.442695
        %v3405 = vpow.pop %v3404
        %v3406 = vmul.f32 %v3376, 1.442695
        %v3407 = vpow.pop %v3406
        %v3408 = vmul.f32 %v3381, 1.442695
        %v3409 = vpow.pop %v3408
        %3423 = vrot.lane.b32.xlu0 %v2631, 76
        %v3424 = vpop.permute.xlu0 %3423
        %3425 = vrot.lane.b32.xlu0 %v2636, 76
        %v3426 = vpop.permute.xlu0 %3425
        %3427 = vrot.lane.b32.xlu0 %v2641, 76
        %v3428 = vpop.permute.xlu0 %3427
        %3429 = vrot.lane.b32.xlu0 %v2646, 76
        %v3430 = vpop.permute.xlu0 %3429
        %3431 = vrot.lane.b32.xlu0 %v2651, 76
        %v3432 = vpop.permute.xlu0 %3431
        %3433 = vrot.lane.b32.xlu0 %v2656, 76
        %v3434 = vpop.permute.xlu0 %3433
        %3435 = vrot.lane.b32.xlu0 %v2661, 76
        %v3436 = vpop.permute.xlu0 %3435
        %3437 = vrot.lane.b32.xlu0 %v2666, 76
        %v3438 = vpop.permute.xlu0 %3437
        %3439 = vrot.lane.b32.xlu0 %v2671, 76
        %v3440 = vpop.permute.xlu0 %3439
        %3441 = vrot.lane.b32.xlu0 %v2676, 76
        %v3442 = vpop.permute.xlu0 %3441
        %3443 = vrot.lane.b32.xlu0 %v2681, 76
        %v3444 = vpop.permute.xlu0 %3443
        %3445 = vrot.lane.b32.xlu0 %v2686, 76
        %v3446 = vpop.permute.xlu0 %3445
        %3447 = vrot.lane.b32.xlu0 %v2691, 76
        %v3448 = vpop.permute.xlu0 %3447
        %v3462 = vmul.f32 %v3385, %v3424
        %v3463 = vmul.f32 %v3387, %v3426
        %v3464 = vmul.f32 %v3389, %v3428
        %v3465 = vmul.f32 %v3391, %v3430
        %v3466 = vmul.f32 %v3393, %v3432
        %v3467 = vmul.f32 %v3395, %v3434
        %v3468 = vmul.f32 %v3397, %v3436
        %v3469 = vmul.f32 %v3399, %v3438
        %v3470 = vmul.f32 %v3401, %v3440
        %v3471 = vmul.f32 %v3403, %v3442
        %v3472 = vmul.f32 %v3405, %v3444
        %v3473 = vmul.f32 %v3407, %v3446
        %v3474 = vmul.f32 %v3409, %v3448
        %3488 = vrot.lane.b32.xlu0 %v3321, 124
        %v3489 = vpop.permute.xlu0 %3488
        %3490 = vrot.lane.b32.xlu0 %v3326, 124
        %v3491 = vpop.permute.xlu0 %3490
        %3492 = vrot.lane.b32.xlu0 %v3331, 124
        %v3493 = vpop.permute.xlu0 %3492
        %3494 = vrot.lane.b32.xlu0 %v3336, 124
        %v3495 = vpop.permute.xlu0 %3494
        %3496 = vrot.lane.b32.xlu0 %v3341, 124
        %v3497 = vpop.permute.xlu0 %3496
        %3498 = vrot.lane.b32.xlu0 %v3346, 124
        %v3499 = vpop.permute.xlu0 %3498
        %3500 = vrot.lane.b32.xlu0 %v3351, 124
        %v3501 = vpop.permute.xlu0 %3500
        %3502 = vrot.lane.b32.xlu0 %v3356, 124
        %v3503 = vpop.permute.xlu0 %3502
        %3504 = vrot.lane.b32.xlu0 %v3361, 124
        %v3505 = vpop.permute.xlu0 %3504
        %3506 = vrot.lane.b32.xlu0 %v3366, 124
        %v3507 = vpop.permute.xlu0 %3506
        %3508 = vrot.lane.b32.xlu0 %v3371, 124
        %v3509 = vpop.permute.xlu0 %3508
        %3510 = vrot.lane.b32.xlu0 %v3376, 124
        %v3511 = vpop.permute.xlu0 %3510
        %3512 = vrot.lane.b32.xlu0 %v3381, 124
        %v3513 = vpop.permute.xlu0 %3512
        %v3527 = vadd.f32 %v3462, %v3489
        %v3528 = vadd.f32 %v3463, %v3491
        %v3529 = vadd.f32 %v3464, %v3493
        %v3530 = vadd.f32 %v3465, %v3495
        %v3531 = vadd.f32 %v3466, %v3497
        %v3532 = vadd.f32 %v3467, %v3499
        %v3533 = vadd.f32 %v3468, %v3501
        %v3534 = vadd.f32 %v3469, %v3503
        %v3535 = vadd.f32 %v3470, %v3505
        %v3536 = vadd.f32 %v3471, %v3507
        %v3537 = vadd.f32 %v3472, %v3509
        %v3538 = vadd.f32 %v3473, %v3511
        %v3539 = vadd.f32 %v3474, %v3513
        %3540 = vrot.lane.b32.xlu0 %v2631, 80
        %v3541 = vpop.permute.xlu0 %3540
        %3542 = vrot.lane.b32.xlu0 %v2636, 80
        %v3543 = vpop.permute.xlu0 %3542
        %3544 = vrot.lane.b32.xlu0 %v2641, 80
        %v3545 = vpop.permute.xlu0 %3544
        %3546 = vrot.lane.b32.xlu0 %v2646, 80
        %v3547 = vpop.permute.xlu0 %3546
        %3548 = vrot.lane.b32.xlu0 %v2651, 80
        %v3549 = vpop.permute.xlu0 %3548
        %3550 = vrot.lane.b32.xlu0 %v2656, 80
        %v3551 = vpop.permute.xlu0 %3550
        %3552 = vrot.lane.b32.xlu0 %v2661, 80
        %v3553 = vpop.permute.xlu0 %3552
        %3554 = vrot.lane.b32.xlu0 %v2666, 80
        %v3555 = vpop.permute.xlu0 %3554
        %3556 = vrot.lane.b32.xlu0 %v2671, 80
        %v3557 = vpop.permute.xlu0 %3556
        %3558 = vrot.lane.b32.xlu0 %v2676, 80
        %v3559 = vpop.permute.xlu0 %3558
        %3560 = vrot.lane.b32.xlu0 %v2681, 80
        %v3561 = vpop.permute.xlu0 %3560
        %3562 = vrot.lane.b32.xlu0 %v2686, 80
        %v3563 = vpop.permute.xlu0 %3562
        %3564 = vrot.lane.b32.xlu0 %v2691, 80
        %v3565 = vpop.permute.xlu0 %3564
        %3592 = vrot.lane.b32.xlu0 %v3527, 4
        %v3593 = vpop.permute.xlu0 %3592
        %3594 = vrot.lane.b32.xlu0 %v3528, 4
        %v3595 = vpop.permute.xlu0 %3594
        %3596 = vrot.lane.b32.xlu0 %v3529, 4
        %v3597 = vpop.permute.xlu0 %3596
        %3598 = vrot.lane.b32.xlu0 %v3530, 4
        %v3599 = vpop.permute.xlu0 %3598
        %3600 = vrot.lane.b32.xlu0 %v3531, 4
        %v3601 = vpop.permute.xlu0 %3600
        %3602 = vrot.lane.b32.xlu0 %v3532, 4
        %v3603 = vpop.permute.xlu0 %3602
        %3604 = vrot.lane.b32.xlu0 %v3533, 4
        %v3605 = vpop.permute.xlu0 %3604
        %3606 = vrot.lane.b32.xlu0 %v3534, 4
        %v3607 = vpop.permute.xlu0 %3606
        %3608 = vrot.lane.b32.xlu0 %v3535, 4
        %v3609 = vpop.permute.xlu0 %3608
        %3610 = vrot.lane.b32.xlu0 %v3536, 4
        %v3611 = vpop.permute.xlu0 %3610
        %3612 = vrot.lane.b32.xlu0 %v3537, 4
        %v3613 = vpop.permute.xlu0 %3612
        %3614 = vrot.lane.b32.xlu0 %v3538, 4
        %v3615 = vpop.permute.xlu0 %3614
        %3616 = vrot.lane.b32.xlu0 %v3539, 4
        %v3617 = vpop.permute.xlu0 %3616
        %v3631 = vsel %vm1336, %v3541, %v3593
        %v3632 = vsel %vm1336, %v3543, %v3595
        %v3633 = vsel %vm1336, %v3545, %v3597
        %v3634 = vsel %vm1336, %v3547, %v3599
        %v3635 = vsel %vm1336, %v3549, %v3601
        %v3636 = vsel %vm1336, %v3551, %v3603
        %v3637 = vsel %vm1336, %v3553, %v3605
        %v3638 = vsel %vm1336, %v3555, %v3607
        %v3639 = vsel %vm1336, %v3557, %v3609
        %v3640 = vsel %vm1336, %v3559, %v3611
        %v3641 = vsel %vm1336, %v3561, %v3613
        %v3642 = vsel %vm1336, %v3563, %v3615
        %v3643 = vsel %vm1336, %v3565, %v3617
        %v3644 = vsel %vm1336, %v3321, 0.0
        %3645 = vadd.xlane.f32.xlu0 %v3644
        %v3646 = vpop.xlane.xlu0 %3645
        %v3647 = vsel %vm1336, %v3326, 0.0
        %3648 = vadd.xlane.f32.xlu0 %v3647
        %v3649 = vpop.xlane.xlu0 %3648
        %v3650 = vsel %vm1336, %v3331, 0.0
        %3651 = vadd.xlane.f32.xlu0 %v3650
        %v3652 = vpop.xlane.xlu0 %3651
        %v3653 = vsel %vm1336, %v3336, 0.0
        %3654 = vadd.xlane.f32.xlu0 %v3653
        %v3655 = vpop.xlane.xlu0 %3654
        %v3656 = vsel %vm1336, %v3341, 0.0
        %3657 = vadd.xlane.f32.xlu0 %v3656
        %v3658 = vpop.xlane.xlu0 %3657
        %v3659 = vsel %vm1336, %v3346, 0.0
        %3660 = vadd.xlane.f32.xlu0 %v3659
        %v3661 = vpop.xlane.xlu0 %3660
        %v3662 = vsel %vm1336, %v3351, 0.0
        %3663 = vadd.xlane.f32.xlu0 %v3662
        %v3664 = vpop.xlane.xlu0 %3663
        %v3665 = vsel %vm1336, %v3356, 0.0
        %3666 = vadd.xlane.f32.xlu0 %v3665
        %v3667 = vpop.xlane.xlu0 %3666
        %v3668 = vsel %vm1336, %v3361, 0.0
        %3669 = vadd.xlane.f32.xlu0 %v3668
        %v3670 = vpop.xlane.xlu0 %3669
        %v3671 = vsel %vm1336, %v3366, 0.0
        %3672 = vadd.xlane.f32.xlu0 %v3671
        %v3673 = vpop.xlane.xlu0 %3672
        %v3674 = vsel %vm1336, %v3371, 0.0
        %3675 = vadd.xlane.f32.xlu0 %v3674
        %v3676 = vpop.xlane.xlu0 %3675
        %v3677 = vsel %vm1336, %v3376, 0.0
        %3678 = vadd.xlane.f32.xlu0 %v3677
        %v3679 = vpop.xlane.xlu0 %3678
        %v3680 = vsel %vm1336, %v3381, 0.0
        %3681 = vadd.xlane.f32.xlu0 %v3680
        %v3682 = vpop.xlane.xlu0 %3681
        %v3683 = vadd.f32 %v2510, %v3646
        %v3684 = vadd.f32 %v2511, %v3649
        %v3685 = vadd.f32 %v2512, %v3652
        %v3686 = vadd.f32 %v2513, %v3655
        %v3687 = vadd.f32 %v2514, %v3658
        %v3688 = vadd.f32 %v2515, %v3661
        %v3689 = vadd.f32 %v2516, %v3664
        %v3690 = vadd.f32 %v2517, %v3667
        %v3691 = vadd.f32 %v2518, %v3670
        %v3692 = vadd.f32 %v2519, %v3673
        %v3693 = vadd.f32 %v2520, %v3676
        %v3694 = vadd.f32 %v2521, %v3679
        %v3695 = vadd.f32 %v2522, %v3682
        %s3696 = scalar_lea.vmem %s1, 24
        %v3697 = vld [vmem:[%s3696] sm:$0xff]
        %v3699 = vsel %vm230, %v3631, 0
        %v3702 = vsel %vm230, %v3632, 0
        %v3705 = vsel %vm230, %v3633, 0
        %v3708 = vsel %vm230, %v3634, 0
        %v3711 = vsel %vm230, %v3635, 0
        %v3714 = vsel %vm230, %v3636, 0
        %v3717 = vsel %vm230, %v3637, 0
        %v3720 = vsel %vm230, %v3638, 0
        %v3723 = vsel %vm230, %v3639, 0
        %v3726 = vsel %vm230, %v3640, 0
        %v3729 = vsel %vm230, %v3641, 0
        %v3732 = vsel %vm230, %v3642, 0
        %v3735 = vsel %vm230, %v3643, 0
        %3737 = vmatprep.subr.mxu0 0.0
        %3738 = vmatpush1.msra.mxu0 %v3697
        %3739 = vmatprep.subr.mxu0 0.0
        %3740 = vmatpush1.msra.mxu0 0.0
        %3741 = vmatprep.subr.mxu0 0.0
        %3742 = vmatpush1.msra.mxu0 0.0
        %3743 = vmatprep.subr.mxu0 0.0
        %3744 = vmatpush1.msra.mxu0 0.0
        %3745 = vmatprep.subr.mxu0 0.0
        %3746 = vmatpush1.msra.mxu0 0.0
        %3747 = vmatprep.subr.mxu0 0.0
        %3748 = vmatpush1.msra.mxu0 0.0
        %3749 = vmatprep.subr.mxu0 0.0
        %3750 = vmatpush1.msra.mxu0 0.0
        %3751 = vmatprep.subr.mxu0 0.0
        %3752 = vmatpush1.msra.mxu0 0.0
        %3753 = vmatprep.subr.mxu0 0.0
        %3754 = vmatpush1.msra.mxu0 0.0
        %3755 = vmatprep.subr.mxu0 0.0
        %3756 = vmatpush1.msra.mxu0 0.0
        %3757 = vmatprep.subr.mxu0 0.0
        %3758 = vmatpush1.msra.mxu0 0.0
        %3759 = vmatprep.subr.mxu0 0.0
        %3760 = vmatpush1.msra.mxu0 0.0
        %3761 = vmatprep.subr.mxu0 0.0
        %3762 = vmatpush1.msra.mxu0 0.0
        %3763 = vmatprep.subr.mxu0 0.0
        %3764 = vmatpush1.msra.mxu0 0.0
        %3765 = vmatprep.subr.mxu0 0.0
        %3766 = vmatpush1.msra.mxu0 0.0
        %3767 = vmatprep.subr.mxu0 0.0
        %3768 = vmatpush1.msra.mxu0 0.0
        %3769 = vmatprep.subr.mxu0 0.0
        %3770 = vmatpush1.msra.mxu0 0.0
        %3771 = vmatprep.subr.mxu0 0.0
        %3772 = vmatpush1.msra.mxu0 0.0
        %3773 = vmatprep.subr.mxu0 0.0
        %3774 = vmatpush1.msra.mxu0 0.0
        %3775 = vmatprep.subr.mxu0 0.0
        %3776 = vmatpush1.msra.mxu0 0.0
        %3777 = vmatprep.subr.mxu0 0.0
        %3778 = vmatpush1.msra.mxu0 0.0
        %3779 = vmatprep.subr.mxu0 0.0
        %3780 = vmatpush1.msra.mxu0 0.0
        %3781 = vmatprep.subr.mxu0 0.0
        %3782 = vmatpush1.msra.mxu0 0.0
        %3783 = vmatprep.subr.mxu0 0.0
        %3784 = vmatpush1.msra.mxu0 0.0
        %3785 = vmatprep.subr.mxu0 0.0
        %3786 = vmatpush1.msra.mxu0 0.0
        %3787 = vmatprep.subr.mxu0 0.0
        %3788 = vmatpush1.msra.mxu0 0.0
        %3789 = vmatprep.subr.mxu0 0.0
        %3790 = vmatpush1.msra.mxu0 0.0
        %3791 = vmatprep.subr.mxu0 0.0
        %3792 = vmatpush1.msra.mxu0 0.0
        %3793 = vmatprep.subr.mxu0 0.0
        %3794 = vmatpush1.msra.mxu0 0.0
        %3795 = vmatprep.subr.mxu0 0.0
        %3796 = vmatpush1.msra.mxu0 0.0
        %3797 = vmatprep.subr.mxu0 0.0
        %3798 = vmatpush1.msra.mxu0 0.0
        %3799 = vmatprep.subr.mxu0 0.0
        %3800 = vmatpush1.msra.mxu0 0.0
        %3801 = vmatprep.mubr.f32.mxu0 0.0
        %3802 = vmatmul.mubr.f32.gmra.mrb[0].mxu0 %v3699
        %v3803 = vpop.f32.mrb[0].mxu0
        %v3804 = vadd.f32 0.0, %v3803
        %v3805 = vpop.f32.mrb[0].mxu0
        %3806 = vmatprep.mubr.f32.mxu0 0.0
        %3807 = vmatmul.mubr.f32.gmra.mrb[0].mxu0 %v3702
        %v3808 = vpop.f32.mrb[0].mxu0
        %v3809 = vadd.f32 0.0, %v3808
        %v3810 = vpop.f32.mrb[0].mxu0
        %3811 = vmatprep.mubr.f32.mxu0 0.0
        %3812 = vmatmul.mubr.f32.gmra.mrb[0].mxu0 %v3705
        %v3813 = vpop.f32.mrb[0].mxu0
        %v3814 = vadd.f32 0.0, %v3813
        %v3815 = vpop.f32.mrb[0].mxu0
        %3816 = vmatprep.mubr.f32.mxu0 0.0
        %3817 = vmatmul.mubr.f32.gmra.mrb[0].mxu0 %v3708
        %v3818 = vpop.f32.mrb[0].mxu0
        %v3819 = vadd.f32 0.0, %v3818
        %v3820 = vpop.f32.mrb[0].mxu0
        %3821 = vmatprep.mubr.f32.mxu0 0.0
        %3822 = vmatmul.mubr.f32.gmra.mrb[0].mxu0 %v3711
        %v3823 = vpop.f32.mrb[0].mxu0
        %v3824 = vadd.f32 0.0, %v3823
        %v3825 = vpop.f32.mrb[0].mxu0
        %3826 = vmatprep.mubr.f32.mxu0 0.0
        %3827 = vmatmul.mubr.f32.gmra.mrb[0].mxu0 %v3714
        %v3828 = vpop.f32.mrb[0].mxu0
        %v3829 = vadd.f32 0.0, %v3828
        %v3830 = vpop.f32.mrb[0].mxu0
        %3831 = vmatprep.mubr.f32.mxu0 0.0
        %3832 = vmatmul.mubr.f32.gmra.mrb[0].mxu0 %v3717
        %v3833 = vpop.f32.mrb[0].mxu0
        %v3834 = vadd.f32 0.0, %v3833
        %v3835 = vpop.f32.mrb[0].mxu0
        %3836 = vmatprep.mubr.f32.mxu0 0.0
        %3837 = vmatmul.mubr.f32.gmra.mrb[0].mxu0 %v3720
        %v3838 = vpop.f32.mrb[0].mxu0
        %v3839 = vadd.f32 0.0, %v3838
        %v3840 = vpop.f32.mrb[0].mxu0
        %3841 = vmatprep.mubr.f32.mxu0 0.0
        %3842 = vmatmul.mubr.f32.gmra.mrb[0].mxu0 %v3723
        %v3843 = vpop.f32.mrb[0].mxu0
        %v3844 = vadd.f32 0.0, %v3843
        %v3845 = vpop.f32.mrb[0].mxu0
        %3846 = vmatprep.mubr.f32.mxu0 0.0
        %3847 = vmatmul.mubr.f32.gmra.mrb[0].mxu0 %v3726
        %v3848 = vpop.f32.mrb[0].mxu0
        %v3849 = vadd.f32 0.0, %v3848
        %v3850 = vpop.f32.mrb[0].mxu0
        %3851 = vmatprep.mubr.f32.mxu0 0.0
        %3852 = vmatmul.mubr.f32.gmra.mrb[0].mxu0 %v3729
        %v3853 = vpop.f32.mrb[0].mxu0
        %v3854 = vadd.f32 0.0, %v3853
        %v3855 = vpop.f32.mrb[0].mxu0
        %3856 = vmatprep.mubr.f32.mxu0 0.0
        %3857 = vmatmul.mubr.f32.gmra.mrb[0].mxu0 %v3732
        %v3858 = vpop.f32.mrb[0].mxu0
        %v3859 = vadd.f32 0.0, %v3858
        %v3860 = vpop.f32.mrb[0].mxu0
        %3861 = vmatprep.mubr.f32.mxu0 0.0
        %3862 = vmatmul.mubr.f32.gmra.mrb[0].mxu0 %v3735
        %v3863 = vpop.f32.mrb[0].mxu0
        %v3864 = vadd.f32 0.0, %v3863
        %v3865 = vpop.f32.mrb[0].mxu0
        %3866 = vdwg.mxu0
        %s3867 = scalar_lea.vmem %s3, 12
        %v3868 = vld [vmem:[%s3867] sm:$0x1]
        %v3870 = vlaneseq
        %v3871 = vshrl.u32 %v3870, 7
        %v3872 = vsub.s32 0, %v3871
        %v3873 = vrot.slane %v3868, %v3872
        %v3875 = vadd.f32 %v3804, %v3873
        %v3876 = vadd.f32 %v3809, %v3873
        %v3877 = vadd.f32 %v3814, %v3873
        %v3878 = vadd.f32 %v3819, %v3873
        %v3879 = vadd.f32 %v3824, %v3873
        %v3880 = vadd.f32 %v3829, %v3873
        %v3881 = vadd.f32 %v3834, %v3873
        %v3882 = vadd.f32 %v3839, %v3873
        %v3883 = vadd.f32 %v3844, %v3873
        %v3884 = vadd.f32 %v3849, %v3873
        %v3885 = vadd.f32 %v3854, %v3873
        %v3886 = vadd.f32 %v3859, %v3873
        %v3887 = vadd.f32 %v3864, %v3873
        %vm3888 = vcmp.gt.f32.partialorder %v3875, 0.0
        %vm3889 = vcmp.gt.f32.partialorder %v3876, 0.0
        %vm3890 = vcmp.gt.f32.partialorder %v3877, 0.0
        %vm3891 = vcmp.gt.f32.partialorder %v3878, 0.0
        %vm3892 = vcmp.gt.f32.partialorder %v3879, 0.0
        %vm3893 = vcmp.gt.f32.partialorder %v3880, 0.0
        %vm3894 = vcmp.gt.f32.partialorder %v3881, 0.0
        %vm3895 = vcmp.gt.f32.partialorder %v3882, 0.0
        %vm3896 = vcmp.gt.f32.partialorder %v3883, 0.0
        %vm3897 = vcmp.gt.f32.partialorder %v3884, 0.0
        %vm3898 = vcmp.gt.f32.partialorder %v3885, 0.0
        %vm3899 = vcmp.gt.f32.partialorder %v3886, 0.0
        %vm3900 = vcmp.gt.f32.partialorder %v3887, 0.0
        %v3901 = vmul.f32 %v3875, 0.2
        %v3902 = vmul.f32 %v3876, 0.2
        %v3903 = vmul.f32 %v3877, 0.2
        %v3904 = vmul.f32 %v3878, 0.2
        %v3905 = vmul.f32 %v3879, 0.2
        %v3906 = vmul.f32 %v3880, 0.2
        %v3907 = vmul.f32 %v3881, 0.2
        %v3908 = vmul.f32 %v3882, 0.2
        %v3909 = vmul.f32 %v3883, 0.2
        %v3910 = vmul.f32 %v3884, 0.2
        %v3911 = vmul.f32 %v3885, 0.2
        %v3912 = vmul.f32 %v3886, 0.2
        %v3913 = vmul.f32 %v3887, 0.2
        %v3914 = vsel %vm3888, %v3875, %v3901
        %v3915 = vsel %vm3889, %v3876, %v3902
        %v3916 = vsel %vm3890, %v3877, %v3903
        %v3917 = vsel %vm3891, %v3878, %v3904
        %v3918 = vsel %vm3892, %v3879, %v3905
        %v3919 = vsel %vm3893, %v3880, %v3906
        %v3920 = vsel %vm3894, %v3881, %v3907
        %v3921 = vsel %vm3895, %v3882, %v3908
        %v3922 = vsel %vm3896, %v3883, %v3909
        %v3923 = vsel %vm3897, %v3884, %v3910
        %v3924 = vsel %vm3898, %v3885, %v3911
        %v3925 = vsel %vm3899, %v3886, %v3912
        %v3926 = vsel %vm3900, %v3887, %v3913
        %s3927 = scalar_lea.vmem [#allocation2], 432
        %v3928 = vld [vmem:[%s3927] sm:$0xff]
        %v3929 = vld [vmem:[%s3927 + $0x8] sm:$0xff]
        %v3930 = vld [vmem:[%s3927 + $0x10] sm:$0xff]
        %v3931 = vld [vmem:[%s3927 + $0x18] sm:$0xff]
        %v3932 = vld [vmem:[%s3927 + $0x20] sm:$0xff]
        %v3933 = vld [vmem:[%s3927 + $0x28] sm:$0xff]
        %s3934 = scalar_lea.vmem %s3, 13
        %v3935 = vld [vmem:[%s3934] sm:$0x1]
        %v3937 = vlaneseq
        %v3938 = vshrl.u32 %v3937, 7
        %v3939 = vsub.s32 0, %v3938
        %v3940 = vrot.slane %v3935, %v3939
        %v3943 = vsel %vm473, %v3914, 0
        %v3946 = vsel %vm473, %v3915, 0
        %v3949 = vsel %vm473, %v3916, 0
        %v3952 = vsel %vm473, %v3917, 0
        %v3955 = vsel %vm473, %v3918, 0
        %v3958 = vsel %vm473, %v3919, 0
        %v3961 = vsel %vm473, %v3920, 0
        %v3964 = vsel %vm473, %v3921, 0
        %v3967 = vsel %vm473, %v3922, 0
        %v3970 = vsel %vm473, %v3923, 0
        %v3973 = vsel %vm473, %v3924, 0
        %v3976 = vsel %vm473, %v3925, 0
        %v3979 = vsel %vm473, %v3926, 0
        %3981 = vmatprep.subr.mxu0 0.0
        %3982 = vmatpush1.msra.mxu0 %v3928
        %3983 = vmatprep.subr.mxu0 0.0
        %3984 = vmatpush1.msra.mxu0 %v3929
        %3985 = vmatprep.subr.mxu0 0.0
        %3986 = vmatpush1.msra.mxu0 %v3930
        %3987 = vmatprep.subr.mxu0 0.0
        %3988 = vmatpush1.msra.mxu0 %v3931
        %3989 = vmatprep.subr.mxu0 0.0
        %3990 = vmatpush1.msra.mxu0 %v3932
        %3991 = vmatprep.subr.mxu0 0.0
        %3992 = vmatpush1.msra.mxu0 %v3933
        %3993 = vmatprep.subr.mxu0 0.0
        %3994 = vmatpush1.msra.mxu0 0.0
        %3995 = vmatprep.subr.mxu0 0.0
        %3996 = vmatpush1.msra.mxu0 0.0
        %3997 = vmatprep.subr.mxu0 0.0
        %3998 = vmatpush1.msra.mxu0 0.0
        %3999 = vmatprep.subr.mxu0 0.0
        %4000 = vmatpush1.msra.mxu0 0.0
        %4001 = vmatprep.subr.mxu0 0.0
        %4002 = vmatpush1.msra.mxu0 0.0
        %4003 = vmatprep.subr.mxu0 0.0
        %4004 = vmatpush1.msra.mxu0 0.0
        %4005 = vmatprep.subr.mxu0 0.0
        %4006 = vmatpush1.msra.mxu0 0.0
        %4007 = vmatprep.subr.mxu0 0.0
        %4008 = vmatpush1.msra.mxu0 0.0
        %4009 = vmatprep.subr.mxu0 0.0
        %4010 = vmatpush1.msra.mxu0 0.0
        %4011 = vmatprep.subr.mxu0 0.0
        %4012 = vmatpush1.msra.mxu0 0.0
        %4013 = vmatprep.subr.mxu0 0.0
        %4014 = vmatpush1.msra.mxu0 0.0
        %4015 = vmatprep.subr.mxu0 0.0
        %4016 = vmatpush1.msra.mxu0 0.0
        %4017 = vmatprep.subr.mxu0 0.0
        %4018 = vmatpush1.msra.mxu0 0.0
        %4019 = vmatprep.subr.mxu0 0.0
        %4020 = vmatpush1.msra.mxu0 0.0
        %4021 = vmatprep.subr.mxu0 0.0
        %4022 = vmatpush1.msra.mxu0 0.0
        %4023 = vmatprep.subr.mxu0 0.0
        %4024 = vmatpush1.msra.mxu0 0.0
        %4025 = vmatprep.subr.mxu0 0.0
        %4026 = vmatpush1.msra.mxu0 0.0
        %4027 = vmatprep.subr.mxu0 0.0
        %4028 = vmatpush1.msra.mxu0 0.0
        %4029 = vmatprep.subr.mxu0 0.0
        %4030 = vmatpush1.msra.mxu0 0.0
        %4031 = vmatprep.subr.mxu0 0.0
        %4032 = vmatpush1.msra.mxu0 0.0
        %4033 = vmatprep.subr.mxu0 0.0
        %4034 = vmatpush1.msra.mxu0 0.0
        %4035 = vmatprep.subr.mxu0 0.0
        %4036 = vmatpush1.msra.mxu0 0.0
        %4037 = vmatprep.subr.mxu0 0.0
        %4038 = vmatpush1.msra.mxu0 0.0
        %4039 = vmatprep.subr.mxu0 0.0
        %4040 = vmatpush1.msra.mxu0 0.0
        %4041 = vmatprep.subr.mxu0 0.0
        %4042 = vmatpush1.msra.mxu0 0.0
        %4043 = vmatprep.subr.mxu0 0.0
        %4044 = vmatpush1.msra.mxu0 0.0
        %4045 = vmatprep.mubr.f32.mxu0 0.0
        %4046 = vmatmul.mubr.f32.gmra.mrb[0].mxu0 %v3943
        %v4047 = vpop.f32.mrb[0].mxu0
        %v4048 = vadd.f32 %v3940, %v4047
        %v4049 = vpop.f32.mrb[0].mxu0
        %4050 = vmatprep.mubr.f32.mxu0 0.0
        %4051 = vmatmul.mubr.f32.gmra.mrb[0].mxu0 %v3946
        %v4052 = vpop.f32.mrb[0].mxu0
        %v4053 = vadd.f32 %v3940, %v4052
        %v4054 = vpop.f32.mrb[0].mxu0
        %4055 = vmatprep.mubr.f32.mxu0 0.0
        %4056 = vmatmul.mubr.f32.gmra.mrb[0].mxu0 %v3949
        %v4057 = vpop.f32.mrb[0].mxu0
        %v4058 = vadd.f32 %v3940, %v4057
        %v4059 = vpop.f32.mrb[0].mxu0
        %4060 = vmatprep.mubr.f32.mxu0 0.0
        %4061 = vmatmul.mubr.f32.gmra.mrb[0].mxu0 %v3952
        %v4062 = vpop.f32.mrb[0].mxu0
        %v4063 = vadd.f32 %v3940, %v4062
        %v4064 = vpop.f32.mrb[0].mxu0
        %4065 = vmatprep.mubr.f32.mxu0 0.0
        %4066 = vmatmul.mubr.f32.gmra.mrb[0].mxu0 %v3955
        %v4067 = vpop.f32.mrb[0].mxu0
        %v4068 = vadd.f32 %v3940, %v4067
        %v4069 = vpop.f32.mrb[0].mxu0
        %4070 = vmatprep.mubr.f32.mxu0 0.0
        %4071 = vmatmul.mubr.f32.gmra.mrb[0].mxu0 %v3958
        %v4072 = vpop.f32.mrb[0].mxu0
        %v4073 = vadd.f32 %v3940, %v4072
        %v4074 = vpop.f32.mrb[0].mxu0
        %4075 = vmatprep.mubr.f32.mxu0 0.0
        %4076 = vmatmul.mubr.f32.gmra.mrb[0].mxu0 %v3961
        %v4077 = vpop.f32.mrb[0].mxu0
        %v4078 = vadd.f32 %v3940, %v4077
        %v4079 = vpop.f32.mrb[0].mxu0
        %4080 = vmatprep.mubr.f32.mxu0 0.0
        %4081 = vmatmul.mubr.f32.gmra.mrb[0].mxu0 %v3964
        %v4082 = vpop.f32.mrb[0].mxu0
        %v4083 = vadd.f32 %v3940, %v4082
        %v4084 = vpop.f32.mrb[0].mxu0
        %4085 = vmatprep.mubr.f32.mxu0 0.0
        %4086 = vmatmul.mubr.f32.gmra.mrb[0].mxu0 %v3967
        %v4087 = vpop.f32.mrb[0].mxu0
        %v4088 = vadd.f32 %v3940, %v4087
        %v4089 = vpop.f32.mrb[0].mxu0
        %4090 = vmatprep.mubr.f32.mxu0 0.0
        %4091 = vmatmul.mubr.f32.gmra.mrb[0].mxu0 %v3970
        %v4092 = vpop.f32.mrb[0].mxu0
        %v4093 = vadd.f32 %v3940, %v4092
        %v4094 = vpop.f32.mrb[0].mxu0
        %4095 = vmatprep.mubr.f32.mxu0 0.0
        %4096 = vmatmul.mubr.f32.gmra.mrb[0].mxu0 %v3973
        %v4097 = vpop.f32.mrb[0].mxu0
        %v4098 = vadd.f32 %v3940, %v4097
        %v4099 = vpop.f32.mrb[0].mxu0
        %4100 = vmatprep.mubr.f32.mxu0 0.0
        %4101 = vmatmul.mubr.f32.gmra.mrb[0].mxu0 %v3976
        %v4102 = vpop.f32.mrb[0].mxu0
        %v4103 = vadd.f32 %v3940, %v4102
        %v4104 = vpop.f32.mrb[0].mxu0
        %4105 = vmatprep.mubr.f32.mxu0 0.0
        %4106 = vmatmul.mubr.f32.gmra.mrb[0].mxu0 %v3979
        %v4107 = vpop.f32.mrb[0].mxu0
        %v4108 = vadd.f32 %v3940, %v4107
        %v4109 = vpop.f32.mrb[0].mxu0
        %4110 = vdwg.mxu0
        %vm4111 = vcmp.gt.f32.partialorder %v4048, 0.0
        %vm4112 = vcmp.gt.f32.partialorder %v4053, 0.0
        %vm4113 = vcmp.gt.f32.partialorder %v4058, 0.0
        %vm4114 = vcmp.gt.f32.partialorder %v4063, 0.0
        %vm4115 = vcmp.gt.f32.partialorder %v4068, 0.0
        %vm4116 = vcmp.gt.f32.partialorder %v4073, 0.0
        %vm4117 = vcmp.gt.f32.partialorder %v4078, 0.0
        %vm4118 = vcmp.gt.f32.partialorder %v4083, 0.0
        %vm4119 = vcmp.gt.f32.partialorder %v4088, 0.0
        %vm4120 = vcmp.gt.f32.partialorder %v4093, 0.0
        %vm4121 = vcmp.gt.f32.partialorder %v4098, 0.0
        %vm4122 = vcmp.gt.f32.partialorder %v4103, 0.0
        %vm4123 = vcmp.gt.f32.partialorder %v4108, 0.0
        %v4124 = vmul.f32 %v4048, 0.2
        %v4125 = vmul.f32 %v4053, 0.2
        %v4126 = vmul.f32 %v4058, 0.2
        %v4127 = vmul.f32 %v4063, 0.2
        %v4128 = vmul.f32 %v4068, 0.2
        %v4129 = vmul.f32 %v4073, 0.2
        %v4130 = vmul.f32 %v4078, 0.2
        %v4131 = vmul.f32 %v4083, 0.2
        %v4132 = vmul.f32 %v4088, 0.2
        %v4133 = vmul.f32 %v4093, 0.2
        %v4134 = vmul.f32 %v4098, 0.2
        %v4135 = vmul.f32 %v4103, 0.2
        %v4136 = vmul.f32 %v4108, 0.2
        %v4137 = vsel %vm4111, %v4048, %v4124
        %v4138 = vsel %vm4112, %v4053, %v4125
        %v4139 = vsel %vm4113, %v4058, %v4126
        %v4140 = vsel %vm4114, %v4063, %v4127
        %v4141 = vsel %vm4115, %v4068, %v4128
        %v4142 = vsel %vm4116, %v4073, %v4129
        %v4143 = vsel %vm4117, %v4078, %v4130
        %v4144 = vsel %vm4118, %v4083, %v4131
        %v4145 = vsel %vm4119, %v4088, %v4132
        %v4146 = vsel %vm4120, %v4093, %v4133
        %v4147 = vsel %vm4121, %v4098, %v4134
        %v4148 = vsel %vm4122, %v4103, %v4135
        %v4149 = vsel %vm4123, %v4108, %v4136
        %s4150 = scalar_lea.vmem [#allocation2], 480
        %v4151 = vld [vmem:[%s4150] sm:$0xff]
        %v4152 = vld [vmem:[%s4150 + $0x8] sm:$0xff]
        %v4153 = vld [vmem:[%s4150 + $0x10] sm:$0xff]
        %v4154 = vld [vmem:[%s4150 + $0x18] sm:$0xff]
        %v4155 = vld [vmem:[%s4150 + $0x20] sm:$0xff]
        %v4156 = vld [vmem:[%s4150 + $0x28] sm:$0xff]
        %s4157 = scalar_lea.vmem %s3, 14
        %v4158 = vld [vmem:[%s4157] sm:$0x1]
        %v4160 = vlaneseq
        %v4161 = vshrl.u32 %v4160, 7
        %v4162 = vsub.s32 0, %v4161
        %v4163 = vrot.slane %v4158, %v4162
        %v4166 = vsel %vm473, %v4137, 0
        %v4169 = vsel %vm473, %v4138, 0
        %v4172 = vsel %vm473, %v4139, 0
        %v4175 = vsel %vm473, %v4140, 0
        %v4178 = vsel %vm473, %v4141, 0
        %v4181 = vsel %vm473, %v4142, 0
        %v4184 = vsel %vm473, %v4143, 0
        %v4187 = vsel %vm473, %v4144, 0
        %v4190 = vsel %vm473, %v4145, 0
        %v4193 = vsel %vm473, %v4146, 0
        %v4196 = vsel %vm473, %v4147, 0
        %v4199 = vsel %vm473, %v4148, 0
        %v4202 = vsel %vm473, %v4149, 0
        %4204 = vmatprep.subr.mxu0 0.0
        %4205 = vmatpush1.msra.mxu0 %v4151
        %4206 = vmatprep.subr.mxu0 0.0
        %4207 = vmatpush1.msra.mxu0 %v4152
        %4208 = vmatprep.subr.mxu0 0.0
        %4209 = vmatpush1.msra.mxu0 %v4153
        %4210 = vmatprep.subr.mxu0 0.0
        %4211 = vmatpush1.msra.mxu0 %v4154
        %4212 = vmatprep.subr.mxu0 0.0
        %4213 = vmatpush1.msra.mxu0 %v4155
        %4214 = vmatprep.subr.mxu0 0.0
        %4215 = vmatpush1.msra.mxu0 %v4156
        %4216 = vmatprep.subr.mxu0 0.0
        %4217 = vmatpush1.msra.mxu0 0.0
        %4218 = vmatprep.subr.mxu0 0.0
        %4219 = vmatpush1.msra.mxu0 0.0
        %4220 = vmatprep.subr.mxu0 0.0
        %4221 = vmatpush1.msra.mxu0 0.0
        %4222 = vmatprep.subr.mxu0 0.0
        %4223 = vmatpush1.msra.mxu0 0.0
        %4224 = vmatprep.subr.mxu0 0.0
        %4225 = vmatpush1.msra.mxu0 0.0
        %4226 = vmatprep.subr.mxu0 0.0
        %4227 = vmatpush1.msra.mxu0 0.0
        %4228 = vmatprep.subr.mxu0 0.0
        %4229 = vmatpush1.msra.mxu0 0.0
        %4230 = vmatprep.subr.mxu0 0.0
        %4231 = vmatpush1.msra.mxu0 0.0
        %4232 = vmatprep.subr.mxu0 0.0
        %4233 = vmatpush1.msra.mxu0 0.0
        %4234 = vmatprep.subr.mxu0 0.0
        %4235 = vmatpush1.msra.mxu0 0.0
        %4236 = vmatprep.subr.mxu0 0.0
        %4237 = vmatpush1.msra.mxu0 0.0
        %4238 = vmatprep.subr.mxu0 0.0
        %4239 = vmatpush1.msra.mxu0 0.0
        %4240 = vmatprep.subr.mxu0 0.0
        %4241 = vmatpush1.msra.mxu0 0.0
        %4242 = vmatprep.subr.mxu0 0.0
        %4243 = vmatpush1.msra.mxu0 0.0
        %4244 = vmatprep.subr.mxu0 0.0
        %4245 = vmatpush1.msra.mxu0 0.0
        %4246 = vmatprep.subr.mxu0 0.0
        %4247 = vmatpush1.msra.mxu0 0.0
        %4248 = vmatprep.subr.mxu0 0.0
        %4249 = vmatpush1.msra.mxu0 0.0
        %4250 = vmatprep.subr.mxu0 0.0
        %4251 = vmatpush1.msra.mxu0 0.0
        %4252 = vmatprep.subr.mxu0 0.0
        %4253 = vmatpush1.msra.mxu0 0.0
        %4254 = vmatprep.subr.mxu0 0.0
        %4255 = vmatpush1.msra.mxu0 0.0
        %4256 = vmatprep.subr.mxu0 0.0
        %4257 = vmatpush1.msra.mxu0 0.0
        %4258 = vmatprep.subr.mxu0 0.0
        %4259 = vmatpush1.msra.mxu0 0.0
        %4260 = vmatprep.subr.mxu0 0.0
        %4261 = vmatpush1.msra.mxu0 0.0
        %4262 = vmatprep.subr.mxu0 0.0
        %4263 = vmatpush1.msra.mxu0 0.0
        %4264 = vmatprep.subr.mxu0 0.0
        %4265 = vmatpush1.msra.mxu0 0.0
        %4266 = vmatprep.subr.mxu0 0.0
        %4267 = vmatpush1.msra.mxu0 0.0
        %4268 = vmatprep.mubr.f32.mxu0 0.0
        %4269 = vmatmul.mubr.f32.gmra.mrb[0].mxu0 %v4166
        %v4270 = vpop.f32.mrb[0].mxu0
        %v4271 = vadd.f32 %v4163, %v4270
        %v4272 = vpop.f32.mrb[0].mxu0
        %4273 = vmatprep.mubr.f32.mxu0 0.0
        %4274 = vmatmul.mubr.f32.gmra.mrb[0].mxu0 %v4169
        %v4275 = vpop.f32.mrb[0].mxu0
        %v4276 = vadd.f32 %v4163, %v4275
        %v4277 = vpop.f32.mrb[0].mxu0
        %4278 = vmatprep.mubr.f32.mxu0 0.0
        %4279 = vmatmul.mubr.f32.gmra.mrb[0].mxu0 %v4172
        %v4280 = vpop.f32.mrb[0].mxu0
        %v4281 = vadd.f32 %v4163, %v4280
        %v4282 = vpop.f32.mrb[0].mxu0
        %4283 = vmatprep.mubr.f32.mxu0 0.0
        %4284 = vmatmul.mubr.f32.gmra.mrb[0].mxu0 %v4175
        %v4285 = vpop.f32.mrb[0].mxu0
        %v4286 = vadd.f32 %v4163, %v4285
        %v4287 = vpop.f32.mrb[0].mxu0
        %4288 = vmatprep.mubr.f32.mxu0 0.0
        %4289 = vmatmul.mubr.f32.gmra.mrb[0].mxu0 %v4178
        %v4290 = vpop.f32.mrb[0].mxu0
        %v4291 = vadd.f32 %v4163, %v4290
        %v4292 = vpop.f32.mrb[0].mxu0
        %4293 = vmatprep.mubr.f32.mxu0 0.0
        %4294 = vmatmul.mubr.f32.gmra.mrb[0].mxu0 %v4181
        %v4295 = vpop.f32.mrb[0].mxu0
        %v4296 = vadd.f32 %v4163, %v4295
        %v4297 = vpop.f32.mrb[0].mxu0
        %4298 = vmatprep.mubr.f32.mxu0 0.0
        %4299 = vmatmul.mubr.f32.gmra.mrb[0].mxu0 %v4184
        %v4300 = vpop.f32.mrb[0].mxu0
        %v4301 = vadd.f32 %v4163, %v4300
        %v4302 = vpop.f32.mrb[0].mxu0
        %4303 = vmatprep.mubr.f32.mxu0 0.0
        %4304 = vmatmul.mubr.f32.gmra.mrb[0].mxu0 %v4187
        %v4305 = vpop.f32.mrb[0].mxu0
        %v4306 = vadd.f32 %v4163, %v4305
        %v4307 = vpop.f32.mrb[0].mxu0
        %4308 = vmatprep.mubr.f32.mxu0 0.0
        %4309 = vmatmul.mubr.f32.gmra.mrb[0].mxu0 %v4190
        %v4310 = vpop.f32.mrb[0].mxu0
        %v4311 = vadd.f32 %v4163, %v4310
        %v4312 = vpop.f32.mrb[0].mxu0
        %4313 = vmatprep.mubr.f32.mxu0 0.0
        %4314 = vmatmul.mubr.f32.gmra.mrb[0].mxu0 %v4193
        %v4315 = vpop.f32.mrb[0].mxu0
        %v4316 = vadd.f32 %v4163, %v4315
        %v4317 = vpop.f32.mrb[0].mxu0
        %4318 = vmatprep.mubr.f32.mxu0 0.0
        %4319 = vmatmul.mubr.f32.gmra.mrb[0].mxu0 %v4196
        %v4320 = vpop.f32.mrb[0].mxu0
        %v4321 = vadd.f32 %v4163, %v4320
        %v4322 = vpop.f32.mrb[0].mxu0
        %4323 = vmatprep.mubr.f32.mxu0 0.0
        %4324 = vmatmul.mubr.f32.gmra.mrb[0].mxu0 %v4199
        %v4325 = vpop.f32.mrb[0].mxu0
        %v4326 = vadd.f32 %v4163, %v4325
        %v4327 = vpop.f32.mrb[0].mxu0
        %4328 = vmatprep.mubr.f32.mxu0 0.0
        %4329 = vmatmul.mubr.f32.gmra.mrb[0].mxu0 %v4202
        %v4330 = vpop.f32.mrb[0].mxu0
        %v4331 = vadd.f32 %v4163, %v4330
        %v4332 = vpop.f32.mrb[0].mxu0
        %4333 = vdwg.mxu0
        %vm4334 = vcmp.gt.f32.partialorder %v4271, 0.0
        %vm4335 = vcmp.gt.f32.partialorder %v4276, 0.0
        %vm4336 = vcmp.gt.f32.partialorder %v4281, 0.0
        %vm4337 = vcmp.gt.f32.partialorder %v4286, 0.0
        %vm4338 = vcmp.gt.f32.partialorder %v4291, 0.0
        %vm4339 = vcmp.gt.f32.partialorder %v4296, 0.0
        %vm4340 = vcmp.gt.f32.partialorder %v4301, 0.0
        %vm4341 = vcmp.gt.f32.partialorder %v4306, 0.0
        %vm4342 = vcmp.gt.f32.partialorder %v4311, 0.0
        %vm4343 = vcmp.gt.f32.partialorder %v4316, 0.0
        %vm4344 = vcmp.gt.f32.partialorder %v4321, 0.0
        %vm4345 = vcmp.gt.f32.partialorder %v4326, 0.0
        %vm4346 = vcmp.gt.f32.partialorder %v4331, 0.0
        %v4347 = vmul.f32 %v4271, 0.2
        %v4348 = vmul.f32 %v4276, 0.2
        %v4349 = vmul.f32 %v4281, 0.2
        %v4350 = vmul.f32 %v4286, 0.2
        %v4351 = vmul.f32 %v4291, 0.2
        %v4352 = vmul.f32 %v4296, 0.2
        %v4353 = vmul.f32 %v4301, 0.2
        %v4354 = vmul.f32 %v4306, 0.2
        %v4355 = vmul.f32 %v4311, 0.2
        %v4356 = vmul.f32 %v4316, 0.2
        %v4357 = vmul.f32 %v4321, 0.2
        %v4358 = vmul.f32 %v4326, 0.2
        %v4359 = vmul.f32 %v4331, 0.2
        %v4360 = vsel %vm4334, %v4271, %v4347
        %v4361 = vsel %vm4335, %v4276, %v4348
        %v4362 = vsel %vm4336, %v4281, %v4349
        %v4363 = vsel %vm4337, %v4286, %v4350
        %v4364 = vsel %vm4338, %v4291, %v4351
        %v4365 = vsel %vm4339, %v4296, %v4352
        %v4366 = vsel %vm4340, %v4301, %v4353
        %v4367 = vsel %vm4341, %v4306, %v4354
        %v4368 = vsel %vm4342, %v4311, %v4355
        %v4369 = vsel %vm4343, %v4316, %v4356
        %v4370 = vsel %vm4344, %v4321, %v4357
        %v4371 = vsel %vm4345, %v4326, %v4358
        %v4372 = vsel %vm4346, %v4331, %v4359
        %s4373 = scalar_lea.vmem [#allocation2], 528
        %v4374 = vld [vmem:[%s4373] sm:$0xff]
        %v4375 = vld [vmem:[%s4373 + $0x8] sm:$0xff]
        %v4376 = vld [vmem:[%s4373 + $0x10] sm:$0xff]
        %v4377 = vld [vmem:[%s4373 + $0x18] sm:$0xff]
        %v4378 = vld [vmem:[%s4373 + $0x20] sm:$0xff]
        %v4379 = vld [vmem:[%s4373 + $0x28] sm:$0xff]
        %s4380 = scalar_lea.vmem %s3, 15
        %v4381 = vld [vmem:[%s4380] sm:$0x1]
        %v4383 = vlaneseq
        %v4384 = vshrl.u32 %v4383, 7
        %v4385 = vsub.s32 0, %v4384
        %v4386 = vrot.slane %v4381, %v4385
        %v4389 = vsel %vm473, %v4360, 0
        %v4392 = vsel %vm473, %v4361, 0
        %v4395 = vsel %vm473, %v4362, 0
        %v4398 = vsel %vm473, %v4363, 0
        %v4401 = vsel %vm473, %v4364, 0
        %v4404 = vsel %vm473, %v4365, 0
        %v4407 = vsel %vm473, %v4366, 0
        %v4410 = vsel %vm473, %v4367, 0
        %v4413 = vsel %vm473, %v4368, 0
        %v4416 = vsel %vm473, %v4369, 0
        %v4419 = vsel %vm473, %v4370, 0
        %v4422 = vsel %vm473, %v4371, 0
        %v4425 = vsel %vm473, %v4372, 0
        %4427 = vmatprep.subr.mxu0 0.0
        %4428 = vmatpush1.msra.mxu0 %v4374
        %4429 = vmatprep.subr.mxu0 0.0
        %4430 = vmatpush1.msra.mxu0 %v4375
        %4431 = vmatprep.subr.mxu0 0.0
        %4432 = vmatpush1.msra.mxu0 %v4376
        %4433 = vmatprep.subr.mxu0 0.0
        %4434 = vmatpush1.msra.mxu0 %v4377
        %4435 = vmatprep.subr.mxu0 0.0
        %4436 = vmatpush1.msra.mxu0 %v4378
        %4437 = vmatprep.subr.mxu0 0.0
        %4438 = vmatpush1.msra.mxu0 %v4379
        %4439 = vmatprep.subr.mxu0 0.0
        %4440 = vmatpush1.msra.mxu0 0.0
        %4441 = vmatprep.subr.mxu0 0.0
        %4442 = vmatpush1.msra.mxu0 0.0
        %4443 = vmatprep.subr.mxu0 0.0
        %4444 = vmatpush1.msra.mxu0 0.0
        %4445 = vmatprep.subr.mxu0 0.0
        %4446 = vmatpush1.msra.mxu0 0.0
        %4447 = vmatprep.subr.mxu0 0.0
        %4448 = vmatpush1.msra.mxu0 0.0
        %4449 = vmatprep.subr.mxu0 0.0
        %4450 = vmatpush1.msra.mxu0 0.0
        %4451 = vmatprep.subr.mxu0 0.0
        %4452 = vmatpush1.msra.mxu0 0.0
        %4453 = vmatprep.subr.mxu0 0.0
        %4454 = vmatpush1.msra.mxu0 0.0
        %4455 = vmatprep.subr.mxu0 0.0
        %4456 = vmatpush1.msra.mxu0 0.0
        %4457 = vmatprep.subr.mxu0 0.0
        %4458 = vmatpush1.msra.mxu0 0.0
        %4459 = vmatprep.subr.mxu0 0.0
        %4460 = vmatpush1.msra.mxu0 0.0
        %4461 = vmatprep.subr.mxu0 0.0
        %4462 = vmatpush1.msra.mxu0 0.0
        %4463 = vmatprep.subr.mxu0 0.0
        %4464 = vmatpush1.msra.mxu0 0.0
        %4465 = vmatprep.subr.mxu0 0.0
        %4466 = vmatpush1.msra.mxu0 0.0
        %4467 = vmatprep.subr.mxu0 0.0
        %4468 = vmatpush1.msra.mxu0 0.0
        %4469 = vmatprep.subr.mxu0 0.0
        %4470 = vmatpush1.msra.mxu0 0.0
        %4471 = vmatprep.subr.mxu0 0.0
        %4472 = vmatpush1.msra.mxu0 0.0
        %4473 = vmatprep.subr.mxu0 0.0
        %4474 = vmatpush1.msra.mxu0 0.0
        %4475 = vmatprep.subr.mxu0 0.0
        %4476 = vmatpush1.msra.mxu0 0.0
        %4477 = vmatprep.subr.mxu0 0.0
        %4478 = vmatpush1.msra.mxu0 0.0
        %4479 = vmatprep.subr.mxu0 0.0
        %4480 = vmatpush1.msra.mxu0 0.0
        %4481 = vmatprep.subr.mxu0 0.0
        %4482 = vmatpush1.msra.mxu0 0.0
        %4483 = vmatprep.subr.mxu0 0.0
        %4484 = vmatpush1.msra.mxu0 0.0
        %4485 = vmatprep.subr.mxu0 0.0
        %4486 = vmatpush1.msra.mxu0 0.0
        %4487 = vmatprep.subr.mxu0 0.0
        %4488 = vmatpush1.msra.mxu0 0.0
        %4489 = vmatprep.subr.mxu0 0.0
        %4490 = vmatpush1.msra.mxu0 0.0
        %4491 = vmatprep.mubr.f32.mxu0 0.0
        %4492 = vmatmul.mubr.f32.gmra.mrb[0].mxu0 %v4389
        %v4493 = vpop.f32.mrb[0].mxu0
        %v4494 = vadd.f32 %v4386, %v4493
        %v4495 = vpop.f32.mrb[0].mxu0
        %4496 = vmatprep.mubr.f32.mxu0 0.0
        %4497 = vmatmul.mubr.f32.gmra.mrb[0].mxu0 %v4392
        %v4498 = vpop.f32.mrb[0].mxu0
        %v4499 = vadd.f32 %v4386, %v4498
        %v4500 = vpop.f32.mrb[0].mxu0
        %4501 = vmatprep.mubr.f32.mxu0 0.0
        %4502 = vmatmul.mubr.f32.gmra.mrb[0].mxu0 %v4395
        %v4503 = vpop.f32.mrb[0].mxu0
        %v4504 = vadd.f32 %v4386, %v4503
        %v4505 = vpop.f32.mrb[0].mxu0
        %4506 = vmatprep.mubr.f32.mxu0 0.0
        %4507 = vmatmul.mubr.f32.gmra.mrb[0].mxu0 %v4398
        %v4508 = vpop.f32.mrb[0].mxu0
        %v4509 = vadd.f32 %v4386, %v4508
        %v4510 = vpop.f32.mrb[0].mxu0
        %4511 = vmatprep.mubr.f32.mxu0 0.0
        %4512 = vmatmul.mubr.f32.gmra.mrb[0].mxu0 %v4401
        %v4513 = vpop.f32.mrb[0].mxu0
        %v4514 = vadd.f32 %v4386, %v4513
        %v4515 = vpop.f32.mrb[0].mxu0
        %4516 = vmatprep.mubr.f32.mxu0 0.0
        %4517 = vmatmul.mubr.f32.gmra.mrb[0].mxu0 %v4404
        %v4518 = vpop.f32.mrb[0].mxu0
        %v4519 = vadd.f32 %v4386, %v4518
        %v4520 = vpop.f32.mrb[0].mxu0
        %4521 = vmatprep.mubr.f32.mxu0 0.0
        %4522 = vmatmul.mubr.f32.gmra.mrb[0].mxu0 %v4407
        %v4523 = vpop.f32.mrb[0].mxu0
        %v4524 = vadd.f32 %v4386, %v4523
        %v4525 = vpop.f32.mrb[0].mxu0
        %4526 = vmatprep.mubr.f32.mxu0 0.0
        %4527 = vmatmul.mubr.f32.gmra.mrb[0].mxu0 %v4410
        %v4528 = vpop.f32.mrb[0].mxu0
        %v4529 = vadd.f32 %v4386, %v4528
        %v4530 = vpop.f32.mrb[0].mxu0
        %4531 = vmatprep.mubr.f32.mxu0 0.0
        %4532 = vmatmul.mubr.f32.gmra.mrb[0].mxu0 %v4413
        %v4533 = vpop.f32.mrb[0].mxu0
        %v4534 = vadd.f32 %v4386, %v4533
        %v4535 = vpop.f32.mrb[0].mxu0
        %4536 = vmatprep.mubr.f32.mxu0 0.0
        %4537 = vmatmul.mubr.f32.gmra.mrb[0].mxu0 %v4416
        %v4538 = vpop.f32.mrb[0].mxu0
        %v4539 = vadd.f32 %v4386, %v4538
        %v4540 = vpop.f32.mrb[0].mxu0
        %4541 = vmatprep.mubr.f32.mxu0 0.0
        %4542 = vmatmul.mubr.f32.gmra.mrb[0].mxu0 %v4419
        %v4543 = vpop.f32.mrb[0].mxu0
        %v4544 = vadd.f32 %v4386, %v4543
        %v4545 = vpop.f32.mrb[0].mxu0
        %4546 = vmatprep.mubr.f32.mxu0 0.0
        %4547 = vmatmul.mubr.f32.gmra.mrb[0].mxu0 %v4422
        %v4548 = vpop.f32.mrb[0].mxu0
        %v4549 = vadd.f32 %v4386, %v4548
        %v4550 = vpop.f32.mrb[0].mxu0
        %4551 = vmatprep.mubr.f32.mxu0 0.0
        %4552 = vmatmul.mubr.f32.gmra.mrb[0].mxu0 %v4425
        %v4553 = vpop.f32.mrb[0].mxu0
        %v4554 = vadd.f32 %v4386, %v4553
        %v4555 = vpop.f32.mrb[0].mxu0
        %4556 = vdwg.mxu0
        %v4557 = vmul.f32 %v4494, 1.442695
        %v4558 = vpow.pop %v4557
        %v4559 = vmul.f32 %v4499, 1.442695
        %v4560 = vpow.pop %v4559
        %v4561 = vmul.f32 %v4504, 1.442695
        %v4562 = vpow.pop %v4561
        %v4563 = vmul.f32 %v4509, 1.442695
        %v4564 = vpow.pop %v4563
        %v4565 = vmul.f32 %v4514, 1.442695
        %v4566 = vpow.pop %v4565
        %v4567 = vmul.f32 %v4519, 1.442695
        %v4568 = vpow.pop %v4567
        %v4569 = vmul.f32 %v4524, 1.442695
        %v4570 = vpow.pop %v4569
        %v4571 = vmul.f32 %v4529, 1.442695
        %v4572 = vpow.pop %v4571
        %v4573 = vmul.f32 %v4534, 1.442695
        %v4574 = vpow.pop %v4573
        %v4575 = vmul.f32 %v4539, 1.442695
        %v4576 = vpow.pop %v4575
        %v4577 = vmul.f32 %v4544, 1.442695
        %v4578 = vpow.pop %v4577
        %v4579 = vmul.f32 %v4549, 1.442695
        %v4580 = vpow.pop %v4579
        %v4581 = vmul.f32 %v4554, 1.442695
        %v4582 = vpow.pop %v4581
        %4596 = vrot.lane.b32.xlu0 %v3804, 76
        %v4597 = vpop.permute.xlu0 %4596
        %4598 = vrot.lane.b32.xlu0 %v3809, 76
        %v4599 = vpop.permute.xlu0 %4598
        %4600 = vrot.lane.b32.xlu0 %v3814, 76
        %v4601 = vpop.permute.xlu0 %4600
        %4602 = vrot.lane.b32.xlu0 %v3819, 76
        %v4603 = vpop.permute.xlu0 %4602
        %4604 = vrot.lane.b32.xlu0 %v3824, 76
        %v4605 = vpop.permute.xlu0 %4604
        %4606 = vrot.lane.b32.xlu0 %v3829, 76
        %v4607 = vpop.permute.xlu0 %4606
        %4608 = vrot.lane.b32.xlu0 %v3834, 76
        %v4609 = vpop.permute.xlu0 %4608
        %4610 = vrot.lane.b32.xlu0 %v3839, 76
        %v4611 = vpop.permute.xlu0 %4610
        %4612 = vrot.lane.b32.xlu0 %v3844, 76
        %v4613 = vpop.permute.xlu0 %4612
        %4614 = vrot.lane.b32.xlu0 %v3849, 76
        %v4615 = vpop.permute.xlu0 %4614
        %4616 = vrot.lane.b32.xlu0 %v3854, 76
        %v4617 = vpop.permute.xlu0 %4616
        %4618 = vrot.lane.b32.xlu0 %v3859, 76
        %v4619 = vpop.permute.xlu0 %4618
        %4620 = vrot.lane.b32.xlu0 %v3864, 76
        %v4621 = vpop.permute.xlu0 %4620
        %v4635 = vmul.f32 %v4558, %v4597
        %v4636 = vmul.f32 %v4560, %v4599
        %v4637 = vmul.f32 %v4562, %v4601
        %v4638 = vmul.f32 %v4564, %v4603
        %v4639 = vmul.f32 %v4566, %v4605
        %v4640 = vmul.f32 %v4568, %v4607
        %v4641 = vmul.f32 %v4570, %v4609
        %v4642 = vmul.f32 %v4572, %v4611
        %v4643 = vmul.f32 %v4574, %v4613
        %v4644 = vmul.f32 %v4576, %v4615
        %v4645 = vmul.f32 %v4578, %v4617
        %v4646 = vmul.f32 %v4580, %v4619
        %v4647 = vmul.f32 %v4582, %v4621
        %4661 = vrot.lane.b32.xlu0 %v4494, 124
        %v4662 = vpop.permute.xlu0 %4661
        %4663 = vrot.lane.b32.xlu0 %v4499, 124
        %v4664 = vpop.permute.xlu0 %4663
        %4665 = vrot.lane.b32.xlu0 %v4504, 124
        %v4666 = vpop.permute.xlu0 %4665
        %4667 = vrot.lane.b32.xlu0 %v4509, 124
        %v4668 = vpop.permute.xlu0 %4667
        %4669 = vrot.lane.b32.xlu0 %v4514, 124
        %v4670 = vpop.permute.xlu0 %4669
        %4671 = vrot.lane.b32.xlu0 %v4519, 124
        %v4672 = vpop.permute.xlu0 %4671
        %4673 = vrot.lane.b32.xlu0 %v4524, 124
        %v4674 = vpop.permute.xlu0 %4673
        %4675 = vrot.lane.b32.xlu0 %v4529, 124
        %v4676 = vpop.permute.xlu0 %4675
        %4677 = vrot.lane.b32.xlu0 %v4534, 124
        %v4678 = vpop.permute.xlu0 %4677
        %4679 = vrot.lane.b32.xlu0 %v4539, 124
        %v4680 = vpop.permute.xlu0 %4679
        %4681 = vrot.lane.b32.xlu0 %v4544, 124
        %v4682 = vpop.permute.xlu0 %4681
        %4683 = vrot.lane.b32.xlu0 %v4549, 124
        %v4684 = vpop.permute.xlu0 %4683
        %4685 = vrot.lane.b32.xlu0 %v4554, 124
        %v4686 = vpop.permute.xlu0 %4685
        %v4700 = vadd.f32 %v4635, %v4662
        %v4701 = vadd.f32 %v4636, %v4664
        %v4702 = vadd.f32 %v4637, %v4666
        %v4703 = vadd.f32 %v4638, %v4668
        %v4704 = vadd.f32 %v4639, %v4670
        %v4705 = vadd.f32 %v4640, %v4672
        %v4706 = vadd.f32 %v4641, %v4674
        %v4707 = vadd.f32 %v4642, %v4676
        %v4708 = vadd.f32 %v4643, %v4678
        %v4709 = vadd.f32 %v4644, %v4680
        %v4710 = vadd.f32 %v4645, %v4682
        %v4711 = vadd.f32 %v4646, %v4684
        %v4712 = vadd.f32 %v4647, %v4686
        %4713 = vrot.lane.b32.xlu0 %v3804, 84
        %v4714 = vpop.permute.xlu0 %4713
        %4715 = vrot.lane.b32.xlu0 %v3809, 84
        %v4716 = vpop.permute.xlu0 %4715
        %4717 = vrot.lane.b32.xlu0 %v3814, 84
        %v4718 = vpop.permute.xlu0 %4717
        %4719 = vrot.lane.b32.xlu0 %v3819, 84
        %v4720 = vpop.permute.xlu0 %4719
        %4721 = vrot.lane.b32.xlu0 %v3824, 84
        %v4722 = vpop.permute.xlu0 %4721
        %4723 = vrot.lane.b32.xlu0 %v3829, 84
        %v4724 = vpop.permute.xlu0 %4723
        %4725 = vrot.lane.b32.xlu0 %v3834, 84
        %v4726 = vpop.permute.xlu0 %4725
        %4727 = vrot.lane.b32.xlu0 %v3839, 84
        %v4728 = vpop.permute.xlu0 %4727
        %4729 = vrot.lane.b32.xlu0 %v3844, 84
        %v4730 = vpop.permute.xlu0 %4729
        %4731 = vrot.lane.b32.xlu0 %v3849, 84
        %v4732 = vpop.permute.xlu0 %4731
        %4733 = vrot.lane.b32.xlu0 %v3854, 84
        %v4734 = vpop.permute.xlu0 %4733
        %4735 = vrot.lane.b32.xlu0 %v3859, 84
        %v4736 = vpop.permute.xlu0 %4735
        %4737 = vrot.lane.b32.xlu0 %v3864, 84
        %v4738 = vpop.permute.xlu0 %4737
        %v4752 = vsel %vm1336, %v4700, %v4714
        %v4753 = vsel %vm1336, %v4701, %v4716
        %v4754 = vsel %vm1336, %v4702, %v4718
        %v4755 = vsel %vm1336, %v4703, %v4720
        %v4756 = vsel %vm1336, %v4704, %v4722
        %v4757 = vsel %vm1336, %v4705, %v4724
        %v4758 = vsel %vm1336, %v4706, %v4726
        %v4759 = vsel %vm1336, %v4707, %v4728
        %v4760 = vsel %vm1336, %v4708, %v4730
        %v4761 = vsel %vm1336, %v4709, %v4732
        %v4762 = vsel %vm1336, %v4710, %v4734
        %v4763 = vsel %vm1336, %v4711, %v4736
        %v4764 = vsel %vm1336, %v4712, %v4738
        %v4765 = vsel %vm1336, %v4494, 0.0
        %4766 = vadd.xlane.f32.xlu0 %v4765
        %v4767 = vpop.xlane.xlu0 %4766
        %v4768 = vsel %vm1336, %v4499, 0.0
        %4769 = vadd.xlane.f32.xlu0 %v4768
        %v4770 = vpop.xlane.xlu0 %4769
        %v4771 = vsel %vm1336, %v4504, 0.0
        %4772 = vadd.xlane.f32.xlu0 %v4771
        %v4773 = vpop.xlane.xlu0 %4772
        %v4774 = vsel %vm1336, %v4509, 0.0
        %4775 = vadd.xlane.f32.xlu0 %v4774
        %v4776 = vpop.xlane.xlu0 %4775
        %v4777 = vsel %vm1336, %v4514, 0.0
        %4778 = vadd.xlane.f32.xlu0 %v4777
        %v4779 = vpop.xlane.xlu0 %4778
        %v4780 = vsel %vm1336, %v4519, 0.0
        %4781 = vadd.xlane.f32.xlu0 %v4780
        %v4782 = vpop.xlane.xlu0 %4781
        %v4783 = vsel %vm1336, %v4524, 0.0
        %4784 = vadd.xlane.f32.xlu0 %v4783
        %v4785 = vpop.xlane.xlu0 %4784
        %v4786 = vsel %vm1336, %v4529, 0.0
        %4787 = vadd.xlane.f32.xlu0 %v4786
        %v4788 = vpop.xlane.xlu0 %4787
        %v4789 = vsel %vm1336, %v4534, 0.0
        %4790 = vadd.xlane.f32.xlu0 %v4789
        %v4791 = vpop.xlane.xlu0 %4790
        %v4792 = vsel %vm1336, %v4539, 0.0
        %4793 = vadd.xlane.f32.xlu0 %v4792
        %v4794 = vpop.xlane.xlu0 %4793
        %v4795 = vsel %vm1336, %v4544, 0.0
        %4796 = vadd.xlane.f32.xlu0 %v4795
        %v4797 = vpop.xlane.xlu0 %4796
        %v4798 = vsel %vm1336, %v4549, 0.0
        %4799 = vadd.xlane.f32.xlu0 %v4798
        %v4800 = vpop.xlane.xlu0 %4799
        %v4801 = vsel %vm1336, %v4554, 0.0
        %4802 = vadd.xlane.f32.xlu0 %v4801
        %v4803 = vpop.xlane.xlu0 %4802
        %v4804 = vadd.f32 %v3683, %v4767
        %v4805 = vadd.f32 %v3684, %v4770
        %v4806 = vadd.f32 %v3685, %v4773
        %v4807 = vadd.f32 %v3686, %v4776
        %v4808 = vadd.f32 %v3687, %v4779
        %v4809 = vadd.f32 %v3688, %v4782
        %v4810 = vadd.f32 %v3689, %v4785
        %v4811 = vadd.f32 %v3690, %v4788
        %v4812 = vadd.f32 %v3691, %v4791
        %v4813 = vadd.f32 %v3692, %v4794
        %v4814 = vadd.f32 %v3693, %v4797
        %v4815 = vadd.f32 %v3694, %v4800
        %v4816 = vadd.f32 %v3695, %v4803
        %4817 = vrot.lane.b32.xlu0 %v2458, 8
        %v4818 = vpop.permute.xlu0 %4817
        %4819 = vrot.lane.b32.xlu0 %v2459, 8
        %v4820 = vpop.permute.xlu0 %4819
        %4821 = vrot.lane.b32.xlu0 %v2460, 8
        %v4822 = vpop.permute.xlu0 %4821
        %4823 = vrot.lane.b32.xlu0 %v2461, 8
        %v4824 = vpop.permute.xlu0 %4823
        %4825 = vrot.lane.b32.xlu0 %v2462, 8
        %v4826 = vpop.permute.xlu0 %4825
        %4827 = vrot.lane.b32.xlu0 %v2463, 8
        %v4828 = vpop.permute.xlu0 %4827
        %4829 = vrot.lane.b32.xlu0 %v2464, 8
        %v4830 = vpop.permute.xlu0 %4829
        %4831 = vrot.lane.b32.xlu0 %v2465, 8
        %v4832 = vpop.permute.xlu0 %4831
        %4833 = vrot.lane.b32.xlu0 %v2466, 8
        %v4834 = vpop.permute.xlu0 %4833
        %4835 = vrot.lane.b32.xlu0 %v2467, 8
        %v4836 = vpop.permute.xlu0 %4835
        %4837 = vrot.lane.b32.xlu0 %v2468, 8
        %v4838 = vpop.permute.xlu0 %4837
        %4839 = vrot.lane.b32.xlu0 %v2469, 8
        %v4840 = vpop.permute.xlu0 %4839
        %4841 = vrot.lane.b32.xlu0 %v2470, 8
        %v4842 = vpop.permute.xlu0 %4841
        %4856 = vrot.lane.b32.xlu0 %v3631, 16
        %v4857 = vpop.permute.xlu0 %4856
        %4858 = vrot.lane.b32.xlu0 %v3632, 16
        %v4859 = vpop.permute.xlu0 %4858
        %4860 = vrot.lane.b32.xlu0 %v3633, 16
        %v4861 = vpop.permute.xlu0 %4860
        %4862 = vrot.lane.b32.xlu0 %v3634, 16
        %v4863 = vpop.permute.xlu0 %4862
        %4864 = vrot.lane.b32.xlu0 %v3635, 16
        %v4865 = vpop.permute.xlu0 %4864
        %4866 = vrot.lane.b32.xlu0 %v3636, 16
        %v4867 = vpop.permute.xlu0 %4866
        %4868 = vrot.lane.b32.xlu0 %v3637, 16
        %v4869 = vpop.permute.xlu0 %4868
        %4870 = vrot.lane.b32.xlu0 %v3638, 16
        %v4871 = vpop.permute.xlu0 %4870
        %4872 = vrot.lane.b32.xlu0 %v3639, 16
        %v4873 = vpop.permute.xlu0 %4872
        %4874 = vrot.lane.b32.xlu0 %v3640, 16
        %v4875 = vpop.permute.xlu0 %4874
        %4876 = vrot.lane.b32.xlu0 %v3641, 16
        %v4877 = vpop.permute.xlu0 %4876
        %4878 = vrot.lane.b32.xlu0 %v3642, 16
        %v4879 = vpop.permute.xlu0 %4878
        %4880 = vrot.lane.b32.xlu0 %v3643, 16
        %v4881 = vpop.permute.xlu0 %4880
        %4908 = vrot.lane.b32.xlu0 %v4752, 24
        %v4909 = vpop.permute.xlu0 %4908
        %4910 = vrot.lane.b32.xlu0 %v4753, 24
        %v4911 = vpop.permute.xlu0 %4910
        %4912 = vrot.lane.b32.xlu0 %v4754, 24
        %v4913 = vpop.permute.xlu0 %4912
        %4914 = vrot.lane.b32.xlu0 %v4755, 24
        %v4915 = vpop.permute.xlu0 %4914
        %4916 = vrot.lane.b32.xlu0 %v4756, 24
        %v4917 = vpop.permute.xlu0 %4916
        %4918 = vrot.lane.b32.xlu0 %v4757, 24
        %v4919 = vpop.permute.xlu0 %4918
        %4920 = vrot.lane.b32.xlu0 %v4758, 24
        %v4921 = vpop.permute.xlu0 %4920
        %4922 = vrot.lane.b32.xlu0 %v4759, 24
        %v4923 = vpop.permute.xlu0 %4922
        %4924 = vrot.lane.b32.xlu0 %v4760, 24
        %v4925 = vpop.permute.xlu0 %4924
        %4926 = vrot.lane.b32.xlu0 %v4761, 24
        %v4927 = vpop.permute.xlu0 %4926
        %4928 = vrot.lane.b32.xlu0 %v4762, 24
        %v4929 = vpop.permute.xlu0 %4928
        %4930 = vrot.lane.b32.xlu0 %v4763, 24
        %v4931 = vpop.permute.xlu0 %4930
        %4932 = vrot.lane.b32.xlu0 %v4764, 24
        %v4933 = vpop.permute.xlu0 %4932
        %v4947 = vsel %vm230, %v1337, %v4818
        %v4948 = vsel %vm230, %v1338, %v4820
        %v4949 = vsel %vm230, %v1339, %v4822
        %v4950 = vsel %vm230, %v1340, %v4824
        %v4951 = vsel %vm230, %v1341, %v4826
        %v4952 = vsel %vm230, %v1342, %v4828
        %v4953 = vsel %vm230, %v1343, %v4830
        %v4954 = vsel %vm230, %v1344, %v4832
        %v4955 = vsel %vm230, %v1345, %v4834
        %v4956 = vsel %vm230, %v1346, %v4836
        %v4957 = vsel %vm230, %v1347, %v4838
        %v4958 = vsel %vm230, %v1348, %v4840
        %v4959 = vsel %vm230, %v1349, %v4842
        %vm4960 = vcmask 130048
        %v4961 = vsel %vm4960, %v4947, %v4857
        %v4962 = vsel %vm4960, %v4948, %v4859
        %v4963 = vsel %vm4960, %v4949, %v4861
        %v4964 = vsel %vm4960, %v4950, %v4863
        %v4965 = vsel %vm4960, %v4951, %v4865
        %v4966 = vsel %vm4960, %v4952, %v4867
        %v4967 = vsel %vm4960, %v4953, %v4869
        %v4968 = vsel %vm4960, %v4954, %v4871
        %v4969 = vsel %vm4960, %v4955, %v4873
        %v4970 = vsel %vm4960, %v4956, %v4875
        %v4971 = vsel %vm4960, %v4957, %v4877
        %v4972 = vsel %vm4960, %v4958, %v4879
        %v4973 = vsel %vm4960, %v4959, %v4881
        %vm4974 = vcmask 195584
        %v4975 = vsel %vm4974, %v4961, %v4909
        %v4976 = vsel %vm4974, %v4962, %v4911
        %v4977 = vsel %vm4974, %v4963, %v4913
        %v4978 = vsel %vm4974, %v4964, %v4915
        %v4979 = vsel %vm4974, %v4965, %v4917
        %v4980 = vsel %vm4974, %v4966, %v4919
        %v4981 = vsel %vm4974, %v4967, %v4921
        %v4982 = vsel %vm4974, %v4968, %v4923
        %v4983 = vsel %vm4974, %v4969, %v4925
        %v4984 = vsel %vm4974, %v4970, %v4927
        %v4985 = vsel %vm4974, %v4971, %v4929
        %v4986 = vsel %vm4974, %v4972, %v4931
        %v4987 = vsel %vm4974, %v4973, %v4933
        %vm4988 = vcmask 261120
        %v4989 = vsel %vm4988, %v4975, %v4804
        %v4990 = vsel %vm4988, %v4976, %v4805
        %v4991 = vsel %vm4988, %v4977, %v4806
        %v4992 = vsel %vm4988, %v4978, %v4807
        %v4993 = vsel %vm4988, %v4979, %v4808
        %v4994 = vsel %vm4988, %v4980, %v4809
        %v4995 = vsel %vm4988, %v4981, %v4810
        %v4996 = vsel %vm4988, %v4982, %v4811
        %v4997 = vsel %vm4988, %v4983, %v4812
        %v4998 = vsel %vm4988, %v4984, %v4813
        %v4999 = vsel %vm4988, %v4985, %v4814
        %v5000 = vsel %vm4988, %v4986, %v4815
        %v5001 = vsel %vm4988, %v4987, %v4816
        %vm5002 = vcmask 269312
        %5003 = vst.msk [vmem:[%s214] sm:$0xff] %vm5002, %v4989
        %5004 = vst.msk [vmem:[%s214 + $0x8] sm:$0xff] %vm5002, %v4990
        %5005 = vst.msk [vmem:[%s214 + $0x10] sm:$0xff] %vm5002, %v4991
        %5006 = vst.msk [vmem:[%s214 + $0x18] sm:$0xff] %vm5002, %v4992
        %5007 = vst.msk [vmem:[%s214 + $0x20] sm:$0xff] %vm5002, %v4993
        %5008 = vst.msk [vmem:[%s214 + $0x28] sm:$0xff] %vm5002, %v4994
        %5009 = vst.msk [vmem:[%s214 + $0x30] sm:$0xff] %vm5002, %v4995
        %5010 = vst.msk [vmem:[%s214 + $0x38] sm:$0xff] %vm5002, %v4996
        %5011 = vst.msk [vmem:[%s214 + $0x40] sm:$0xff] %vm5002, %v4997
        %5012 = vst.msk [vmem:[%s214 + $0x48] sm:$0xff] %vm5002, %v4998
        %5013 = vst.msk [vmem:[%s214 + $0x50] sm:$0xff] %vm5002, %v4999
        %5014 = vst.msk [vmem:[%s214 + $0x58] sm:$0xff] %vm5002, %v5000
        %5015 = vst.msk [vmem:[%s214 + $0x60] sm:$0xff] %vm5002, %v5001
        %s5016 = smul.u32 13, %s16
        %p5017 = scmp.lt.s32.totalorder %s5016, 25
        %s5018 = scalar_select %p5017, %s5016, 25
        %s5019 = smul.addr %s5018, 8
        %s5020 = scalar_lea.vmem %s4, %s5019
        // Predicated region
        $region41: #{tpu_custom_call.1} parent=35 // pred_check
          %p5021 = pneg %p123
        $region42: #{tpu_custom_call.1} parent=35 // pred_check_branch
          %5023 = sbr.rel (%p5021) target = $region44
        $region43: #{tpu_custom_call.1} parent=35 // pred_region
          %s5024 = smul.u32 13, %s16
        $region44: #{tpu_custom_call.1} parent=35 // pred_fallthru
          _
      $region36: #{tpu_custom_call.1} parent=5 // pred_fallthru
        _
      %p5025 = scmp.le.s32.totalorder 2, %s11
      // Predicated region
      $region45: #{tpu_custom_call.1} parent=5 // pred_check
        %p5026 = pneg %p5025
      $region46: #{tpu_custom_call.1} parent=5 // pred_check_branch
        %5028 = sbr.rel (%p5026) target = $region48
      $region47: #{tpu_custom_call.1} parent=5 // pred_region
        %s5029 = ssub.s32 %s11, 2
        // Predicated region
        $region49: #{tpu_custom_call.1} parent=47 // pred_check
          %p5030 = pneg %p129
        $region50: #{tpu_custom_call.1} parent=47 // pred_check_branch
          %5032 = sbr.rel (%p5030) target = $region52
        $region51: #{tpu_custom_call.1} parent=47 // pred_region
          %s5033 = smul.u32 13, %s17
          %p5034 = scmp.lt.s32.totalorder %s5033, 25
          %s5035 = scalar_select %p5034, %s5033, 25
          %s5036 = smul.addr %s5035, 8
          %s5037 = scalar_lea.vmem %s4, %s5036
        $region52: #{tpu_custom_call.1} parent=47 // pred_fallthru
          _
      $region48: #{tpu_custom_call.1} parent=5 // pred_fallthru
        _
    $region6: #{tpu_custom_call.1} parent=1 // loop_footer
      %s15 = sadd.s32 1, %s11
    $region7: #{tpu_custom_call.1} parent=1 // loop_footer_branch
      %10 = sbr.rel target = $region3
    $region8: #{tpu_custom_call.1} parent=1 // loop_exit
      _
    %5038 = vsyncpa [#allocation3], 1
    %s5039 = scalar_lea.sflag [#allocation3], 1
    %5040 = vsyncpa %s5039, 1

</llo_original>
